<compile_context>
chip_gen: v6e
topology: v6e:2x2x1
jax: 0.10.0
libtpu: 0.0.40
codegen_flags: <defaults>
</compile_context>

<pallas_src>
import math
import jax
import jax.numpy as jnp
from jax.experimental import pallas as pl
from jax.experimental.pallas import tpu as pltpu

# ---- synthetic model dims (small, lane-dense, consistent with the forward pass) ----
B = 2              # batch
S = 8              # config.sentence_max_length
H = 128            # hidden_size (768 in the real model) -> full vreg lane width
NH = 2             # attention heads
HD = H // NH       # head dim (64)
I = 2 * H          # FFN intermediate (256)
NUM_LAYERS = 2
VOCAB = 100
TYPE_VOCAB = 2
NUM_CLASSES = 6    # config.maven_class_numbers
OUT_PAD = 128      # lane-dense padding for each classifier head's logits
EPS = 1e-12


# --------------------------- in-kernel helpers ---------------------------
def _layernorm(x, g, b):
    mu = jnp.mean(x, axis=-1, keepdims=True)
    var = jnp.mean((x - mu) ** 2, axis=-1, keepdims=True)
    return (x - mu) * jax.lax.rsqrt(var + EPS) * g + b


def _gelu(x):
    # tanh-approx GELU (BERT activation); erf-based gelu differs slightly from HF default.
    return 0.5 * x * (1.0 + jnp.tanh(0.7978845608028654 * (x + 0.044715 * x * x * x)))


# --------------------------- fully fused forward kernel ---------------------------
def fused_forward_kernel(x_ref, addm_ref, lm_ref, rm_ref,
                         w_qkv_ref, b_qkv_ref, w_out_ref, vecs_ref,
                         w1_ref, b1_ref, w2_ref, fc_w_ref, fc_b_ref,
                         out_ref):
    # one grid step == one batch item; everything stays in VMEM/vregs end-to-end
    x = x_ref[0]          # (S, H) sequence activations
    addm = addm_ref[0]    # (1, S) additive attention mask
    scale = 1.0 / math.sqrt(HD)

    for l in range(NUM_LAYERS):               # static unroll; all layer weights resident
        # ---- self attention (per-head, pre-split weights: no lane slices / concat) ----
        attn = jnp.zeros((S, H), jnp.float32)
        for h in range(NH):                   # static unroll over heads
            qh = jnp.dot(x, w_qkv_ref[l, 0 * NH + h],
                         preferred_element_type=jnp.float32) + b_qkv_ref[l, 0 * NH + h]
            kh = jnp.dot(x, w_qkv_ref[l, 1 * NH + h],
                         preferred_element_type=jnp.float32) + b_qkv_ref[l, 1 * NH + h]
            vh = jnp.dot(x, w_qkv_ref[l, 2 * NH + h],
                         preferred_element_type=jnp.float32) + b_qkv_ref[l, 2 * NH + h]
            # scores = qh @ kh^T without materializing a transpose
            s = jax.lax.dot_general(qh, kh, (((1,), (1,)), ((), ())),
                                    preferred_element_type=jnp.float32) * scale + addm
            s = s - jnp.max(s, axis=-1, keepdims=True)
            p = jnp.exp(s)
            p = p * pl.reciprocal(jnp.sum(p, axis=-1, keepdims=True), approx=True)
            ctx = jnp.dot(p, vh, preferred_element_type=jnp.float32)          # (S, HD)
            # accumulate row-split output projection (replaces concat over heads)
            attn = attn + jnp.dot(ctx, w_out_ref[l, h],
                                  preferred_element_type=jnp.float32)
        attn = attn + vecs_ref[l, 0]                                          # b_out
        x1 = _layernorm(x + attn, vecs_ref[l, 1], vecs_ref[l, 2])             # ln1 g,b

        # ---- feed-forward ----
        hmid = _gelu(jnp.dot(x1, w1_ref[l], preferred_element_type=jnp.float32) + b1_ref[l])
        ffn = jnp.dot(hmid, w2_ref[l], preferred_element_type=jnp.float32) + vecs_ref[l, 3]
        x = _layernorm(x1 + ffn, vecs_ref[l, 4], vecs_ref[l, 5])              # ln2 g,b

    # ---- two-stage head: masked max-pool over seq + split fc1/fc2 into one padded slab ----
    lm = lm_ref[0]                                        # (S, 1) broadcasts over hidden
    rm = rm_ref[0]
    l_pooled = jnp.max(x * lm + 1.0, axis=0, keepdims=True) - 1.0   # (1, H)
    r_pooled = jnp.max(x * rm + 1.0, axis=0, keepdims=True) - 1.0   # (1, H)
    # TODO(synk): nn.Dropout(0.5) is identity in eval mode; no stochastic dropout applied.
    # pooled = cat(l_pooled, r_pooled) ; pooled @ W == l_pooled @ W_top + r_pooled @ W_bot
    logits = (jnp.dot(l_pooled, fc_w_ref[0], preferred_element_type=jnp.float32)
              + jnp.dot(r_pooled, fc_w_ref[1], preferred_element_type=jnp.float32)
              + fc_b_ref[...])                            # (1, 2*OUT_PAD) lane-dense
    out_ref[0] = logits


def fused_forward(x, addm, lm, rm, w_qkv, b_qkv, w_out, vecs, w1, b1, w2, fc_w, fc_b):
    def full(a):
        # whole array resident in VMEM, constant block index across the grid (fetched once)
        return pl.BlockSpec(a.shape, lambda b, nd=a.ndim: (0,) * nd)

    in_specs = [
        pl.BlockSpec((1, S, H), lambda b: (b, 0, 0)),    # x
        pl.BlockSpec((1, 1, S), lambda b: (b, 0, 0)),    # additive attention mask
        pl.BlockSpec((1, S, 1), lambda b: (b, 0, 0)),    # l_mask
        pl.BlockSpec((1, S, 1), lambda b: (b, 0, 0)),    # r_mask
        full(w_qkv), full(b_qkv), full(w_out), full(vecs),
        full(w1), full(b1), full(w2), full(fc_w), full(fc_b),
    ]
    return pl.pallas_call(
        fused_forward_kernel,
        out_shape=jax.ShapeDtypeStruct((B, 1, 2 * OUT_PAD), jnp.float32),
        grid=(B,),
        in_specs=in_specs,
        out_specs=pl.BlockSpec((1, 1, 2 * OUT_PAD), lambda b: (b, 0, 0)),
        compiler_params=pltpu.CompilerParams(dimension_semantics=("parallel",)),
    )(x, addm, lm, rm, w_qkv, b_qkv, w_out, vecs, w1, b1, w2, fc_w, fc_b)


# --------------------------- parameters (deterministic, pre-stacked) ---------------------------
def init_params(key):
    def nrm(k, shape, scale=0.02):
        return (scale * jax.random.normal(k, shape)).astype(jnp.float32)

    keys = iter(jax.random.split(key, 64))

    params = {
        "word_emb": nrm(next(keys), (VOCAB, H)),
        "pos_emb": nrm(next(keys), (S, H)),
        "type_emb": nrm(next(keys), (TYPE_VOCAB, H)),
        "emb_ln_g": jnp.ones((1, H), jnp.float32),
        "emb_ln_b": jnp.zeros((1, H), jnp.float32),
    }

    def split_cols(w):       # (H, H) -> (NH, H, HD): per-head output columns
        return jnp.transpose(w.reshape(H, NH, HD), (1, 0, 2))

    w_qkv, b_qkv, w_out, vecs, w1, b1, w2 = [], [], [], [], [], [], []
    for _ in range(NUM_LAYERS):
        wq = nrm(next(keys), (H, H))
        wk = nrm(next(keys), (H, H))
        wv = nrm(next(keys), (H, H))
        wo = nrm(next(keys), (H, H))
        # axis-0 layout: [q_h0..q_h{NH-1}, k_h0.., v_h0..]  -> index i*NH + h in kernel
        w_qkv.append(jnp.concatenate([split_cols(wq), split_cols(wk), split_cols(wv)], axis=0))
        b_qkv.append(jnp.zeros((3 * NH, 1, HD), jnp.float32))
        w_out.append(wo.reshape(NH, HD, H))              # head h consumes rows h*HD:(h+1)*HD
        vecs.append(jnp.stack([
            jnp.zeros((1, H)),   # 0: attention output bias
            jnp.ones((1, H)),    # 1: ln1 gamma
            jnp.zeros((1, H)),   # 2: ln1 beta
            jnp.zeros((1, H)),   # 3: FFN output bias
            jnp.ones((1, H)),    # 4: ln2 gamma
            jnp.zeros((1, H)),   # 5: ln2 beta
        ], axis=0).astype(jnp.float32))                  # (6, 1, H)
        w1.append(nrm(next(keys), (H, I)))
        b1.append(jnp.zeros((1, I), jnp.float32))
        w2.append(nrm(next(keys), (I, H)))

    params["w_qkv"] = jnp.stack(w_qkv)   # (L, 3*NH, H, HD)
    params["b_qkv"] = jnp.stack(b_qkv)   # (L, 3*NH, 1, HD)
    params["w_out"] = jnp.stack(w_out)   # (L, NH, HD, H)
    params["vecs"] = jnp.stack(vecs)     # (L, 6, 1, H)
    params["w1"] = jnp.stack(w1)         # (L, H, I)
    params["b1"] = jnp.stack(b1)         # (L, 1, I)
    params["w2"] = jnp.stack(w2)         # (L, I, H)

    # classifier head: Linear(2H, 2) and Linear(2H, NUM_CLASSES), pre-transposed, split by
    # pooled half (rows for l_pooled / r_pooled) and zero-padded to a lane-dense 2*128 slab:
    # columns [0:2] = fc1 logits, columns [OUT_PAD:OUT_PAD+C] = fc2 logits.
    fc1_w = nrm(next(keys), (2 * H, 2))
    fc2_w = nrm(next(keys), (2 * H, NUM_CLASSES))
    fc_w = jnp.zeros((2, H, 2 * OUT_PAD), jnp.float32)
    fc_w = fc_w.at[0, :, 0:2].set(fc1_w[:H]).at[1, :, 0:2].set(fc1_w[H:])
    fc_w = fc_w.at[0, :, OUT_PAD:OUT_PAD + NUM_CLASSES].set(fc2_w[:H])
    fc_w = fc_w.at[1, :, OUT_PAD:OUT_PAD + NUM_CLASSES].set(fc2_w[H:])
    params["fc_w"] = fc_w
    params["fc_b"] = jnp.zeros((1, 2 * OUT_PAD), jnp.float32)
    return params


# --------------------------- full forward ---------------------------
def forward(params, input_ids, attention_mask, token_type_ids, l_mask, r_mask):
    # --- embeddings (glue: gather + layernorm in plain JAX) ---
    pos = jnp.arange(S)[None, :]
    x = (params["word_emb"][input_ids]
         + params["pos_emb"][pos]
         + params["type_emb"][token_type_ids]).astype(jnp.float32)
    mu = jnp.mean(x, axis=-1, keepdims=True)
    var = jnp.mean((x - mu) ** 2, axis=-1, keepdims=True)
    x = (x - mu) * jax.lax.rsqrt(var + EPS) * params["emb_ln_g"] + params["emb_ln_b"]

    # additive attention mask (B, 1, S); pooling masks (B, S, 1) broadcast over hidden
    addmask = ((1.0 - attention_mask.astype(jnp.float32)) * -10000.0)[:, None, :]
    lm = l_mask.astype(jnp.float32)[:, :, None]
    rm = r_mask.astype(jnp.float32)[:, :, None]

    # --- single fused Pallas call: all transformer layers + pooling + fc1/fc2 ---
    out = fused_forward(x, addmask, lm, rm,
                        params["w_qkv"], params["b_qkv"], params["w_out"], params["vecs"],
                        params["w1"], params["b1"], params["w2"],
                        params["fc_w"], params["fc_b"])          # (B, 1, 2*OUT_PAD)

    logits_tf = out[:, 0, :2]
    logits_cl = out[:, 0, OUT_PAD:OUT_PAD + NUM_CLASSES]
    return logits_tf, logits_cl


if __name__ == "__main__":
    key = jax.random.PRNGKey(0)
    k_inp, k_par = jax.random.split(key)

    params = init_params(k_par)

    input_ids = jax.random.randint(k_inp, (B, S), 0, VOCAB, dtype=jnp.int32)
    attention_mask = jnp.ones((B, S), jnp.int32).at[1, -2:].set(0)   # mask tail of batch 1
    token_type_ids = jnp.zeros((B, S), jnp.int32)
    l_mask = jnp.concatenate([jnp.ones((B, S // 2)), jnp.zeros((B, S // 2))], axis=1)
    r_mask = jnp.concatenate([jnp.zeros((B, S // 2)), jnp.ones((B, S // 2))], axis=1)

    fwd = jax.jit(forward)
    logits_tf, logits_cl = fwd(params, input_ids, attention_mask,
                               token_type_ids, l_mask, r_mask)
    jax.block_until_ready((logits_tf, logits_cl))

    assert logits_tf.shape == (B, 2) and logits_cl.shape == (B, NUM_CLASSES)
    assert bool(jnp.all(jnp.isfinite(logits_tf))) and bool(jnp.all(jnp.isfinite(logits_cl)))
    print("KERNEL_OK")
</pallas_src>

<mosaic_0001>
module attributes {stable_mosaic.version = 11 : i64} {
  func.func @fused_forward_kernel(%arg0: i32, %arg1: memref<1x8x128xf32, #tpu.memory_space<vmem>>, %arg2: memref<1x1x8xf32, #tpu.memory_space<vmem>>, %arg3: memref<1x8x1xf32, #tpu.memory_space<vmem>>, %arg4: memref<1x8x1xf32, #tpu.memory_space<vmem>>, %arg5: memref<2x6x128x64xf32, #tpu.memory_space<vmem>>, %arg6: memref<2x6x1x64xf32, #tpu.memory_space<vmem>>, %arg7: memref<2x2x64x128xf32, #tpu.memory_space<vmem>>, %arg8: memref<2x6x1x128xf32, #tpu.memory_space<vmem>>, %arg9: memref<2x128x256xf32, #tpu.memory_space<vmem>>, %arg10: memref<2x1x256xf32, #tpu.memory_space<vmem>>, %arg11: memref<2x256x128xf32, #tpu.memory_space<vmem>>, %arg12: memref<2x128x256xf32, #tpu.memory_space<vmem>>, %arg13: memref<1x256xf32, #tpu.memory_space<vmem>>, %arg14: memref<1x1x256xf32, #tpu.memory_space<vmem>>) attributes {dimension_semantics = [#tpu.dimension_semantics<parallel>], iteration_bounds = array<i64: 2>, scalar_prefetch = 0 : i64, scratch_operands = 0 : i64, tpu.core_type = #tpu.core_type<tc>, window_params = [{transform_indices = @transform_0, window_bounds = array<i64: 1, 8, 128>}, {transform_indices = @transform_1, window_bounds = array<i64: 1, 1, 8>}, {transform_indices = @transform_2, window_bounds = array<i64: 1, 8, 1>}, {transform_indices = @transform_3, window_bounds = array<i64: 1, 8, 1>}, {pipeline_mode = #tpu.pipeline_mode<synchronous>, transform_indices = @transform_4, window_bounds = array<i64: 2, 6, 128, 64>}, {pipeline_mode = #tpu.pipeline_mode<synchronous>, transform_indices = @transform_5, window_bounds = array<i64: 2, 6, 1, 64>}, {pipeline_mode = #tpu.pipeline_mode<synchronous>, transform_indices = @transform_6, window_bounds = array<i64: 2, 2, 64, 128>}, {pipeline_mode = #tpu.pipeline_mode<synchronous>, transform_indices = @transform_7, window_bounds = array<i64: 2, 6, 1, 128>}, {pipeline_mode = #tpu.pipeline_mode<synchronous>, transform_indices = @transform_8, window_bounds = array<i64: 2, 128, 256>}, {pipeline_mode = #tpu.pipeline_mode<synchronous>, transform_indices = @transform_9, window_bounds = array<i64: 2, 1, 256>}, {pipeline_mode = #tpu.pipeline_mode<synchronous>, transform_indices = @transform_10, window_bounds = array<i64: 2, 256, 128>}, {pipeline_mode = #tpu.pipeline_mode<synchronous>, transform_indices = @transform_11, window_bounds = array<i64: 2, 128, 256>}, {pipeline_mode = #tpu.pipeline_mode<synchronous>, transform_indices = @transform_12, window_bounds = array<i64: 1, 256>}, {transform_indices = @transform_13, window_bounds = array<i64: 1, 1, 256>}]} {
    %c0 = arith.constant 0 : index
    %c0_0 = arith.constant 0 : index
    %c0_1 = arith.constant 0 : index
    %0 = vector.load %arg1[%c0, %c0_0, %c0_1] : memref<1x8x128xf32, #tpu.memory_space<vmem>>, vector<1x8x128xf32>
    %1 = vector.shape_cast %0 : vector<1x8x128xf32> to vector<8x128xf32>
    %c0_2 = arith.constant 0 : index
    %c0_3 = arith.constant 0 : index
    %c0_4 = arith.constant 0 : index
    %2 = vector.load %arg2[%c0_2, %c0_3, %c0_4] : memref<1x1x8xf32, #tpu.memory_space<vmem>>, vector<1x1x8xf32>
    %3 = vector.shape_cast %2 : vector<1x1x8xf32> to vector<1x8xf32>
    %cst = arith.constant 0.000000e+00 : f32
    %4 = vector.broadcast %cst : f32 to vector<8x128xf32>
    %c0_5 = arith.constant 0 : index
    %c0_6 = arith.constant 0 : index
    %c0_7 = arith.constant 0 : index
    %c0_8 = arith.constant 0 : index
    %5 = vector.load %arg5[%c0_5, %c0_6, %c0_7, %c0_8] : memref<2x6x128x64xf32, #tpu.memory_space<vmem>>, vector<1x1x128x64xf32>
    %6 = vector.shape_cast %5 : vector<1x1x128x64xf32> to vector<128x64xf32>
    %cst_9 = arith.constant dense<0.000000e+00> : vector<8x64xf32>
    %7 = tpu.matmul %1, %6, %cst_9 {dimension_numbers = #tpu.dot_dimension_numbers<[1], [0], [0], [1], [0, 0, 1, 1], [], []>} : vector<8x128xf32>, vector<128x64xf32>, vector<8x64xf32> -> vector<8x64xf32>
    %c0_10 = arith.constant 0 : index
    %c0_11 = arith.constant 0 : index
    %c0_12 = arith.constant 0 : index
    %c0_13 = arith.constant 0 : index
    %8 = vector.load %arg6[%c0_10, %c0_11, %c0_12, %c0_13] : memref<2x6x1x64xf32, #tpu.memory_space<vmem>>, vector<1x1x1x64xf32>
    %9 = vector.shape_cast %8 : vector<1x1x1x64xf32> to vector<1x64xf32>
    %10 = vector.broadcast %9 : vector<1x64xf32> to vector<8x64xf32>
    %11 = arith.addf %7, %10 : vector<8x64xf32>
    %c0_14 = arith.constant 0 : index
    %c2 = arith.constant 2 : index
    %c0_15 = arith.constant 0 : index
    %c0_16 = arith.constant 0 : index
    %12 = vector.load %arg5[%c0_14, %c2, %c0_15, %c0_16] : memref<2x6x128x64xf32, #tpu.memory_space<vmem>>, vector<1x1x128x64xf32>
    %13 = vector.shape_cast %12 : vector<1x1x128x64xf32> to vector<128x64xf32>
    %cst_17 = arith.constant dense<0.000000e+00> : vector<8x64xf32>
    %14 = tpu.matmul %1, %13, %cst_17 {dimension_numbers = #tpu.dot_dimension_numbers<[1], [0], [0], [1], [0, 0, 1, 1], [], []>} : vector<8x128xf32>, vector<128x64xf32>, vector<8x64xf32> -> vector<8x64xf32>
    %c0_18 = arith.constant 0 : index
    %c2_19 = arith.constant 2 : index
    %c0_20 = arith.constant 0 : index
    %c0_21 = arith.constant 0 : index
    %15 = vector.load %arg6[%c0_18, %c2_19, %c0_20, %c0_21] : memref<2x6x1x64xf32, #tpu.memory_space<vmem>>, vector<1x1x1x64xf32>
    %16 = vector.shape_cast %15 : vector<1x1x1x64xf32> to vector<1x64xf32>
    %17 = vector.broadcast %16 : vector<1x64xf32> to vector<8x64xf32>
    %18 = arith.addf %14, %17 : vector<8x64xf32>
    %c0_22 = arith.constant 0 : index
    %c4 = arith.constant 4 : index
    %c0_23 = arith.constant 0 : index
    %c0_24 = arith.constant 0 : index
    %19 = vector.load %arg5[%c0_22, %c4, %c0_23, %c0_24] : memref<2x6x128x64xf32, #tpu.memory_space<vmem>>, vector<1x1x128x64xf32>
    %20 = vector.shape_cast %19 : vector<1x1x128x64xf32> to vector<128x64xf32>
    %cst_25 = arith.constant dense<0.000000e+00> : vector<8x64xf32>
    %21 = tpu.matmul %1, %20, %cst_25 {dimension_numbers = #tpu.dot_dimension_numbers<[1], [0], [0], [1], [0, 0, 1, 1], [], []>} : vector<8x128xf32>, vector<128x64xf32>, vector<8x64xf32> -> vector<8x64xf32>
    %c0_26 = arith.constant 0 : index
    %c4_27 = arith.constant 4 : index
    %c0_28 = arith.constant 0 : index
    %c0_29 = arith.constant 0 : index
    %22 = vector.load %arg6[%c0_26, %c4_27, %c0_28, %c0_29] : memref<2x6x1x64xf32, #tpu.memory_space<vmem>>, vector<1x1x1x64xf32>
    %23 = vector.shape_cast %22 : vector<1x1x1x64xf32> to vector<1x64xf32>
    %24 = vector.broadcast %23 : vector<1x64xf32> to vector<8x64xf32>
    %25 = arith.addf %21, %24 : vector<8x64xf32>
    %cst_30 = arith.constant dense<0.000000e+00> : vector<8x8xf32>
    %26 = tpu.matmul %11, %18, %cst_30 {dimension_numbers = #tpu.dot_dimension_numbers<[1], [1], [0], [0], [0, 0, 1, 0], [], []>} : vector<8x64xf32>, vector<8x64xf32>, vector<8x8xf32> -> vector<8x8xf32>
    %cst_31 = arith.constant 1.250000e-01 : f32
    %27 = vector.broadcast %cst_31 : f32 to vector<8x8xf32>
    %28 = arith.mulf %26, %27 : vector<8x8xf32>
    %29 = vector.broadcast %3 : vector<1x8xf32> to vector<8x8xf32>
    %30 = arith.addf %28, %29 : vector<8x8xf32>
    %cst_32 = arith.constant dense<0xFF800000> : vector<8xf32>
    %31 = vector.multi_reduction <maximumf>, %30, %cst_32 [1] : vector<8x8xf32> to vector<8xf32>
    %32 = vector.shape_cast %31 : vector<8xf32> to vector<8x1xf32>
    %33 = vector.broadcast %32 : vector<8x1xf32> to vector<8x8xf32>
    %34 = arith.subf %30, %33 : vector<8x8xf32>
    %35 = math.exp %34 : vector<8x8xf32>
    %cst_33 = arith.constant dense<0.000000e+00> : vector<8xf32>
    %36 = vector.multi_reduction <add>, %35, %cst_33 [1] : vector<8x8xf32> to vector<8xf32>
    %37 = vector.shape_cast %36 : vector<8xf32> to vector<8x1xf32>
    %38 = tpu.reciprocal %37 {approx = true} : vector<8x1xf32> -> vector<8x1xf32>
    %39 = vector.broadcast %38 : vector<8x1xf32> to vector<8x8xf32>
    %40 = arith.mulf %35, %39 : vector<8x8xf32>
    %cst_34 = arith.constant dense<0.000000e+00> : vector<8x64xf32>
    %41 = tpu.matmul %40, %25, %cst_34 {dimension_numbers = #tpu.dot_dimension_numbers<[1], [0], [0], [1], [0, 0, 1, 1], [], []>} : vector<8x8xf32>, vector<8x64xf32>, vector<8x64xf32> -> vector<8x64xf32>
    %c0_35 = arith.constant 0 : index
    %c0_36 = arith.constant 0 : index
    %c0_37 = arith.constant 0 : index
    %c0_38 = arith.constant 0 : index
    %42 = vector.load %arg7[%c0_35, %c0_36, %c0_37, %c0_38] : memref<2x2x64x128xf32, #tpu.memory_space<vmem>>, vector<1x1x64x128xf32>
    %43 = vector.shape_cast %42 : vector<1x1x64x128xf32> to vector<64x128xf32>
    %cst_39 = arith.constant dense<0.000000e+00> : vector<8x128xf32>
    %44 = tpu.matmul %41, %43, %cst_39 {dimension_numbers = #tpu.dot_dimension_numbers<[1], [0], [0], [1], [0, 0, 1, 1], [], []>} : vector<8x64xf32>, vector<64x128xf32>, vector<8x128xf32> -> vector<8x128xf32>
    %45 = arith.addf %4, %44 : vector<8x128xf32>
    %c0_40 = arith.constant 0 : index
    %c1 = arith.constant 1 : index
    %c0_41 = arith.constant 0 : index
    %c0_42 = arith.constant 0 : index
    %46 = vector.load %arg5[%c0_40, %c1, %c0_41, %c0_42] : memref<2x6x128x64xf32, #tpu.memory_space<vmem>>, vector<1x1x128x64xf32>
    %47 = vector.shape_cast %46 : vector<1x1x128x64xf32> to vector<128x64xf32>
    %cst_43 = arith.constant dense<0.000000e+00> : vector<8x64xf32>
    %48 = tpu.matmul %1, %47, %cst_43 {dimension_numbers = #tpu.dot_dimension_numbers<[1], [0], [0], [1], [0, 0, 1, 1], [], []>} : vector<8x128xf32>, vector<128x64xf32>, vector<8x64xf32> -> vector<8x64xf32>
    %c0_44 = arith.constant 0 : index
    %c1_45 = arith.constant 1 : index
    %c0_46 = arith.constant 0 : index
    %c0_47 = arith.constant 0 : index
    %49 = vector.load %arg6[%c0_44, %c1_45, %c0_46, %c0_47] : memref<2x6x1x64xf32, #tpu.memory_space<vmem>>, vector<1x1x1x64xf32>
    %50 = vector.shape_cast %49 : vector<1x1x1x64xf32> to vector<1x64xf32>
    %51 = vector.broadcast %50 : vector<1x64xf32> to vector<8x64xf32>
    %52 = arith.addf %48, %51 : vector<8x64xf32>
    %c0_48 = arith.constant 0 : index
    %c3 = arith.constant 3 : index
    %c0_49 = arith.constant 0 : index
    %c0_50 = arith.constant 0 : index
    %53 = vector.load %arg5[%c0_48, %c3, %c0_49, %c0_50] : memref<2x6x128x64xf32, #tpu.memory_space<vmem>>, vector<1x1x128x64xf32>
    %54 = vector.shape_cast %53 : vector<1x1x128x64xf32> to vector<128x64xf32>
    %cst_51 = arith.constant dense<0.000000e+00> : vector<8x64xf32>
    %55 = tpu.matmul %1, %54, %cst_51 {dimension_numbers = #tpu.dot_dimension_numbers<[1], [0], [0], [1], [0, 0, 1, 1], [], []>} : vector<8x128xf32>, vector<128x64xf32>, vector<8x64xf32> -> vector<8x64xf32>
    %c0_52 = arith.constant 0 : index
    %c3_53 = arith.constant 3 : index
    %c0_54 = arith.constant 0 : index
    %c0_55 = arith.constant 0 : index
    %56 = vector.load %arg6[%c0_52, %c3_53, %c0_54, %c0_55] : memref<2x6x1x64xf32, #tpu.memory_space<vmem>>, vector<1x1x1x64xf32>
    %57 = vector.shape_cast %56 : vector<1x1x1x64xf32> to vector<1x64xf32>
    %58 = vector.broadcast %57 : vector<1x64xf32> to vector<8x64xf32>
    %59 = arith.addf %55, %58 : vector<8x64xf32>
    %c0_56 = arith.constant 0 : index
    %c5 = arith.constant 5 : index
    %c0_57 = arith.constant 0 : index
    %c0_58 = arith.constant 0 : index
    %60 = vector.load %arg5[%c0_56, %c5, %c0_57, %c0_58] : memref<2x6x128x64xf32, #tpu.memory_space<vmem>>, vector<1x1x128x64xf32>
    %61 = vector.shape_cast %60 : vector<1x1x128x64xf32> to vector<128x64xf32>
    %cst_59 = arith.constant dense<0.000000e+00> : vector<8x64xf32>
    %62 = tpu.matmul %1, %61, %cst_59 {dimension_numbers = #tpu.dot_dimension_numbers<[1], [0], [0], [1], [0, 0, 1, 1], [], []>} : vector<8x128xf32>, vector<128x64xf32>, vector<8x64xf32> -> vector<8x64xf32>
    %c0_60 = arith.constant 0 : index
    %c5_61 = arith.constant 5 : index
    %c0_62 = arith.constant 0 : index
    %c0_63 = arith.constant 0 : index
    %63 = vector.load %arg6[%c0_60, %c5_61, %c0_62, %c0_63] : memref<2x6x1x64xf32, #tpu.memory_space<vmem>>, vector<1x1x1x64xf32>
    %64 = vector.shape_cast %63 : vector<1x1x1x64xf32> to vector<1x64xf32>
    %65 = vector.broadcast %64 : vector<1x64xf32> to vector<8x64xf32>
    %66 = arith.addf %62, %65 : vector<8x64xf32>
    %cst_64 = arith.constant dense<0.000000e+00> : vector<8x8xf32>
    %67 = tpu.matmul %52, %59, %cst_64 {dimension_numbers = #tpu.dot_dimension_numbers<[1], [1], [0], [0], [0, 0, 1, 0], [], []>} : vector<8x64xf32>, vector<8x64xf32>, vector<8x8xf32> -> vector<8x8xf32>
    %cst_65 = arith.constant 1.250000e-01 : f32
    %68 = vector.broadcast %cst_65 : f32 to vector<8x8xf32>
    %69 = arith.mulf %67, %68 : vector<8x8xf32>
    %70 = vector.broadcast %3 : vector<1x8xf32> to vector<8x8xf32>
    %71 = arith.addf %69, %70 : vector<8x8xf32>
    %cst_66 = arith.constant dense<0xFF800000> : vector<8xf32>
    %72 = vector.multi_reduction <maximumf>, %71, %cst_66 [1] : vector<8x8xf32> to vector<8xf32>
    %73 = vector.shape_cast %72 : vector<8xf32> to vector<8x1xf32>
    %74 = vector.broadcast %73 : vector<8x1xf32> to vector<8x8xf32>
    %75 = arith.subf %71, %74 : vector<8x8xf32>
    %76 = math.exp %75 : vector<8x8xf32>
    %cst_67 = arith.constant dense<0.000000e+00> : vector<8xf32>
    %77 = vector.multi_reduction <add>, %76, %cst_67 [1] : vector<8x8xf32> to vector<8xf32>
    %78 = vector.shape_cast %77 : vector<8xf32> to vector<8x1xf32>
    %79 = tpu.reciprocal %78 {approx = true} : vector<8x1xf32> -> vector<8x1xf32>
    %80 = vector.broadcast %79 : vector<8x1xf32> to vector<8x8xf32>
    %81 = arith.mulf %76, %80 : vector<8x8xf32>
    %cst_68 = arith.constant dense<0.000000e+00> : vector<8x64xf32>
    %82 = tpu.matmul %81, %66, %cst_68 {dimension_numbers = #tpu.dot_dimension_numbers<[1], [0], [0], [1], [0, 0, 1, 1], [], []>} : vector<8x8xf32>, vector<8x64xf32>, vector<8x64xf32> -> vector<8x64xf32>
    %c0_69 = arith.constant 0 : index
    %c1_70 = arith.constant 1 : index
    %c0_71 = arith.constant 0 : index
    %c0_72 = arith.constant 0 : index
    %83 = vector.load %arg7[%c0_69, %c1_70, %c0_71, %c0_72] : memref<2x2x64x128xf32, #tpu.memory_space<vmem>>, vector<1x1x64x128xf32>
    %84 = vector.shape_cast %83 : vector<1x1x64x128xf32> to vector<64x128xf32>
    %cst_73 = arith.constant dense<0.000000e+00> : vector<8x128xf32>
    %85 = tpu.matmul %82, %84, %cst_73 {dimension_numbers = #tpu.dot_dimension_numbers<[1], [0], [0], [1], [0, 0, 1, 1], [], []>} : vector<8x64xf32>, vector<64x128xf32>, vector<8x128xf32> -> vector<8x128xf32>
    %86 = arith.addf %45, %85 : vector<8x128xf32>
    %c0_74 = arith.constant 0 : index
    %c0_75 = arith.constant 0 : index
    %c0_76 = arith.constant 0 : index
    %c0_77 = arith.constant 0 : index
    %87 = vector.load %arg8[%c0_74, %c0_75, %c0_76, %c0_77] : memref<2x6x1x128xf32, #tpu.memory_space<vmem>>, vector<1x1x1x128xf32>
    %88 = vector.shape_cast %87 : vector<1x1x1x128xf32> to vector<1x128xf32>
    %89 = vector.broadcast %88 : vector<1x128xf32> to vector<8x128xf32>
    %90 = arith.addf %86, %89 : vector<8x128xf32>
    %91 = arith.addf %1, %90 : vector<8x128xf32>
    %c0_78 = arith.constant 0 : index
    %c1_79 = arith.constant 1 : index
    %c0_80 = arith.constant 0 : index
    %c0_81 = arith.constant 0 : index
    %92 = vector.load %arg8[%c0_78, %c1_79, %c0_80, %c0_81] : memref<2x6x1x128xf32, #tpu.memory_space<vmem>>, vector<1x1x1x128xf32>
    %93 = vector.shape_cast %92 : vector<1x1x1x128xf32> to vector<1x128xf32>
    %c0_82 = arith.constant 0 : index
    %c2_83 = arith.constant 2 : index
    %c0_84 = arith.constant 0 : index
    %c0_85 = arith.constant 0 : index
    %94 = vector.load %arg8[%c0_82, %c2_83, %c0_84, %c0_85] : memref<2x6x1x128xf32, #tpu.memory_space<vmem>>, vector<1x1x1x128xf32>
    %95 = vector.shape_cast %94 : vector<1x1x1x128xf32> to vector<1x128xf32>
    %cst_86 = arith.constant dense<0.000000e+00> : vector<8xf32>
    %96 = vector.multi_reduction <add>, %91, %cst_86 [1] : vector<8x128xf32> to vector<8xf32>
    %97 = vector.shape_cast %96 : vector<8xf32> to vector<8x1xf32>
    %cst_87 = arith.constant 1.280000e+02 : f32
    %98 = vector.broadcast %cst_87 : f32 to vector<8x1xf32>
    %99 = arith.divf %97, %98 : vector<8x1xf32>
    %100 = vector.broadcast %99 : vector<8x1xf32> to vector<8x128xf32>
    %101 = arith.subf %91, %100 : vector<8x128xf32>
    %102 = arith.mulf %101, %101 : vector<8x128xf32>
    %cst_88 = arith.constant dense<0.000000e+00> : vector<8xf32>
    %103 = vector.multi_reduction <add>, %102, %cst_88 [1] : vector<8x128xf32> to vector<8xf32>
    %104 = vector.shape_cast %103 : vector<8xf32> to vector<8x1xf32>
    %cst_89 = arith.constant 1.280000e+02 : f32
    %105 = vector.broadcast %cst_89 : f32 to vector<8x1xf32>
    %106 = arith.divf %104, %105 : vector<8x1xf32>
    %107 = vector.broadcast %99 : vector<8x1xf32> to vector<8x128xf32>
    %108 = arith.subf %91, %107 : vector<8x128xf32>
    %cst_90 = arith.constant 9.99999996E-13 : f32
    %109 = vector.broadcast %cst_90 : f32 to vector<8x1xf32>
    %110 = arith.addf %106, %109 : vector<8x1xf32>
    %111 = math.rsqrt %110 : vector<8x1xf32>
    %112 = vector.broadcast %111 : vector<8x1xf32> to vector<8x128xf32>
    %113 = arith.mulf %108, %112 : vector<8x128xf32>
    %114 = vector.broadcast %93 : vector<1x128xf32> to vector<8x128xf32>
    %115 = arith.mulf %113, %114 : vector<8x128xf32>
    %116 = vector.broadcast %95 : vector<1x128xf32> to vector<8x128xf32>
    %117 = arith.addf %115, %116 : vector<8x128xf32>
    %c0_91 = arith.constant 0 : index
    %c0_92 = arith.constant 0 : index
    %c0_93 = arith.constant 0 : index
    %118 = vector.load %arg9[%c0_91, %c0_92, %c0_93] : memref<2x128x256xf32, #tpu.memory_space<vmem>>, vector<1x128x256xf32>
    %119 = vector.shape_cast %118 : vector<1x128x256xf32> to vector<128x256xf32>
    %cst_94 = arith.constant dense<0.000000e+00> : vector<8x256xf32>
    %120 = tpu.matmul %117, %119, %cst_94 {dimension_numbers = #tpu.dot_dimension_numbers<[1], [0], [0], [1], [0, 0, 1, 1], [], []>} : vector<8x128xf32>, vector<128x256xf32>, vector<8x256xf32> -> vector<8x256xf32>
    %c0_95 = arith.constant 0 : index
    %c0_96 = arith.constant 0 : index
    %c0_97 = arith.constant 0 : index
    %121 = vector.load %arg10[%c0_95, %c0_96, %c0_97] : memref<2x1x256xf32, #tpu.memory_space<vmem>>, vector<1x1x256xf32>
    %122 = vector.shape_cast %121 : vector<1x1x256xf32> to vector<1x256xf32>
    %123 = vector.broadcast %122 : vector<1x256xf32> to vector<8x256xf32>
    %124 = arith.addf %120, %123 : vector<8x256xf32>
    %cst_98 = arith.constant 5.000000e-01 : f32
    %125 = vector.broadcast %cst_98 : f32 to vector<8x256xf32>
    %126 = arith.mulf %125, %124 : vector<8x256xf32>
    %cst_99 = arith.constant 4.471500e-02 : f32
    %127 = vector.broadcast %cst_99 : f32 to vector<8x256xf32>
    %128 = arith.mulf %127, %124 : vector<8x256xf32>
    %129 = arith.mulf %128, %124 : vector<8x256xf32>
    %130 = arith.mulf %129, %124 : vector<8x256xf32>
    %131 = arith.addf %124, %130 : vector<8x256xf32>
    %cst_100 = arith.constant 0.797884583 : f32
    %132 = vector.broadcast %cst_100 : f32 to vector<8x256xf32>
    %133 = arith.mulf %132, %131 : vector<8x256xf32>
    %134 = math.tanh %133 : vector<8x256xf32>
    %cst_101 = arith.constant 1.000000e+00 : f32
    %135 = vector.broadcast %cst_101 : f32 to vector<8x256xf32>
    %136 = arith.addf %135, %134 : vector<8x256xf32>
    %137 = arith.mulf %126, %136 : vector<8x256xf32>
    %c0_102 = arith.constant 0 : index
    %c0_103 = arith.constant 0 : index
    %c0_104 = arith.constant 0 : index
    %138 = vector.load %arg11[%c0_102, %c0_103, %c0_104] : memref<2x256x128xf32, #tpu.memory_space<vmem>>, vector<1x256x128xf32>
    %139 = vector.shape_cast %138 : vector<1x256x128xf32> to vector<256x128xf32>
    %cst_105 = arith.constant dense<0.000000e+00> : vector<8x128xf32>
    %140 = tpu.matmul %137, %139, %cst_105 {dimension_numbers = #tpu.dot_dimension_numbers<[1], [0], [0], [1], [0, 0, 1, 1], [], []>} : vector<8x256xf32>, vector<256x128xf32>, vector<8x128xf32> -> vector<8x128xf32>
    %c0_106 = arith.constant 0 : index
    %c3_107 = arith.constant 3 : index
    %c0_108 = arith.constant 0 : index
    %c0_109 = arith.constant 0 : index
    %141 = vector.load %arg8[%c0_106, %c3_107, %c0_108, %c0_109] : memref<2x6x1x128xf32, #tpu.memory_space<vmem>>, vector<1x1x1x128xf32>
    %142 = vector.shape_cast %141 : vector<1x1x1x128xf32> to vector<1x128xf32>
    %143 = vector.broadcast %142 : vector<1x128xf32> to vector<8x128xf32>
    %144 = arith.addf %140, %143 : vector<8x128xf32>
    %145 = arith.addf %117, %144 : vector<8x128xf32>
    %c0_110 = arith.constant 0 : index
    %c4_111 = arith.constant 4 : index
    %c0_112 = arith.constant 0 : index
    %c0_113 = arith.constant 0 : index
    %146 = vector.load %arg8[%c0_110, %c4_111, %c0_112, %c0_113] : memref<2x6x1x128xf32, #tpu.memory_space<vmem>>, vector<1x1x1x128xf32>
    %147 = vector.shape_cast %146 : vector<1x1x1x128xf32> to vector<1x128xf32>
    %c0_114 = arith.constant 0 : index
    %c5_115 = arith.constant 5 : index
    %c0_116 = arith.constant 0 : index
    %c0_117 = arith.constant 0 : index
    %148 = vector.load %arg8[%c0_114, %c5_115, %c0_116, %c0_117] : memref<2x6x1x128xf32, #tpu.memory_space<vmem>>, vector<1x1x1x128xf32>
    %149 = vector.shape_cast %148 : vector<1x1x1x128xf32> to vector<1x128xf32>
    %cst_118 = arith.constant dense<0.000000e+00> : vector<8xf32>
    %150 = vector.multi_reduction <add>, %145, %cst_118 [1] : vector<8x128xf32> to vector<8xf32>
    %151 = vector.shape_cast %150 : vector<8xf32> to vector<8x1xf32>
    %cst_119 = arith.constant 1.280000e+02 : f32
    %152 = vector.broadcast %cst_119 : f32 to vector<8x1xf32>
    %153 = arith.divf %151, %152 : vector<8x1xf32>
    %154 = vector.broadcast %153 : vector<8x1xf32> to vector<8x128xf32>
    %155 = arith.subf %145, %154 : vector<8x128xf32>
    %156 = arith.mulf %155, %155 : vector<8x128xf32>
    %cst_120 = arith.constant dense<0.000000e+00> : vector<8xf32>
    %157 = vector.multi_reduction <add>, %156, %cst_120 [1] : vector<8x128xf32> to vector<8xf32>
    %158 = vector.shape_cast %157 : vector<8xf32> to vector<8x1xf32>
    %cst_121 = arith.constant 1.280000e+02 : f32
    %159 = vector.broadcast %cst_121 : f32 to vector<8x1xf32>
    %160 = arith.divf %158, %159 : vector<8x1xf32>
    %161 = vector.broadcast %153 : vector<8x1xf32> to vector<8x128xf32>
    %162 = arith.subf %145, %161 : vector<8x128xf32>
    %cst_122 = arith.constant 9.99999996E-13 : f32
    %163 = vector.broadcast %cst_122 : f32 to vector<8x1xf32>
    %164 = arith.addf %160, %163 : vector<8x1xf32>
    %165 = math.rsqrt %164 : vector<8x1xf32>
    %166 = vector.broadcast %165 : vector<8x1xf32> to vector<8x128xf32>
    %167 = arith.mulf %162, %166 : vector<8x128xf32>
    %168 = vector.broadcast %147 : vector<1x128xf32> to vector<8x128xf32>
    %169 = arith.mulf %167, %168 : vector<8x128xf32>
    %170 = vector.broadcast %149 : vector<1x128xf32> to vector<8x128xf32>
    %171 = arith.addf %169, %170 : vector<8x128xf32>
    %cst_123 = arith.constant 0.000000e+00 : f32
    %172 = vector.broadcast %cst_123 : f32 to vector<8x128xf32>
    %c1_124 = arith.constant 1 : index
    %c0_125 = arith.constant 0 : index
    %c0_126 = arith.constant 0 : index
    %c0_127 = arith.constant 0 : index
    %173 = vector.load %arg5[%c1_124, %c0_125, %c0_126, %c0_127] : memref<2x6x128x64xf32, #tpu.memory_space<vmem>>, vector<1x1x128x64xf32>
    %174 = vector.shape_cast %173 : vector<1x1x128x64xf32> to vector<128x64xf32>
    %cst_128 = arith.constant dense<0.000000e+00> : vector<8x64xf32>
    %175 = tpu.matmul %171, %174, %cst_128 {dimension_numbers = #tpu.dot_dimension_numbers<[1], [0], [0], [1], [0, 0, 1, 1], [], []>} : vector<8x128xf32>, vector<128x64xf32>, vector<8x64xf32> -> vector<8x64xf32>
    %c1_129 = arith.constant 1 : index
    %c0_130 = arith.constant 0 : index
    %c0_131 = arith.constant 0 : index
    %c0_132 = arith.constant 0 : index
    %176 = vector.load %arg6[%c1_129, %c0_130, %c0_131, %c0_132] : memref<2x6x1x64xf32, #tpu.memory_space<vmem>>, vector<1x1x1x64xf32>
    %177 = vector.shape_cast %176 : vector<1x1x1x64xf32> to vector<1x64xf32>
    %178 = vector.broadcast %177 : vector<1x64xf32> to vector<8x64xf32>
    %179 = arith.addf %175, %178 : vector<8x64xf32>
    %c1_133 = arith.constant 1 : index
    %c2_134 = arith.constant 2 : index
    %c0_135 = arith.constant 0 : index
    %c0_136 = arith.constant 0 : index
    %180 = vector.load %arg5[%c1_133, %c2_134, %c0_135, %c0_136] : memref<2x6x128x64xf32, #tpu.memory_space<vmem>>, vector<1x1x128x64xf32>
    %181 = vector.shape_cast %180 : vector<1x1x128x64xf32> to vector<128x64xf32>
    %cst_137 = arith.constant dense<0.000000e+00> : vector<8x64xf32>
    %182 = tpu.matmul %171, %181, %cst_137 {dimension_numbers = #tpu.dot_dimension_numbers<[1], [0], [0], [1], [0, 0, 1, 1], [], []>} : vector<8x128xf32>, vector<128x64xf32>, vector<8x64xf32> -> vector<8x64xf32>
    %c1_138 = arith.constant 1 : index
    %c2_139 = arith.constant 2 : index
    %c0_140 = arith.constant 0 : index
    %c0_141 = arith.constant 0 : index
    %183 = vector.load %arg6[%c1_138, %c2_139, %c0_140, %c0_141] : memref<2x6x1x64xf32, #tpu.memory_space<vmem>>, vector<1x1x1x64xf32>
    %184 = vector.shape_cast %183 : vector<1x1x1x64xf32> to vector<1x64xf32>
    %185 = vector.broadcast %184 : vector<1x64xf32> to vector<8x64xf32>
    %186 = arith.addf %182, %185 : vector<8x64xf32>
    %c1_142 = arith.constant 1 : index
    %c4_143 = arith.constant 4 : index
    %c0_144 = arith.constant 0 : index
    %c0_145 = arith.constant 0 : index
    %187 = vector.load %arg5[%c1_142, %c4_143, %c0_144, %c0_145] : memref<2x6x128x64xf32, #tpu.memory_space<vmem>>, vector<1x1x128x64xf32>
    %188 = vector.shape_cast %187 : vector<1x1x128x64xf32> to vector<128x64xf32>
    %cst_146 = arith.constant dense<0.000000e+00> : vector<8x64xf32>
    %189 = tpu.matmul %171, %188, %cst_146 {dimension_numbers = #tpu.dot_dimension_numbers<[1], [0], [0], [1], [0, 0, 1, 1], [], []>} : vector<8x128xf32>, vector<128x64xf32>, vector<8x64xf32> -> vector<8x64xf32>
    %c1_147 = arith.constant 1 : index
    %c4_148 = arith.constant 4 : index
    %c0_149 = arith.constant 0 : index
    %c0_150 = arith.constant 0 : index
    %190 = vector.load %arg6[%c1_147, %c4_148, %c0_149, %c0_150] : memref<2x6x1x64xf32, #tpu.memory_space<vmem>>, vector<1x1x1x64xf32>
    %191 = vector.shape_cast %190 : vector<1x1x1x64xf32> to vector<1x64xf32>
    %192 = vector.broadcast %191 : vector<1x64xf32> to vector<8x64xf32>
    %193 = arith.addf %189, %192 : vector<8x64xf32>
    %cst_151 = arith.constant dense<0.000000e+00> : vector<8x8xf32>
    %194 = tpu.matmul %179, %186, %cst_151 {dimension_numbers = #tpu.dot_dimension_numbers<[1], [1], [0], [0], [0, 0, 1, 0], [], []>} : vector<8x64xf32>, vector<8x64xf32>, vector<8x8xf32> -> vector<8x8xf32>
    %cst_152 = arith.constant 1.250000e-01 : f32
    %195 = vector.broadcast %cst_152 : f32 to vector<8x8xf32>
    %196 = arith.mulf %194, %195 : vector<8x8xf32>
    %197 = vector.broadcast %3 : vector<1x8xf32> to vector<8x8xf32>
    %198 = arith.addf %196, %197 : vector<8x8xf32>
    %cst_153 = arith.constant dense<0xFF800000> : vector<8xf32>
    %199 = vector.multi_reduction <maximumf>, %198, %cst_153 [1] : vector<8x8xf32> to vector<8xf32>
    %200 = vector.shape_cast %199 : vector<8xf32> to vector<8x1xf32>
    %201 = vector.broadcast %200 : vector<8x1xf32> to vector<8x8xf32>
    %202 = arith.subf %198, %201 : vector<8x8xf32>
    %203 = math.exp %202 : vector<8x8xf32>
    %cst_154 = arith.constant dense<0.000000e+00> : vector<8xf32>
    %204 = vector.multi_reduction <add>, %203, %cst_154 [1] : vector<8x8xf32> to vector<8xf32>
    %205 = vector.shape_cast %204 : vector<8xf32> to vector<8x1xf32>
    %206 = tpu.reciprocal %205 {approx = true} : vector<8x1xf32> -> vector<8x1xf32>
    %207 = vector.broadcast %206 : vector<8x1xf32> to vector<8x8xf32>
    %208 = arith.mulf %203, %207 : vector<8x8xf32>
    %cst_155 = arith.constant dense<0.000000e+00> : vector<8x64xf32>
    %209 = tpu.matmul %208, %193, %cst_155 {dimension_numbers = #tpu.dot_dimension_numbers<[1], [0], [0], [1], [0, 0, 1, 1], [], []>} : vector<8x8xf32>, vector<8x64xf32>, vector<8x64xf32> -> vector<8x64xf32>
    %c1_156 = arith.constant 1 : index
    %c0_157 = arith.constant 0 : index
    %c0_158 = arith.constant 0 : index
    %c0_159 = arith.constant 0 : index
    %210 = vector.load %arg7[%c1_156, %c0_157, %c0_158, %c0_159] : memref<2x2x64x128xf32, #tpu.memory_space<vmem>>, vector<1x1x64x128xf32>
    %211 = vector.shape_cast %210 : vector<1x1x64x128xf32> to vector<64x128xf32>
    %cst_160 = arith.constant dense<0.000000e+00> : vector<8x128xf32>
    %212 = tpu.matmul %209, %211, %cst_160 {dimension_numbers = #tpu.dot_dimension_numbers<[1], [0], [0], [1], [0, 0, 1, 1], [], []>} : vector<8x64xf32>, vector<64x128xf32>, vector<8x128xf32> -> vector<8x128xf32>
    %213 = arith.addf %172, %212 : vector<8x128xf32>
    %c1_161 = arith.constant 1 : index
    %c1_162 = arith.constant 1 : index
    %c0_163 = arith.constant 0 : index
    %c0_164 = arith.constant 0 : index
    %214 = vector.load %arg5[%c1_161, %c1_162, %c0_163, %c0_164] : memref<2x6x128x64xf32, #tpu.memory_space<vmem>>, vector<1x1x128x64xf32>
    %215 = vector.shape_cast %214 : vector<1x1x128x64xf32> to vector<128x64xf32>
    %cst_165 = arith.constant dense<0.000000e+00> : vector<8x64xf32>
    %216 = tpu.matmul %171, %215, %cst_165 {dimension_numbers = #tpu.dot_dimension_numbers<[1], [0], [0], [1], [0, 0, 1, 1], [], []>} : vector<8x128xf32>, vector<128x64xf32>, vector<8x64xf32> -> vector<8x64xf32>
    %c1_166 = arith.constant 1 : index
    %c1_167 = arith.constant 1 : index
    %c0_168 = arith.constant 0 : index
    %c0_169 = arith.constant 0 : index
    %217 = vector.load %arg6[%c1_166, %c1_167, %c0_168, %c0_169] : memref<2x6x1x64xf32, #tpu.memory_space<vmem>>, vector<1x1x1x64xf32>
    %218 = vector.shape_cast %217 : vector<1x1x1x64xf32> to vector<1x64xf32>
    %219 = vector.broadcast %218 : vector<1x64xf32> to vector<8x64xf32>
    %220 = arith.addf %216, %219 : vector<8x64xf32>
    %c1_170 = arith.constant 1 : index
    %c3_171 = arith.constant 3 : index
    %c0_172 = arith.constant 0 : index
    %c0_173 = arith.constant 0 : index
    %221 = vector.load %arg5[%c1_170, %c3_171, %c0_172, %c0_173] : memref<2x6x128x64xf32, #tpu.memory_space<vmem>>, vector<1x1x128x64xf32>
    %222 = vector.shape_cast %221 : vector<1x1x128x64xf32> to vector<128x64xf32>
    %cst_174 = arith.constant dense<0.000000e+00> : vector<8x64xf32>
    %223 = tpu.matmul %171, %222, %cst_174 {dimension_numbers = #tpu.dot_dimension_numbers<[1], [0], [0], [1], [0, 0, 1, 1], [], []>} : vector<8x128xf32>, vector<128x64xf32>, vector<8x64xf32> -> vector<8x64xf32>
    %c1_175 = arith.constant 1 : index
    %c3_176 = arith.constant 3 : index
    %c0_177 = arith.constant 0 : index
    %c0_178 = arith.constant 0 : index
    %224 = vector.load %arg6[%c1_175, %c3_176, %c0_177, %c0_178] : memref<2x6x1x64xf32, #tpu.memory_space<vmem>>, vector<1x1x1x64xf32>
    %225 = vector.shape_cast %224 : vector<1x1x1x64xf32> to vector<1x64xf32>
    %226 = vector.broadcast %225 : vector<1x64xf32> to vector<8x64xf32>
    %227 = arith.addf %223, %226 : vector<8x64xf32>
    %c1_179 = arith.constant 1 : index
    %c5_180 = arith.constant 5 : index
    %c0_181 = arith.constant 0 : index
    %c0_182 = arith.constant 0 : index
    %228 = vector.load %arg5[%c1_179, %c5_180, %c0_181, %c0_182] : memref<2x6x128x64xf32, #tpu.memory_space<vmem>>, vector<1x1x128x64xf32>
    %229 = vector.shape_cast %228 : vector<1x1x128x64xf32> to vector<128x64xf32>
    %cst_183 = arith.constant dense<0.000000e+00> : vector<8x64xf32>
    %230 = tpu.matmul %171, %229, %cst_183 {dimension_numbers = #tpu.dot_dimension_numbers<[1], [0], [0], [1], [0, 0, 1, 1], [], []>} : vector<8x128xf32>, vector<128x64xf32>, vector<8x64xf32> -> vector<8x64xf32>
    %c1_184 = arith.constant 1 : index
    %c5_185 = arith.constant 5 : index
    %c0_186 = arith.constant 0 : index
    %c0_187 = arith.constant 0 : index
    %231 = vector.load %arg6[%c1_184, %c5_185, %c0_186, %c0_187] : memref<2x6x1x64xf32, #tpu.memory_space<vmem>>, vector<1x1x1x64xf32>
    %232 = vector.shape_cast %231 : vector<1x1x1x64xf32> to vector<1x64xf32>
    %233 = vector.broadcast %232 : vector<1x64xf32> to vector<8x64xf32>
    %234 = arith.addf %230, %233 : vector<8x64xf32>
    %cst_188 = arith.constant dense<0.000000e+00> : vector<8x8xf32>
    %235 = tpu.matmul %220, %227, %cst_188 {dimension_numbers = #tpu.dot_dimension_numbers<[1], [1], [0], [0], [0, 0, 1, 0], [], []>} : vector<8x64xf32>, vector<8x64xf32>, vector<8x8xf32> -> vector<8x8xf32>
    %cst_189 = arith.constant 1.250000e-01 : f32
    %236 = vector.broadcast %cst_189 : f32 to vector<8x8xf32>
    %237 = arith.mulf %235, %236 : vector<8x8xf32>
    %238 = vector.broadcast %3 : vector<1x8xf32> to vector<8x8xf32>
    %239 = arith.addf %237, %238 : vector<8x8xf32>
    %cst_190 = arith.constant dense<0xFF800000> : vector<8xf32>
    %240 = vector.multi_reduction <maximumf>, %239, %cst_190 [1] : vector<8x8xf32> to vector<8xf32>
    %241 = vector.shape_cast %240 : vector<8xf32> to vector<8x1xf32>
    %242 = vector.broadcast %241 : vector<8x1xf32> to vector<8x8xf32>
    %243 = arith.subf %239, %242 : vector<8x8xf32>
    %244 = math.exp %243 : vector<8x8xf32>
    %cst_191 = arith.constant dense<0.000000e+00> : vector<8xf32>
    %245 = vector.multi_reduction <add>, %244, %cst_191 [1] : vector<8x8xf32> to vector<8xf32>
    %246 = vector.shape_cast %245 : vector<8xf32> to vector<8x1xf32>
    %247 = tpu.reciprocal %246 {approx = true} : vector<8x1xf32> -> vector<8x1xf32>
    %248 = vector.broadcast %247 : vector<8x1xf32> to vector<8x8xf32>
    %249 = arith.mulf %244, %248 : vector<8x8xf32>
    %cst_192 = arith.constant dense<0.000000e+00> : vector<8x64xf32>
    %250 = tpu.matmul %249, %234, %cst_192 {dimension_numbers = #tpu.dot_dimension_numbers<[1], [0], [0], [1], [0, 0, 1, 1], [], []>} : vector<8x8xf32>, vector<8x64xf32>, vector<8x64xf32> -> vector<8x64xf32>
    %c1_193 = arith.constant 1 : index
    %c1_194 = arith.constant 1 : index
    %c0_195 = arith.constant 0 : index
    %c0_196 = arith.constant 0 : index
    %251 = vector.load %arg7[%c1_193, %c1_194, %c0_195, %c0_196] : memref<2x2x64x128xf32, #tpu.memory_space<vmem>>, vector<1x1x64x128xf32>
    %252 = vector.shape_cast %251 : vector<1x1x64x128xf32> to vector<64x128xf32>
    %cst_197 = arith.constant dense<0.000000e+00> : vector<8x128xf32>
    %253 = tpu.matmul %250, %252, %cst_197 {dimension_numbers = #tpu.dot_dimension_numbers<[1], [0], [0], [1], [0, 0, 1, 1], [], []>} : vector<8x64xf32>, vector<64x128xf32>, vector<8x128xf32> -> vector<8x128xf32>
    %254 = arith.addf %213, %253 : vector<8x128xf32>
    %c1_198 = arith.constant 1 : index
    %c0_199 = arith.constant 0 : index
    %c0_200 = arith.constant 0 : index
    %c0_201 = arith.constant 0 : index
    %255 = vector.load %arg8[%c1_198, %c0_199, %c0_200, %c0_201] : memref<2x6x1x128xf32, #tpu.memory_space<vmem>>, vector<1x1x1x128xf32>
    %256 = vector.shape_cast %255 : vector<1x1x1x128xf32> to vector<1x128xf32>
    %257 = vector.broadcast %256 : vector<1x128xf32> to vector<8x128xf32>
    %258 = arith.addf %254, %257 : vector<8x128xf32>
    %259 = arith.addf %171, %258 : vector<8x128xf32>
    %c1_202 = arith.constant 1 : index
    %c1_203 = arith.constant 1 : index
    %c0_204 = arith.constant 0 : index
    %c0_205 = arith.constant 0 : index
    %260 = vector.load %arg8[%c1_202, %c1_203, %c0_204, %c0_205] : memref<2x6x1x128xf32, #tpu.memory_space<vmem>>, vector<1x1x1x128xf32>
    %261 = vector.shape_cast %260 : vector<1x1x1x128xf32> to vector<1x128xf32>
    %c1_206 = arith.constant 1 : index
    %c2_207 = arith.constant 2 : index
    %c0_208 = arith.constant 0 : index
    %c0_209 = arith.constant 0 : index
    %262 = vector.load %arg8[%c1_206, %c2_207, %c0_208, %c0_209] : memref<2x6x1x128xf32, #tpu.memory_space<vmem>>, vector<1x1x1x128xf32>
    %263 = vector.shape_cast %262 : vector<1x1x1x128xf32> to vector<1x128xf32>
    %cst_210 = arith.constant dense<0.000000e+00> : vector<8xf32>
    %264 = vector.multi_reduction <add>, %259, %cst_210 [1] : vector<8x128xf32> to vector<8xf32>
    %265 = vector.shape_cast %264 : vector<8xf32> to vector<8x1xf32>
    %cst_211 = arith.constant 1.280000e+02 : f32
    %266 = vector.broadcast %cst_211 : f32 to vector<8x1xf32>
    %267 = arith.divf %265, %266 : vector<8x1xf32>
    %268 = vector.broadcast %267 : vector<8x1xf32> to vector<8x128xf32>
    %269 = arith.subf %259, %268 : vector<8x128xf32>
    %270 = arith.mulf %269, %269 : vector<8x128xf32>
    %cst_212 = arith.constant dense<0.000000e+00> : vector<8xf32>
    %271 = vector.multi_reduction <add>, %270, %cst_212 [1] : vector<8x128xf32> to vector<8xf32>
    %272 = vector.shape_cast %271 : vector<8xf32> to vector<8x1xf32>
    %cst_213 = arith.constant 1.280000e+02 : f32
    %273 = vector.broadcast %cst_213 : f32 to vector<8x1xf32>
    %274 = arith.divf %272, %273 : vector<8x1xf32>
    %275 = vector.broadcast %267 : vector<8x1xf32> to vector<8x128xf32>
    %276 = arith.subf %259, %275 : vector<8x128xf32>
    %cst_214 = arith.constant 9.99999996E-13 : f32
    %277 = vector.broadcast %cst_214 : f32 to vector<8x1xf32>
    %278 = arith.addf %274, %277 : vector<8x1xf32>
    %279 = math.rsqrt %278 : vector<8x1xf32>
    %280 = vector.broadcast %279 : vector<8x1xf32> to vector<8x128xf32>
    %281 = arith.mulf %276, %280 : vector<8x128xf32>
    %282 = vector.broadcast %261 : vector<1x128xf32> to vector<8x128xf32>
    %283 = arith.mulf %281, %282 : vector<8x128xf32>
    %284 = vector.broadcast %263 : vector<1x128xf32> to vector<8x128xf32>
    %285 = arith.addf %283, %284 : vector<8x128xf32>
    %c1_215 = arith.constant 1 : index
    %c0_216 = arith.constant 0 : index
    %c0_217 = arith.constant 0 : index
    %286 = vector.load %arg9[%c1_215, %c0_216, %c0_217] : memref<2x128x256xf32, #tpu.memory_space<vmem>>, vector<1x128x256xf32>
    %287 = vector.shape_cast %286 : vector<1x128x256xf32> to vector<128x256xf32>
    %cst_218 = arith.constant dense<0.000000e+00> : vector<8x256xf32>
    %288 = tpu.matmul %285, %287, %cst_218 {dimension_numbers = #tpu.dot_dimension_numbers<[1], [0], [0], [1], [0, 0, 1, 1], [], []>} : vector<8x128xf32>, vector<128x256xf32>, vector<8x256xf32> -> vector<8x256xf32>
    %c1_219 = arith.constant 1 : index
    %c0_220 = arith.constant 0 : index
    %c0_221 = arith.constant 0 : index
    %289 = vector.load %arg10[%c1_219, %c0_220, %c0_221] : memref<2x1x256xf32, #tpu.memory_space<vmem>>, vector<1x1x256xf32>
    %290 = vector.shape_cast %289 : vector<1x1x256xf32> to vector<1x256xf32>
    %291 = vector.broadcast %290 : vector<1x256xf32> to vector<8x256xf32>
    %292 = arith.addf %288, %291 : vector<8x256xf32>
    %cst_222 = arith.constant 5.000000e-01 : f32
    %293 = vector.broadcast %cst_222 : f32 to vector<8x256xf32>
    %294 = arith.mulf %293, %292 : vector<8x256xf32>
    %cst_223 = arith.constant 4.471500e-02 : f32
    %295 = vector.broadcast %cst_223 : f32 to vector<8x256xf32>
    %296 = arith.mulf %295, %292 : vector<8x256xf32>
    %297 = arith.mulf %296, %292 : vector<8x256xf32>
    %298 = arith.mulf %297, %292 : vector<8x256xf32>
    %299 = arith.addf %292, %298 : vector<8x256xf32>
    %cst_224 = arith.constant 0.797884583 : f32
    %300 = vector.broadcast %cst_224 : f32 to vector<8x256xf32>
    %301 = arith.mulf %300, %299 : vector<8x256xf32>
    %302 = math.tanh %301 : vector<8x256xf32>
    %cst_225 = arith.constant 1.000000e+00 : f32
    %303 = vector.broadcast %cst_225 : f32 to vector<8x256xf32>
    %304 = arith.addf %303, %302 : vector<8x256xf32>
    %305 = arith.mulf %294, %304 : vector<8x256xf32>
    %c1_226 = arith.constant 1 : index
    %c0_227 = arith.constant 0 : index
    %c0_228 = arith.constant 0 : index
    %306 = vector.load %arg11[%c1_226, %c0_227, %c0_228] : memref<2x256x128xf32, #tpu.memory_space<vmem>>, vector<1x256x128xf32>
    %307 = vector.shape_cast %306 : vector<1x256x128xf32> to vector<256x128xf32>
    %cst_229 = arith.constant dense<0.000000e+00> : vector<8x128xf32>
    %308 = tpu.matmul %305, %307, %cst_229 {dimension_numbers = #tpu.dot_dimension_numbers<[1], [0], [0], [1], [0, 0, 1, 1], [], []>} : vector<8x256xf32>, vector<256x128xf32>, vector<8x128xf32> -> vector<8x128xf32>
    %c1_230 = arith.constant 1 : index
    %c3_231 = arith.constant 3 : index
    %c0_232 = arith.constant 0 : index
    %c0_233 = arith.constant 0 : index
    %309 = vector.load %arg8[%c1_230, %c3_231, %c0_232, %c0_233] : memref<2x6x1x128xf32, #tpu.memory_space<vmem>>, vector<1x1x1x128xf32>
    %310 = vector.shape_cast %309 : vector<1x1x1x128xf32> to vector<1x128xf32>
    %311 = vector.broadcast %310 : vector<1x128xf32> to vector<8x128xf32>
    %312 = arith.addf %308, %311 : vector<8x128xf32>
    %313 = arith.addf %285, %312 : vector<8x128xf32>
    %c1_234 = arith.constant 1 : index
    %c4_235 = arith.constant 4 : index
    %c0_236 = arith.constant 0 : index
    %c0_237 = arith.constant 0 : index
    %314 = vector.load %arg8[%c1_234, %c4_235, %c0_236, %c0_237] : memref<2x6x1x128xf32, #tpu.memory_space<vmem>>, vector<1x1x1x128xf32>
    %315 = vector.shape_cast %314 : vector<1x1x1x128xf32> to vector<1x128xf32>
    %c1_238 = arith.constant 1 : index
    %c5_239 = arith.constant 5 : index
    %c0_240 = arith.constant 0 : index
    %c0_241 = arith.constant 0 : index
    %316 = vector.load %arg8[%c1_238, %c5_239, %c0_240, %c0_241] : memref<2x6x1x128xf32, #tpu.memory_space<vmem>>, vector<1x1x1x128xf32>
    %317 = vector.shape_cast %316 : vector<1x1x1x128xf32> to vector<1x128xf32>
    %cst_242 = arith.constant dense<0.000000e+00> : vector<8xf32>
    %318 = vector.multi_reduction <add>, %313, %cst_242 [1] : vector<8x128xf32> to vector<8xf32>
    %319 = vector.shape_cast %318 : vector<8xf32> to vector<8x1xf32>
    %cst_243 = arith.constant 1.280000e+02 : f32
    %320 = vector.broadcast %cst_243 : f32 to vector<8x1xf32>
    %321 = arith.divf %319, %320 : vector<8x1xf32>
    %322 = vector.broadcast %321 : vector<8x1xf32> to vector<8x128xf32>
    %323 = arith.subf %313, %322 : vector<8x128xf32>
    %324 = arith.mulf %323, %323 : vector<8x128xf32>
    %cst_244 = arith.constant dense<0.000000e+00> : vector<8xf32>
    %325 = vector.multi_reduction <add>, %324, %cst_244 [1] : vector<8x128xf32> to vector<8xf32>
    %326 = vector.shape_cast %325 : vector<8xf32> to vector<8x1xf32>
    %cst_245 = arith.constant 1.280000e+02 : f32
    %327 = vector.broadcast %cst_245 : f32 to vector<8x1xf32>
    %328 = arith.divf %326, %327 : vector<8x1xf32>
    %329 = vector.broadcast %321 : vector<8x1xf32> to vector<8x128xf32>
    %330 = arith.subf %313, %329 : vector<8x128xf32>
    %cst_246 = arith.constant 9.99999996E-13 : f32
    %331 = vector.broadcast %cst_246 : f32 to vector<8x1xf32>
    %332 = arith.addf %328, %331 : vector<8x1xf32>
    %333 = math.rsqrt %332 : vector<8x1xf32>
    %334 = vector.broadcast %333 : vector<8x1xf32> to vector<8x128xf32>
    %335 = arith.mulf %330, %334 : vector<8x128xf32>
    %336 = vector.broadcast %315 : vector<1x128xf32> to vector<8x128xf32>
    %337 = arith.mulf %335, %336 : vector<8x128xf32>
    %338 = vector.broadcast %317 : vector<1x128xf32> to vector<8x128xf32>
    %339 = arith.addf %337, %338 : vector<8x128xf32>
    %c0_247 = arith.constant 0 : index
    %c0_248 = arith.constant 0 : index
    %c0_249 = arith.constant 0 : index
    %340 = vector.load %arg3[%c0_247, %c0_248, %c0_249] : memref<1x8x1xf32, #tpu.memory_space<vmem>>, vector<1x8x1xf32>
    %341 = vector.shape_cast %340 : vector<1x8x1xf32> to vector<8x1xf32>
    %c0_250 = arith.constant 0 : index
    %c0_251 = arith.constant 0 : index
    %c0_252 = arith.constant 0 : index
    %342 = vector.load %arg4[%c0_250, %c0_251, %c0_252] : memref<1x8x1xf32, #tpu.memory_space<vmem>>, vector<1x8x1xf32>
    %343 = vector.shape_cast %342 : vector<1x8x1xf32> to vector<8x1xf32>
    %344 = vector.broadcast %341 : vector<8x1xf32> to vector<8x128xf32>
    %345 = arith.mulf %339, %344 : vector<8x128xf32>
    %cst_253 = arith.constant 1.000000e+00 : f32
    %346 = vector.broadcast %cst_253 : f32 to vector<8x128xf32>
    %347 = arith.addf %345, %346 : vector<8x128xf32>
    %cst_254 = arith.constant dense<0xFF800000> : vector<128xf32>
    %348 = vector.multi_reduction <maximumf>, %347, %cst_254 [0] : vector<8x128xf32> to vector<128xf32>
    %349 = vector.shape_cast %348 : vector<128xf32> to vector<1x128xf32>
    %cst_255 = arith.constant 1.000000e+00 : f32
    %350 = vector.broadcast %cst_255 : f32 to vector<1x128xf32>
    %351 = arith.subf %349, %350 : vector<1x128xf32>
    %352 = vector.broadcast %343 : vector<8x1xf32> to vector<8x128xf32>
    %353 = arith.mulf %339, %352 : vector<8x128xf32>
    %cst_256 = arith.constant 1.000000e+00 : f32
    %354 = vector.broadcast %cst_256 : f32 to vector<8x128xf32>
    %355 = arith.addf %353, %354 : vector<8x128xf32>
    %cst_257 = arith.constant dense<0xFF800000> : vector<128xf32>
    %356 = vector.multi_reduction <maximumf>, %355, %cst_257 [0] : vector<8x128xf32> to vector<128xf32>
    %357 = vector.shape_cast %356 : vector<128xf32> to vector<1x128xf32>
    %cst_258 = arith.constant 1.000000e+00 : f32
    %358 = vector.broadcast %cst_258 : f32 to vector<1x128xf32>
    %359 = arith.subf %357, %358 : vector<1x128xf32>
    %c0_259 = arith.constant 0 : index
    %c0_260 = arith.constant 0 : index
    %c0_261 = arith.constant 0 : index
    %360 = vector.load %arg12[%c0_259, %c0_260, %c0_261] : memref<2x128x256xf32, #tpu.memory_space<vmem>>, vector<1x128x256xf32>
    %361 = vector.shape_cast %360 : vector<1x128x256xf32> to vector<128x256xf32>
    %cst_262 = arith.constant dense<0.000000e+00> : vector<1x256xf32>
    %362 = tpu.matmul %351, %361, %cst_262 {dimension_numbers = #tpu.dot_dimension_numbers<[1], [0], [0], [1], [0, 0, 1, 1], [], []>} : vector<1x128xf32>, vector<128x256xf32>, vector<1x256xf32> -> vector<1x256xf32>
    %c1_263 = arith.constant 1 : index
    %c0_264 = arith.constant 0 : index
    %c0_265 = arith.constant 0 : index
    %363 = vector.load %arg12[%c1_263, %c0_264, %c0_265] : memref<2x128x256xf32, #tpu.memory_space<vmem>>, vector<1x128x256xf32>
    %364 = vector.shape_cast %363 : vector<1x128x256xf32> to vector<128x256xf32>
    %cst_266 = arith.constant dense<0.000000e+00> : vector<1x256xf32>
    %365 = tpu.matmul %359, %364, %cst_266 {dimension_numbers = #tpu.dot_dimension_numbers<[1], [0], [0], [1], [0, 0, 1, 1], [], []>} : vector<1x128xf32>, vector<128x256xf32>, vector<1x256xf32> -> vector<1x256xf32>
    %366 = arith.addf %362, %365 : vector<1x256xf32>
    %c0_267 = arith.constant 0 : index
    %c0_268 = arith.constant 0 : index
    %367 = vector.load %arg13[%c0_267, %c0_268] : memref<1x256xf32, #tpu.memory_space<vmem>>, vector<1x256xf32>
    %368 = arith.addf %366, %367 : vector<1x256xf32>
    %c0_269 = arith.constant 0 : index
    %c0_270 = arith.constant 0 : index
    %c0_271 = arith.constant 0 : index
    %369 = vector.load %arg14[%c0_269, %c0_270, %c0_271] : memref<1x1x256xf32, #tpu.memory_space<vmem>>, vector<1x1x256xf32>
    %370 = vector.shape_cast %369 : vector<1x1x256xf32> to vector<1x256xf32>
    %371 = vector.shape_cast %368 : vector<1x256xf32> to vector<1x1x256xf32>
    tpu.vector_store %arg14[%c0_269, %c0_270, %c0_271], %371 {strides = array<i32>} : memref<1x1x256xf32, #tpu.memory_space<vmem>>, vector<1x1x256xf32>,
    return
  }
  func.func @transform_0(%arg0: i32) -> (i32, i32, i32) {
    %c0_i32 = arith.constant 0 : i32
    %c0_i32_0 = arith.constant 0 : i32
    %c0_i32_1 = arith.constant 0 : i32
    return %arg0, %c0_i32, %c0_i32_0 : i32, i32, i32
  }
  func.func @transform_1(%arg0: i32) -> (i32, i32, i32) {
    %c0_i32 = arith.constant 0 : i32
    %c0_i32_0 = arith.constant 0 : i32
    %c0_i32_1 = arith.constant 0 : i32
    return %arg0, %c0_i32, %c0_i32_0 : i32, i32, i32
  }
  func.func @transform_2(%arg0: i32) -> (i32, i32, i32) {
    %c0_i32 = arith.constant 0 : i32
    %c0_i32_0 = arith.constant 0 : i32
    %c0_i32_1 = arith.constant 0 : i32
    return %arg0, %c0_i32, %c0_i32_0 : i32, i32, i32
  }
  func.func @transform_3(%arg0: i32) -> (i32, i32, i32) {
    %c0_i32 = arith.constant 0 : i32
    %c0_i32_0 = arith.constant 0 : i32
    %c0_i32_1 = arith.constant 0 : i32
    return %arg0, %c0_i32, %c0_i32_0 : i32, i32, i32
  }
  func.func @transform_4(%arg0: i32) -> (i32, i32, i32, i32) {
    %c0_i32 = arith.constant 0 : i32
    %c0_i32_0 = arith.constant 0 : i32
    %c0_i32_1 = arith.constant 0 : i32
    %c0_i32_2 = arith.constant 0 : i32
    %c0_i32_3 = arith.constant 0 : i32
    return %c0_i32, %c0_i32_0, %c0_i32_1, %c0_i32_2 : i32, i32, i32, i32
  }
  func.func @transform_5(%arg0: i32) -> (i32, i32, i32, i32) {
    %c0_i32 = arith.constant 0 : i32
    %c0_i32_0 = arith.constant 0 : i32
    %c0_i32_1 = arith.constant 0 : i32
    %c0_i32_2 = arith.constant 0 : i32
    %c0_i32_3 = arith.constant 0 : i32
    return %c0_i32, %c0_i32_0, %c0_i32_1, %c0_i32_2 : i32, i32, i32, i32
  }
  func.func @transform_6(%arg0: i32) -> (i32, i32, i32, i32) {
    %c0_i32 = arith.constant 0 : i32
    %c0_i32_0 = arith.constant 0 : i32
    %c0_i32_1 = arith.constant 0 : i32
    %c0_i32_2 = arith.constant 0 : i32
    %c0_i32_3 = arith.constant 0 : i32
    return %c0_i32, %c0_i32_0, %c0_i32_1, %c0_i32_2 : i32, i32, i32, i32
  }
  func.func @transform_7(%arg0: i32) -> (i32, i32, i32, i32) {
    %c0_i32 = arith.constant 0 : i32
    %c0_i32_0 = arith.constant 0 : i32
    %c0_i32_1 = arith.constant 0 : i32
    %c0_i32_2 = arith.constant 0 : i32
    %c0_i32_3 = arith.constant 0 : i32
    return %c0_i32, %c0_i32_0, %c0_i32_1, %c0_i32_2 : i32, i32, i32, i32
  }
  func.func @transform_8(%arg0: i32) -> (i32, i32, i32) {
    %c0_i32 = arith.constant 0 : i32
    %c0_i32_0 = arith.constant 0 : i32
    %c0_i32_1 = arith.constant 0 : i32
    %c0_i32_2 = arith.constant 0 : i32
    return %c0_i32, %c0_i32_0, %c0_i32_1 : i32, i32, i32
  }
  func.func @transform_9(%arg0: i32) -> (i32, i32, i32) {
    %c0_i32 = arith.constant 0 : i32
    %c0_i32_0 = arith.constant 0 : i32
    %c0_i32_1 = arith.constant 0 : i32
    %c0_i32_2 = arith.constant 0 : i32
    return %c0_i32, %c0_i32_0, %c0_i32_1 : i32, i32, i32
  }
  func.func @transform_10(%arg0: i32) -> (i32, i32, i32) {
    %c0_i32 = arith.constant 0 : i32
    %c0_i32_0 = arith.constant 0 : i32
    %c0_i32_1 = arith.constant 0 : i32
    %c0_i32_2 = arith.constant 0 : i32
    return %c0_i32, %c0_i32_0, %c0_i32_1 : i32, i32, i32
  }
  func.func @transform_11(%arg0: i32) -> (i32, i32, i32) {
    %c0_i32 = arith.constant 0 : i32
    %c0_i32_0 = arith.constant 0 : i32
    %c0_i32_1 = arith.constant 0 : i32
    %c0_i32_2 = arith.constant 0 : i32
    return %c0_i32, %c0_i32_0, %c0_i32_1 : i32, i32, i32
  }
  func.func @transform_12(%arg0: i32) -> (i32, i32) {
    %c0_i32 = arith.constant 0 : i32
    %c0_i32_0 = arith.constant 0 : i32
    %c0_i32_1 = arith.constant 0 : i32
    return %c0_i32, %c0_i32_0 : i32, i32
  }
  func.func @transform_13(%arg0: i32) -> (i32, i32, i32) {
    %c0_i32 = arith.constant 0 : i32
    %c0_i32_0 = arith.constant 0 : i32
    %c0_i32_1 = arith.constant 0 : i32
    return %arg0, %c0_i32, %c0_i32_0 : i32, i32, i32
  }
}

</mosaic_0001>

<llo_original>
// kernel: forward.1
$region0: #{forward.1}
  #allocation0 [shape = 'u32[]', space=smem, size = 0x4, offset = 0x4, fixed_abs, tag = 'smem constant byte address 0x4 - core index']
  #allocation1 [shape = 'u32[144,128]{1,0:T(1,128)}', space=vmem, size = 0x12000, scoped, tag = 'internal scratch']
  %s0 = inlined_call_operand.vmem [shape: f32[2,8,128], index: 0, kind: input, shape index: {}]
  %s1 = inlined_call_operand.vmem [shape: f32[2,1,8], index: 1, kind: input, shape index: {}]
  %s2 = inlined_call_operand.vmem [shape: f32[2,8,1], index: 2, kind: input, shape index: {}]
  %s3 = inlined_call_operand.vmem [shape: f32[2,8,1], index: 3, kind: input, shape index: {}]
  %s4 = inlined_call_operand.vmem [shape: f32[2,6,128,64], index: 4, kind: input, shape index: {}]
  %s5 = inlined_call_operand.vmem [shape: f32[2,6,1,64], index: 5, kind: input, shape index: {}]
  %s6 = inlined_call_operand.vmem [shape: f32[2,2,64,128], index: 6, kind: input, shape index: {}]
  %s7 = inlined_call_operand.vmem [shape: f32[2,6,1,128], index: 7, kind: input, shape index: {}]
  %s8 = inlined_call_operand.vmem [shape: f32[2,128,256], index: 8, kind: input, shape index: {}]
  %s9 = inlined_call_operand.vmem [shape: f32[2,1,256], index: 9, kind: input, shape index: {}]
  %s10 = inlined_call_operand.vmem [shape: f32[2,256,128], index: 10, kind: input, shape index: {}]
  %s11 = inlined_call_operand.vmem [shape: f32[2,128,256], index: 11, kind: input, shape index: {}]
  %s12 = inlined_call_operand.vmem [shape: f32[1,256], index: 12, kind: input, shape index: {}]
  %s13 = inlined_call_operand.vmem [shape: f32[2,1,256], index: 13, kind: output, shape index: {}]
  %s14 = sld [smem:[#allocation0]]
  $region85: #{forward.1} parent=0
    _
  %s16 = ssub.s32 1, %s14
  %s17 = scalar_select 0, %s16, %s14
  loop: start=0, step=1, limit=4
  $region2: #{forward.1} parent=0 // loop_pre_header
    _
  $region3: #{forward.1} parent=0 // loop_header
    %s19 = sphi 0, %s23
    %p20 = scmp.ge.s32.totalorder %s19, 4
    %s29 = sphi 0, %s31
    %s32 = sphi 0, %s29
    %s33 = sphi 0, %s32
    %s49 = sphi 0, %s33
    %s55 = sphi 0, %s57
    %s58 = sphi 0, %s55
    %s59 = sphi 0, %s58
    %s75 = sphi 0, %s59
    %s81 = sphi 0, %s83
    %s84 = sphi 0, %s81
    %s85 = sphi 0, %s84
    %s101 = sphi 0, %s85
    %s107 = sphi 0, %s109
    %s110 = sphi 0, %s107
    %s111 = sphi 0, %s110
    %s127 = sphi 0, %s111
    %s131 = sphi 0, %s131
    %s133 = sphi 0, %s131
    %s134 = sphi 0, %s133
    %s148 = sphi 0, %s134
    %s152 = sphi 0, %s152
    %s154 = sphi 0, %s152
    %s155 = sphi 0, %s154
    %s169 = sphi 0, %s155
    %s173 = sphi 0, %s173
    %s175 = sphi 0, %s173
    %s176 = sphi 0, %s175
    %s190 = sphi 0, %s176
    %s194 = sphi 0, %s194
    %s196 = sphi 0, %s194
    %s197 = sphi 0, %s196
    %s211 = sphi 0, %s197
    %s215 = sphi 0, %s215
    %s217 = sphi 0, %s215
    %s218 = sphi 0, %s217
    %s232 = sphi 0, %s218
    %s236 = sphi 0, %s236
    %s238 = sphi 0, %s236
    %s239 = sphi 0, %s238
    %s253 = sphi 0, %s239
    %s257 = sphi 0, %s257
    %s259 = sphi 0, %s257
    %s260 = sphi 0, %s259
    %s274 = sphi 0, %s260
    %s278 = sphi 0, %s278
    %s280 = sphi 0, %s278
    %s281 = sphi 0, %s280
    %s295 = sphi 0, %s281
    %s299 = sphi 0, %s299
    %s301 = sphi 0, %s299
    %s302 = sphi 0, %s301
    %s316 = sphi 0, %s302
    %s322 = sphi 0, %s324
    %s325 = sphi 0, %s322
    %s326 = sphi 0, %s325
    %s342 = sphi 0, %s326
  $region4: #{forward.1} parent=0 // loop_header_branch
    %22 = sbr.rel (%p20) target = $region8
  $region5: #{forward.1} parent=0 // loop_body
    %s24 = ssub.s32 %s19, 1
    %s25 = ssub.s32 %s19, 2
    %s26 = sadd.s32 %s19, 1
    %s27 = ssub.s32 %s19, %s26
    %p28 = scmp.eq.s32.totalorder %s27, 0
    %s30 = sadd.s32 %s29, 1
    %s31 = scalar_select %p28, %s29, %s30
    %p34 = pneg %p28
    %p35 = scmp.eq.s32.totalorder %s19, 1
    %p36 = por %p34, %p35
    %p37 = scmp.ne.s32.totalorder %s29, %s32
    %p38 = scmp.eq.s32.totalorder %s19, 0
    %p39 = por %p37, %p38
    %p40 = scmp.ne.s32.totalorder %s29, %s32
    %p41 = scmp.eq.s32.totalorder %s24, 1
    %p42 = por %p40, %p41
    %p43 = scmp.ne.s32.totalorder %s32, %s33
    %p44 = scmp.eq.s32.totalorder %s24, 0
    %p45 = por %p43, %p44
    %p46 = scmp.ne.s32.totalorder %s32, %s33
    %p47 = scmp.eq.s32.totalorder %s25, 1
    %p48 = por %p46, %p47
    %p50 = scmp.ne.s32.totalorder %s33, %s49
    %p51 = scmp.eq.s32.totalorder %s25, 0
    %p52 = por %p50, %p51
    %s53 = ssub.s32 %s19, %s26
    %p54 = scmp.eq.s32.totalorder %s53, 0
    %s56 = sadd.s32 %s55, 1
    %s57 = scalar_select %p54, %s55, %s56
    %p60 = pneg %p54
    %p61 = scmp.eq.s32.totalorder %s19, 1
    %p62 = por %p60, %p61
    %p63 = scmp.ne.s32.totalorder %s55, %s58
    %p64 = scmp.eq.s32.totalorder %s19, 0
    %p65 = por %p63, %p64
    %p66 = scmp.ne.s32.totalorder %s55, %s58
    %p67 = scmp.eq.s32.totalorder %s24, 1
    %p68 = por %p66, %p67
    %p69 = scmp.ne.s32.totalorder %s58, %s59
    %p70 = scmp.eq.s32.totalorder %s24, 0
    %p71 = por %p69, %p70
    %p72 = scmp.ne.s32.totalorder %s58, %s59
    %p73 = scmp.eq.s32.totalorder %s25, 1
    %p74 = por %p72, %p73
    %p76 = scmp.ne.s32.totalorder %s59, %s75
    %p77 = scmp.eq.s32.totalorder %s25, 0
    %p78 = por %p76, %p77
    %s79 = ssub.s32 %s19, %s26
    %p80 = scmp.eq.s32.totalorder %s79, 0
    %s82 = sadd.s32 %s81, 1
    %s83 = scalar_select %p80, %s81, %s82
    %p86 = pneg %p80
    %p87 = scmp.eq.s32.totalorder %s19, 1
    %p88 = por %p86, %p87
    %p89 = scmp.ne.s32.totalorder %s81, %s84
    %p90 = scmp.eq.s32.totalorder %s19, 0
    %p91 = por %p89, %p90
    %p92 = scmp.ne.s32.totalorder %s81, %s84
    %p93 = scmp.eq.s32.totalorder %s24, 1
    %p94 = por %p92, %p93
    %p95 = scmp.ne.s32.totalorder %s84, %s85
    %p96 = scmp.eq.s32.totalorder %s24, 0
    %p97 = por %p95, %p96
    %p98 = scmp.ne.s32.totalorder %s84, %s85
    %p99 = scmp.eq.s32.totalorder %s25, 1
    %p100 = por %p98, %p99
    %p102 = scmp.ne.s32.totalorder %s85, %s101
    %p103 = scmp.eq.s32.totalorder %s25, 0
    %p104 = por %p102, %p103
    %s105 = ssub.s32 %s19, %s26
    %p106 = scmp.eq.s32.totalorder %s105, 0
    %s108 = sadd.s32 %s107, 1
    %s109 = scalar_select %p106, %s107, %s108
    %p112 = pneg %p106
    %p113 = scmp.eq.s32.totalorder %s19, 1
    %p114 = por %p112, %p113
    %p115 = scmp.ne.s32.totalorder %s107, %s110
    %p116 = scmp.eq.s32.totalorder %s19, 0
    %p117 = por %p115, %p116
    %p118 = scmp.ne.s32.totalorder %s107, %s110
    %p119 = scmp.eq.s32.totalorder %s24, 1
    %p120 = por %p118, %p119
    %p121 = scmp.ne.s32.totalorder %s110, %s111
    %p122 = scmp.eq.s32.totalorder %s24, 0
    %p123 = por %p121, %p122
    %p124 = scmp.ne.s32.totalorder %s110, %s111
    %p125 = scmp.eq.s32.totalorder %s25, 1
    %p126 = por %p124, %p125
    %p128 = scmp.ne.s32.totalorder %s111, %s127
    %p129 = scmp.eq.s32.totalorder %s25, 0
    %p130 = por %p128, %p129
    %s132 = sadd.s32 %s131, 1
    %p135 = scmp.eq.s32.totalorder %s19, 1
    %p136 = scmp.ne.s32.totalorder %s131, %s133
    %p137 = scmp.eq.s32.totalorder %s19, 0
    %p138 = por %p136, %p137
    %p139 = scmp.ne.s32.totalorder %s131, %s133
    %p140 = scmp.eq.s32.totalorder %s24, 1
    %p141 = por %p139, %p140
    %p142 = scmp.ne.s32.totalorder %s133, %s134
    %p143 = scmp.eq.s32.totalorder %s24, 0
    %p144 = por %p142, %p143
    %p145 = scmp.ne.s32.totalorder %s133, %s134
    %p146 = scmp.eq.s32.totalorder %s25, 1
    %p147 = por %p145, %p146
    %p149 = scmp.ne.s32.totalorder %s134, %s148
    %p150 = scmp.eq.s32.totalorder %s25, 0
    %p151 = por %p149, %p150
    %s153 = sadd.s32 %s152, 1
    %p156 = scmp.eq.s32.totalorder %s19, 1
    %p157 = scmp.ne.s32.totalorder %s152, %s154
    %p158 = scmp.eq.s32.totalorder %s19, 0
    %p159 = por %p157, %p158
    %p160 = scmp.ne.s32.totalorder %s152, %s154
    %p161 = scmp.eq.s32.totalorder %s24, 1
    %p162 = por %p160, %p161
    %p163 = scmp.ne.s32.totalorder %s154, %s155
    %p164 = scmp.eq.s32.totalorder %s24, 0
    %p165 = por %p163, %p164
    %p166 = scmp.ne.s32.totalorder %s154, %s155
    %p167 = scmp.eq.s32.totalorder %s25, 1
    %p168 = por %p166, %p167
    %p170 = scmp.ne.s32.totalorder %s155, %s169
    %p171 = scmp.eq.s32.totalorder %s25, 0
    %p172 = por %p170, %p171
    %s174 = sadd.s32 %s173, 1
    %p177 = scmp.eq.s32.totalorder %s19, 1
    %p178 = scmp.ne.s32.totalorder %s173, %s175
    %p179 = scmp.eq.s32.totalorder %s19, 0
    %p180 = por %p178, %p179
    %p181 = scmp.ne.s32.totalorder %s173, %s175
    %p182 = scmp.eq.s32.totalorder %s24, 1
    %p183 = por %p181, %p182
    %p184 = scmp.ne.s32.totalorder %s175, %s176
    %p185 = scmp.eq.s32.totalorder %s24, 0
    %p186 = por %p184, %p185
    %p187 = scmp.ne.s32.totalorder %s175, %s176
    %p188 = scmp.eq.s32.totalorder %s25, 1
    %p189 = por %p187, %p188
    %p191 = scmp.ne.s32.totalorder %s176, %s190
    %p192 = scmp.eq.s32.totalorder %s25, 0
    %p193 = por %p191, %p192
    %s195 = sadd.s32 %s194, 1
    %p198 = scmp.eq.s32.totalorder %s19, 1
    %p199 = scmp.ne.s32.totalorder %s194, %s196
    %p200 = scmp.eq.s32.totalorder %s19, 0
    %p201 = por %p199, %p200
    %p202 = scmp.ne.s32.totalorder %s194, %s196
    %p203 = scmp.eq.s32.totalorder %s24, 1
    %p204 = por %p202, %p203
    %p205 = scmp.ne.s32.totalorder %s196, %s197
    %p206 = scmp.eq.s32.totalorder %s24, 0
    %p207 = por %p205, %p206
    %p208 = scmp.ne.s32.totalorder %s196, %s197
    %p209 = scmp.eq.s32.totalorder %s25, 1
    %p210 = por %p208, %p209
    %p212 = scmp.ne.s32.totalorder %s197, %s211
    %p213 = scmp.eq.s32.totalorder %s25, 0
    %p214 = por %p212, %p213
    %s216 = sadd.s32 %s215, 1
    %p219 = scmp.eq.s32.totalorder %s19, 1
    %p220 = scmp.ne.s32.totalorder %s215, %s217
    %p221 = scmp.eq.s32.totalorder %s19, 0
    %p222 = por %p220, %p221
    %p223 = scmp.ne.s32.totalorder %s215, %s217
    %p224 = scmp.eq.s32.totalorder %s24, 1
    %p225 = por %p223, %p224
    %p226 = scmp.ne.s32.totalorder %s217, %s218
    %p227 = scmp.eq.s32.totalorder %s24, 0
    %p228 = por %p226, %p227
    %p229 = scmp.ne.s32.totalorder %s217, %s218
    %p230 = scmp.eq.s32.totalorder %s25, 1
    %p231 = por %p229, %p230
    %p233 = scmp.ne.s32.totalorder %s218, %s232
    %p234 = scmp.eq.s32.totalorder %s25, 0
    %p235 = por %p233, %p234
    %s237 = sadd.s32 %s236, 1
    %p240 = scmp.eq.s32.totalorder %s19, 1
    %p241 = scmp.ne.s32.totalorder %s236, %s238
    %p242 = scmp.eq.s32.totalorder %s19, 0
    %p243 = por %p241, %p242
    %p244 = scmp.ne.s32.totalorder %s236, %s238
    %p245 = scmp.eq.s32.totalorder %s24, 1
    %p246 = por %p244, %p245
    %p247 = scmp.ne.s32.totalorder %s238, %s239
    %p248 = scmp.eq.s32.totalorder %s24, 0
    %p249 = por %p247, %p248
    %p250 = scmp.ne.s32.totalorder %s238, %s239
    %p251 = scmp.eq.s32.totalorder %s25, 1
    %p252 = por %p250, %p251
    %p254 = scmp.ne.s32.totalorder %s239, %s253
    %p255 = scmp.eq.s32.totalorder %s25, 0
    %p256 = por %p254, %p255
    %s258 = sadd.s32 %s257, 1
    %p261 = scmp.eq.s32.totalorder %s19, 1
    %p262 = scmp.ne.s32.totalorder %s257, %s259
    %p263 = scmp.eq.s32.totalorder %s19, 0
    %p264 = por %p262, %p263
    %p265 = scmp.ne.s32.totalorder %s257, %s259
    %p266 = scmp.eq.s32.totalorder %s24, 1
    %p267 = por %p265, %p266
    %p268 = scmp.ne.s32.totalorder %s259, %s260
    %p269 = scmp.eq.s32.totalorder %s24, 0
    %p270 = por %p268, %p269
    %p271 = scmp.ne.s32.totalorder %s259, %s260
    %p272 = scmp.eq.s32.totalorder %s25, 1
    %p273 = por %p271, %p272
    %p275 = scmp.ne.s32.totalorder %s260, %s274
    %p276 = scmp.eq.s32.totalorder %s25, 0
    %p277 = por %p275, %p276
    %s279 = sadd.s32 %s278, 1
    %p282 = scmp.eq.s32.totalorder %s19, 1
    %p283 = scmp.ne.s32.totalorder %s278, %s280
    %p284 = scmp.eq.s32.totalorder %s19, 0
    %p285 = por %p283, %p284
    %p286 = scmp.ne.s32.totalorder %s278, %s280
    %p287 = scmp.eq.s32.totalorder %s24, 1
    %p288 = por %p286, %p287
    %p289 = scmp.ne.s32.totalorder %s280, %s281
    %p290 = scmp.eq.s32.totalorder %s24, 0
    %p291 = por %p289, %p290
    %p292 = scmp.ne.s32.totalorder %s280, %s281
    %p293 = scmp.eq.s32.totalorder %s25, 1
    %p294 = por %p292, %p293
    %p296 = scmp.ne.s32.totalorder %s281, %s295
    %p297 = scmp.eq.s32.totalorder %s25, 0
    %p298 = por %p296, %p297
    %s300 = sadd.s32 %s299, 1
    %p303 = scmp.eq.s32.totalorder %s19, 1
    %p304 = scmp.ne.s32.totalorder %s299, %s301
    %p305 = scmp.eq.s32.totalorder %s19, 0
    %p306 = por %p304, %p305
    %p307 = scmp.ne.s32.totalorder %s299, %s301
    %p308 = scmp.eq.s32.totalorder %s24, 1
    %p309 = por %p307, %p308
    %p310 = scmp.ne.s32.totalorder %s301, %s302
    %p311 = scmp.eq.s32.totalorder %s24, 0
    %p312 = por %p310, %p311
    %p313 = scmp.ne.s32.totalorder %s301, %s302
    %p314 = scmp.eq.s32.totalorder %s25, 1
    %p315 = por %p313, %p314
    %p317 = scmp.ne.s32.totalorder %s302, %s316
    %p318 = scmp.eq.s32.totalorder %s25, 0
    %p319 = por %p317, %p318
    %s320 = ssub.s32 %s19, %s26
    %p321 = scmp.eq.s32.totalorder %s320, 0
    %s323 = sadd.s32 %s322, 1
    %s324 = scalar_select %p321, %s322, %s323
    %p327 = pneg %p321
    %p328 = scmp.eq.s32.totalorder %s19, 1
    %p329 = por %p327, %p328
    %p330 = scmp.ne.s32.totalorder %s322, %s325
    %p331 = scmp.eq.s32.totalorder %s19, 0
    %p332 = por %p330, %p331
    %p333 = scmp.ne.s32.totalorder %s322, %s325
    %p334 = scmp.eq.s32.totalorder %s24, 1
    %p335 = por %p333, %p334
    %p336 = scmp.ne.s32.totalorder %s325, %s326
    %p337 = scmp.eq.s32.totalorder %s24, 0
    %p338 = por %p336, %p337
    %p339 = scmp.ne.s32.totalorder %s325, %s326
    %p340 = scmp.eq.s32.totalorder %s25, 1
    %p341 = por %p339, %p340
    %p343 = scmp.ne.s32.totalorder %s326, %s342
    %p344 = scmp.eq.s32.totalorder %s25, 0
    %p345 = por %p343, %p344
    %p346 = scmp.le.s32.totalorder 1, %s19
    %p347 = scmp.lt.s32.totalorder %s19, 3
    %p348 = pnand %p346, %p347
    %p349 = pneg %p348
    // Predicated region
    $region9: #{forward.1} parent=5 // pred_check
      _
    $region10: #{forward.1} parent=5 // pred_check_branch
      %351 = sbr.rel (%p348) target = $region12
    $region11: #{forward.1} parent=5 // pred_region
      %s352 = ssub.s32 %s19, 1
      // Predicated region
      $region13: #{forward.1} parent=11 // pred_check
        %p353 = pneg %p144
      $region14: #{forward.1} parent=11 // pred_check_branch
        %355 = sbr.rel (%p353) target = $region16
      $region15: #{forward.1} parent=11 // pred_region
        _
      $region16: #{forward.1} parent=11 // pred_fallthru
        _
      // Predicated region
      $region17: #{forward.1} parent=11 // pred_check
        %p356 = pneg %p165
      $region18: #{forward.1} parent=11 // pred_check_branch
        %358 = sbr.rel (%p356) target = $region20
      $region19: #{forward.1} parent=11 // pred_region
        _
      $region20: #{forward.1} parent=11 // pred_fallthru
        _
      // Predicated region
      $region21: #{forward.1} parent=11 // pred_check
        %p359 = pneg %p186
      $region22: #{forward.1} parent=11 // pred_check_branch
        %361 = sbr.rel (%p359) target = $region24
      $region23: #{forward.1} parent=11 // pred_region
        _
      $region24: #{forward.1} parent=11 // pred_fallthru
        _
      // Predicated region
      $region25: #{forward.1} parent=11 // pred_check
        %p362 = pneg %p207
      $region26: #{forward.1} parent=11 // pred_check_branch
        %364 = sbr.rel (%p362) target = $region28
      $region27: #{forward.1} parent=11 // pred_region
        _
      $region28: #{forward.1} parent=11 // pred_fallthru
        _
      // Predicated region
      $region29: #{forward.1} parent=11 // pred_check
        %p365 = pneg %p228
      $region30: #{forward.1} parent=11 // pred_check_branch
        %367 = sbr.rel (%p365) target = $region32
      $region31: #{forward.1} parent=11 // pred_region
        _
      $region32: #{forward.1} parent=11 // pred_fallthru
        _
      // Predicated region
      $region33: #{forward.1} parent=11 // pred_check
        %p368 = pneg %p249
      $region34: #{forward.1} parent=11 // pred_check_branch
        %370 = sbr.rel (%p368) target = $region36
      $region35: #{forward.1} parent=11 // pred_region
        _
      $region36: #{forward.1} parent=11 // pred_fallthru
        _
      // Predicated region
      $region37: #{forward.1} parent=11 // pred_check
        %p371 = pneg %p270
      $region38: #{forward.1} parent=11 // pred_check_branch
        %373 = sbr.rel (%p371) target = $region40
      $region39: #{forward.1} parent=11 // pred_region
        _
      $region40: #{forward.1} parent=11 // pred_fallthru
        _
      // Predicated region
      $region41: #{forward.1} parent=11 // pred_check
        %p374 = pneg %p291
      $region42: #{forward.1} parent=11 // pred_check_branch
        %376 = sbr.rel (%p374) target = $region44
      $region43: #{forward.1} parent=11 // pred_region
        _
      $region44: #{forward.1} parent=11 // pred_fallthru
        _
      // Predicated region
      $region45: #{forward.1} parent=11 // pred_check
        %p377 = pneg %p312
      $region46: #{forward.1} parent=11 // pred_check_branch
        %379 = sbr.rel (%p377) target = $region48
      $region47: #{forward.1} parent=11 // pred_region
        _
      $region48: #{forward.1} parent=11 // pred_fallthru
        _
    $region12: #{forward.1} parent=5 // pred_fallthru
      _
    %p380 = scmp.lt.s32.totalorder %s19, 2
    // Predicated region
    $region49: #{forward.1} parent=5 // pred_check
      %p381 = pneg %p380
    $region50: #{forward.1} parent=5 // pred_check_branch
      %383 = sbr.rel (%p381) target = $region52
    $region51: #{forward.1} parent=5 // pred_region
      // Predicated region
      $region53: #{forward.1} parent=51 // pred_check
        %p384 = pneg %p39
      $region54: #{forward.1} parent=51 // pred_check_branch
        %386 = sbr.rel (%p384) target = $region56
      $region55: #{forward.1} parent=51 // pred_region
        %p387 = scmp.lt.s32.totalorder %s19, 1
        %s388 = scalar_select %p387, %s19, 1
        %s389 = smul.addr %s388, 8
        %s390 = scalar_lea.vmem %s0, %s389
      $region56: #{forward.1} parent=51 // pred_fallthru
        _
      // Predicated region
      $region57: #{forward.1} parent=51 // pred_check
        %p391 = pneg %p65
      $region58: #{forward.1} parent=51 // pred_check_branch
        %393 = sbr.rel (%p391) target = $region60
      $region59: #{forward.1} parent=51 // pred_region
        %p394 = scmp.lt.s32.totalorder %s19, 1
        %s395 = scalar_select %p394, %s19, 1
        %s396 = scalar_lea.vmem %s1, %s395
      $region60: #{forward.1} parent=51 // pred_fallthru
        _
      // Predicated region
      $region61: #{forward.1} parent=51 // pred_check
        %p397 = pneg %p91
      $region62: #{forward.1} parent=51 // pred_check_branch
        %399 = sbr.rel (%p397) target = $region64
      $region63: #{forward.1} parent=51 // pred_region
        %p400 = scmp.lt.s32.totalorder %s19, 1
        %s401 = scalar_select %p400, %s19, 1
        %s402 = smul.addr %s401, 8
        %s403 = scalar_lea.vmem %s2, %s402
      $region64: #{forward.1} parent=51 // pred_fallthru
        _
      // Predicated region
      $region65: #{forward.1} parent=51 // pred_check
        %p404 = pneg %p117
      $region66: #{forward.1} parent=51 // pred_check_branch
        %406 = sbr.rel (%p404) target = $region68
      $region67: #{forward.1} parent=51 // pred_region
        %p407 = scmp.lt.s32.totalorder %s19, 1
        %s408 = scalar_select %p407, %s19, 1
        %s409 = smul.addr %s408, 8
        %s410 = scalar_lea.vmem %s3, %s409
      $region68: #{forward.1} parent=51 // pred_fallthru
        _
    $region52: #{forward.1} parent=5 // pred_fallthru
      _
    %p411 = scmp.le.s32.totalorder 1, %s19
    %p412 = scmp.lt.s32.totalorder %s19, 3
    %p413 = pnand %p411, %p412
    %p414 = pneg %p413
    // Predicated region
    $region69: #{forward.1} parent=5 // pred_check
      _
    $region70: #{forward.1} parent=5 // pred_check_branch
      %416 = sbr.rel (%p413) target = $region72
    $region71: #{forward.1} parent=5 // pred_region
      %s417 = ssub.s32 %s19, 1
      %p418 = scmp.lt.s32.totalorder %s24, 1
      %s419 = scalar_select %p418, %s24, 1
      %s420 = smul.addr %s419, 8
      %s421 = scalar_lea.vmem %s0, %s420
      %p422 = pneg %p45
      %p423 = pneg %p42
      %p424 = scmp.lt.s32.totalorder %s24, 1
      %s425 = scalar_select %p424, %s24, 1
      %s426 = scalar_lea.vmem %s1, %s425
      %p427 = pneg %p71
      %p428 = pneg %p68
      %p429 = scmp.lt.s32.totalorder %s24, 1
      %s430 = scalar_select %p429, %s24, 1
      %s431 = smul.addr %s430, 8
      %s432 = scalar_lea.vmem %s2, %s431
      %p433 = pneg %p97
      %p434 = pneg %p94
      %p435 = scmp.lt.s32.totalorder %s24, 1
      %s436 = scalar_select %p435, %s24, 1
      %s437 = smul.addr %s436, 8
      %s438 = scalar_lea.vmem %s3, %s437
      %p439 = pneg %p123
      %p440 = pneg %p120
      %p441 = pneg %p144
      %p442 = pneg %p141
      %p443 = pneg %p165
      %p444 = pneg %p162
      %p445 = pneg %p186
      %p446 = pneg %p183
      %p447 = pneg %p207
      %p448 = pneg %p204
      %p449 = pneg %p228
      %p450 = pneg %p225
      %p451 = pneg %p249
      %p452 = pneg %p246
      %p453 = pneg %p270
      %p454 = pneg %p267
      %p455 = pneg %p291
      %p456 = pneg %p288
      %p457 = pneg %p312
      %p458 = pneg %p309
      %p459 = pneg %p338
      %p460 = pneg %p335
      %p461 = scmp.lt.s32.totalorder %s24, 1
      %s462 = scalar_select %p461, %s24, 1
      %s463 = smul.addr %s462, 2
      %s464 = scalar_lea.vmem %s13, %s463
      %p465 = scmp.lt.s32.totalorder %s24, 1
      %s466 = scalar_select %p465, %s24, 1
      %s467 = smul.addr %s466, 8
      %s468 = scalar_lea.vmem %s0, %s467
      %p469 = scmp.lt.s32.totalorder %s24, 1
      %s470 = scalar_select %p469, %s24, 1
      %s471 = scalar_lea.vmem %s1, %s470
      %p472 = scmp.lt.s32.totalorder %s24, 1
      %s473 = scalar_select %p472, %s24, 1
      %s474 = smul.addr %s473, 8
      %s475 = scalar_lea.vmem %s2, %s474
      %p476 = scmp.lt.s32.totalorder %s24, 1
      %s477 = scalar_select %p476, %s24, 1
      %s478 = smul.addr %s477, 8
      %s479 = scalar_lea.vmem %s3, %s478
      %p480 = scmp.lt.s32.totalorder %s24, 1
      %s481 = scalar_select %p480, %s24, 1
      %s482 = smul.addr %s481, 2
      %s483 = scalar_lea.vmem %s13, %s482
      %v484 = vld [vmem:[%s468] sm:$0xff]
      %v485 = vld [vmem:[%s471] sm:$0x1]
      %v486 = vld [vmem:[%s4] sm:$0xff]
      %v487 = vld [vmem:[%s4 + $0x8] sm:$0xff]
      %v488 = vld [vmem:[%s4 + $0x10] sm:$0xff]
      %v489 = vld [vmem:[%s4 + $0x18] sm:$0xff]
      %v490 = vld [vmem:[%s4 + $0x20] sm:$0xff]
      %v491 = vld [vmem:[%s4 + $0x28] sm:$0xff]
      %v492 = vld [vmem:[%s4 + $0x30] sm:$0xff]
      %v493 = vld [vmem:[%s4 + $0x38] sm:$0xff]
      %v494 = vld [vmem:[%s4 + $0x40] sm:$0xff]
      %v495 = vld [vmem:[%s4 + $0x48] sm:$0xff]
      %v496 = vld [vmem:[%s4 + $0x50] sm:$0xff]
      %v497 = vld [vmem:[%s4 + $0x58] sm:$0xff]
      %v498 = vld [vmem:[%s4 + $0x60] sm:$0xff]
      %v499 = vld [vmem:[%s4 + $0x68] sm:$0xff]
      %v500 = vld [vmem:[%s4 + $0x70] sm:$0xff]
      %v501 = vld [vmem:[%s4 + $0x78] sm:$0xff]
      %v502 = vld [vmem:[%s5] sm:$0x1]
      %v504 = vlaneseq
      %v505 = vshrl.u32 %v504, 7
      %v506 = vsub.s32 0, %v505
      %v507 = vrot.slane %v502, %v506
      %509 = vmatprep.subr.mxu0 0.0
      %510 = vmatpush1.msra.mxu0 %v501
      %511 = vmatprep.subr.mxu0 0.0
      %512 = vmatpush1.msra.mxu0 %v500
      %513 = vmatprep.subr.mxu0 0.0
      %514 = vmatpush1.msra.mxu0 %v499
      %515 = vmatprep.subr.mxu0 0.0
      %516 = vmatpush1.msra.mxu0 %v498
      %517 = vmatprep.subr.mxu0 0.0
      %518 = vmatpush1.msra.mxu0 %v497
      %519 = vmatprep.subr.mxu0 0.0
      %520 = vmatpush1.msra.mxu0 %v496
      %521 = vmatprep.subr.mxu0 0.0
      %522 = vmatpush1.msra.mxu0 %v495
      %523 = vmatprep.subr.mxu0 0.0
      %524 = vmatpush1.msra.mxu0 %v494
      %525 = vmatprep.subr.mxu0 0.0
      %526 = vmatpush1.msra.mxu0 %v493
      %527 = vmatprep.subr.mxu0 0.0
      %528 = vmatpush1.msra.mxu0 %v492
      %529 = vmatprep.subr.mxu0 0.0
      %530 = vmatpush1.msra.mxu0 %v491
      %531 = vmatprep.subr.mxu0 0.0
      %532 = vmatpush1.msra.mxu0 %v490
      %533 = vmatprep.subr.mxu0 0.0
      %534 = vmatpush1.msra.mxu0 %v489
      %535 = vmatprep.subr.mxu0 0.0
      %536 = vmatpush1.msra.mxu0 %v488
      %537 = vmatprep.subr.mxu0 0.0
      %538 = vmatpush1.msra.mxu0 %v487
      %539 = vmatprep.subr.mxu0 0.0
      %540 = vmatpush1.msra.mxu0 %v486
      %541 = vmatprep.subr.mxu0 0.0
      %542 = vmatpush2.msra.mxu0 0.0
      %543 = vmatprep.subr.mxu0 0.0
      %544 = vmatpush2.msra.mxu0 0.0
      %545 = vmatprep.subr.mxu0 0.0
      %546 = vmatpush2.msra.mxu0 0.0
      %547 = vmatprep.subr.mxu0 0.0
      %548 = vmatpush2.msra.mxu0 0.0
      %549 = vmatprep.subr.mxu0 0.0
      %550 = vmatpush2.msra.mxu0 0.0
      %551 = vmatprep.subr.mxu0 0.0
      %552 = vmatpush2.msra.mxu0 0.0
      %553 = vmatprep.subr.mxu0 0.0
      %554 = vmatpush2.msra.mxu0 0.0
      %555 = vmatprep.subr.mxu0 0.0
      %556 = vmatpush2.msra.mxu0 0.0
      %557 = vmatprep.subr.mxu0 0.0
      %558 = vmatpush2.msra.mxu0 0.0
      %559 = vmatprep.subr.mxu0 0.0
      %560 = vmatpush2.msra.mxu0 0.0
      %561 = vmatprep.subr.mxu0 0.0
      %562 = vmatpush2.msra.mxu0 0.0
      %563 = vmatprep.subr.mxu0 0.0
      %564 = vmatpush2.msra.mxu0 0.0
      %565 = vmatprep.subr.mxu0 0.0
      %566 = vmatpush2.msra.mxu0 0.0
      %567 = vmatprep.subr.mxu0 0.0
      %568 = vmatpush2.msra.mxu0 0.0
      %569 = vmatprep.subr.mxu0 0.0
      %570 = vmatpush2.msra.mxu0 0.0
      %571 = vmatprep.subr.mxu0 0.0
      %572 = vmatpush2.msra.mxu0 0.0
      %573 = vmatprep.mubr.f32.mxu0 0.0
      %574 = vmatmul.mubr.f32.gmra.mxu0 %v484
      %v575 = vpop.f32.mrf.mxu0
      %v576 = vadd.f32 %v507, %v575
      %v577 = vpop.f32.mrf.mxu0
      %578 = vdwg.mxu0
      %s579 = scalar_lea.vmem %s4, 256
      %v580 = vld [vmem:[%s579] sm:$0xff]
      %v581 = vld [vmem:[%s579 + $0x8] sm:$0xff]
      %v582 = vld [vmem:[%s579 + $0x10] sm:$0xff]
      %v583 = vld [vmem:[%s579 + $0x18] sm:$0xff]
      %v584 = vld [vmem:[%s579 + $0x20] sm:$0xff]
      %v585 = vld [vmem:[%s579 + $0x28] sm:$0xff]
      %v586 = vld [vmem:[%s579 + $0x30] sm:$0xff]
      %v587 = vld [vmem:[%s579 + $0x38] sm:$0xff]
      %v588 = vld [vmem:[%s579 + $0x40] sm:$0xff]
      %v589 = vld [vmem:[%s579 + $0x48] sm:$0xff]
      %v590 = vld [vmem:[%s579 + $0x50] sm:$0xff]
      %v591 = vld [vmem:[%s579 + $0x58] sm:$0xff]
      %v592 = vld [vmem:[%s579 + $0x60] sm:$0xff]
      %v593 = vld [vmem:[%s579 + $0x68] sm:$0xff]
      %v594 = vld [vmem:[%s579 + $0x70] sm:$0xff]
      %v595 = vld [vmem:[%s579 + $0x78] sm:$0xff]
      %s596 = scalar_lea.vmem %s5, 2
      %v597 = vld [vmem:[%s596] sm:$0x1]
      %v599 = vlaneseq
      %v600 = vshrl.u32 %v599, 7
      %v601 = vsub.s32 0, %v600
      %v602 = vrot.slane %v597, %v601
      %604 = vmatprep.subr.mxu0 0.0
      %605 = vmatpush1.msra.mxu0 %v595
      %606 = vmatprep.subr.mxu0 0.0
      %607 = vmatpush1.msra.mxu0 %v594
      %608 = vmatprep.subr.mxu0 0.0
      %609 = vmatpush1.msra.mxu0 %v593
      %610 = vmatprep.subr.mxu0 0.0
      %611 = vmatpush1.msra.mxu0 %v592
      %612 = vmatprep.subr.mxu0 0.0
      %613 = vmatpush1.msra.mxu0 %v591
      %614 = vmatprep.subr.mxu0 0.0
      %615 = vmatpush1.msra.mxu0 %v590
      %616 = vmatprep.subr.mxu0 0.0
      %617 = vmatpush1.msra.mxu0 %v589
      %618 = vmatprep.subr.mxu0 0.0
      %619 = vmatpush1.msra.mxu0 %v588
      %620 = vmatprep.subr.mxu0 0.0
      %621 = vmatpush1.msra.mxu0 %v587
      %622 = vmatprep.subr.mxu0 0.0
      %623 = vmatpush1.msra.mxu0 %v586
      %624 = vmatprep.subr.mxu0 0.0
      %625 = vmatpush1.msra.mxu0 %v585
      %626 = vmatprep.subr.mxu0 0.0
      %627 = vmatpush1.msra.mxu0 %v584
      %628 = vmatprep.subr.mxu0 0.0
      %629 = vmatpush1.msra.mxu0 %v583
      %630 = vmatprep.subr.mxu0 0.0
      %631 = vmatpush1.msra.mxu0 %v582
      %632 = vmatprep.subr.mxu0 0.0
      %633 = vmatpush1.msra.mxu0 %v581
      %634 = vmatprep.subr.mxu0 0.0
      %635 = vmatpush1.msra.mxu0 %v580
      %636 = vmatprep.subr.mxu0 0.0
      %637 = vmatpush2.msra.mxu0 0.0
      %638 = vmatprep.subr.mxu0 0.0
      %639 = vmatpush2.msra.mxu0 0.0
      %640 = vmatprep.subr.mxu0 0.0
      %641 = vmatpush2.msra.mxu0 0.0
      %642 = vmatprep.subr.mxu0 0.0
      %643 = vmatpush2.msra.mxu0 0.0
      %644 = vmatprep.subr.mxu0 0.0
      %645 = vmatpush2.msra.mxu0 0.0
      %646 = vmatprep.subr.mxu0 0.0
      %647 = vmatpush2.msra.mxu0 0.0
      %648 = vmatprep.subr.mxu0 0.0
      %649 = vmatpush2.msra.mxu0 0.0
      %650 = vmatprep.subr.mxu0 0.0
      %651 = vmatpush2.msra.mxu0 0.0
      %652 = vmatprep.subr.mxu0 0.0
      %653 = vmatpush2.msra.mxu0 0.0
      %654 = vmatprep.subr.mxu0 0.0
      %655 = vmatpush2.msra.mxu0 0.0
      %656 = vmatprep.subr.mxu0 0.0
      %657 = vmatpush2.msra.mxu0 0.0
      %658 = vmatprep.subr.mxu0 0.0
      %659 = vmatpush2.msra.mxu0 0.0
      %660 = vmatprep.subr.mxu0 0.0
      %661 = vmatpush2.msra.mxu0 0.0
      %662 = vmatprep.subr.mxu0 0.0
      %663 = vmatpush2.msra.mxu0 0.0
      %664 = vmatprep.subr.mxu0 0.0
      %665 = vmatpush2.msra.mxu0 0.0
      %666 = vmatprep.subr.mxu0 0.0
      %667 = vmatpush2.msra.mxu0 0.0
      %668 = vmatprep.mubr.f32.mxu0 0.0
      %669 = vmatmul.mubr.f32.gmra.mxu0 %v484
      %v670 = vpop.f32.mrf.mxu0
      %v671 = vadd.f32 %v602, %v670
      %v672 = vpop.f32.mrf.mxu0
      %673 = vdwg.mxu0
      %s674 = scalar_lea.vmem %s4, 512
      %v675 = vld [vmem:[%s674] sm:$0xff]
      %v676 = vld [vmem:[%s674 + $0x8] sm:$0xff]
      %v677 = vld [vmem:[%s674 + $0x10] sm:$0xff]
      %v678 = vld [vmem:[%s674 + $0x18] sm:$0xff]
      %v679 = vld [vmem:[%s674 + $0x20] sm:$0xff]
      %v680 = vld [vmem:[%s674 + $0x28] sm:$0xff]
      %v681 = vld [vmem:[%s674 + $0x30] sm:$0xff]
      %v682 = vld [vmem:[%s674 + $0x38] sm:$0xff]
      %v683 = vld [vmem:[%s674 + $0x40] sm:$0xff]
      %v684 = vld [vmem:[%s674 + $0x48] sm:$0xff]
      %v685 = vld [vmem:[%s674 + $0x50] sm:$0xff]
      %v686 = vld [vmem:[%s674 + $0x58] sm:$0xff]
      %v687 = vld [vmem:[%s674 + $0x60] sm:$0xff]
      %v688 = vld [vmem:[%s674 + $0x68] sm:$0xff]
      %v689 = vld [vmem:[%s674 + $0x70] sm:$0xff]
      %v690 = vld [vmem:[%s674 + $0x78] sm:$0xff]
      %s691 = scalar_lea.vmem %s5, 4
      %v692 = vld [vmem:[%s691] sm:$0x1]
      %v694 = vlaneseq
      %v695 = vshrl.u32 %v694, 7
      %v696 = vsub.s32 0, %v695
      %v697 = vrot.slane %v692, %v696
      %699 = vmatprep.subr.mxu0 0.0
      %700 = vmatpush1.msra.mxu0 %v690
      %701 = vmatprep.subr.mxu0 0.0
      %702 = vmatpush1.msra.mxu0 %v689
      %703 = vmatprep.subr.mxu0 0.0
      %704 = vmatpush1.msra.mxu0 %v688
      %705 = vmatprep.subr.mxu0 0.0
      %706 = vmatpush1.msra.mxu0 %v687
      %707 = vmatprep.subr.mxu0 0.0
      %708 = vmatpush1.msra.mxu0 %v686
      %709 = vmatprep.subr.mxu0 0.0
      %710 = vmatpush1.msra.mxu0 %v685
      %711 = vmatprep.subr.mxu0 0.0
      %712 = vmatpush1.msra.mxu0 %v684
      %713 = vmatprep.subr.mxu0 0.0
      %714 = vmatpush1.msra.mxu0 %v683
      %715 = vmatprep.subr.mxu0 0.0
      %716 = vmatpush1.msra.mxu0 %v682
      %717 = vmatprep.subr.mxu0 0.0
      %718 = vmatpush1.msra.mxu0 %v681
      %719 = vmatprep.subr.mxu0 0.0
      %720 = vmatpush1.msra.mxu0 %v680
      %721 = vmatprep.subr.mxu0 0.0
      %722 = vmatpush1.msra.mxu0 %v679
      %723 = vmatprep.subr.mxu0 0.0
      %724 = vmatpush1.msra.mxu0 %v678
      %725 = vmatprep.subr.mxu0 0.0
      %726 = vmatpush1.msra.mxu0 %v677
      %727 = vmatprep.subr.mxu0 0.0
      %728 = vmatpush1.msra.mxu0 %v676
      %729 = vmatprep.subr.mxu0 0.0
      %730 = vmatpush1.msra.mxu0 %v675
      %731 = vmatprep.subr.mxu0 0.0
      %732 = vmatpush2.msra.mxu0 0.0
      %733 = vmatprep.subr.mxu0 0.0
      %734 = vmatpush2.msra.mxu0 0.0
      %735 = vmatprep.subr.mxu0 0.0
      %736 = vmatpush2.msra.mxu0 0.0
      %737 = vmatprep.subr.mxu0 0.0
      %738 = vmatpush2.msra.mxu0 0.0
      %739 = vmatprep.subr.mxu0 0.0
      %740 = vmatpush2.msra.mxu0 0.0
      %741 = vmatprep.subr.mxu0 0.0
      %742 = vmatpush2.msra.mxu0 0.0
      %743 = vmatprep.subr.mxu0 0.0
      %744 = vmatpush2.msra.mxu0 0.0
      %745 = vmatprep.subr.mxu0 0.0
      %746 = vmatpush2.msra.mxu0 0.0
      %747 = vmatprep.subr.mxu0 0.0
      %748 = vmatpush2.msra.mxu0 0.0
      %749 = vmatprep.subr.mxu0 0.0
      %750 = vmatpush2.msra.mxu0 0.0
      %751 = vmatprep.subr.mxu0 0.0
      %752 = vmatpush2.msra.mxu0 0.0
      %753 = vmatprep.subr.mxu0 0.0
      %754 = vmatpush2.msra.mxu0 0.0
      %755 = vmatprep.subr.mxu0 0.0
      %756 = vmatpush2.msra.mxu0 0.0
      %757 = vmatprep.subr.mxu0 0.0
      %758 = vmatpush2.msra.mxu0 0.0
      %759 = vmatprep.subr.mxu0 0.0
      %760 = vmatpush2.msra.mxu0 0.0
      %761 = vmatprep.subr.mxu0 0.0
      %762 = vmatpush2.msra.mxu0 0.0
      %763 = vmatprep.mubr.f32.mxu0 0.0
      %764 = vmatmul.mubr.f32.gmra.mxu0 %v484
      %v765 = vpop.f32.mrf.mxu0
      %v766 = vadd.f32 %v697, %v765
      %v767 = vpop.f32.mrf.mxu0
      %768 = vdwg.mxu0
      %vm769 = vcmask 523264
      %v771 = vsel %vm769, %v576, 0
      %v774 = vsel %vm769, %v671, 0
      %776 = vmatprep.subr.mxu0 0.0
      %777 = vmatpush1.xpose.msra.mxu0 0.0
      %778 = vmatprep.subr.mxu0 0.0
      %779 = vmatpush1.xpose.msra.mxu0 0.0
      %780 = vmatprep.subr.mxu0 0.0
      %781 = vmatpush1.xpose.msra.mxu0 0.0
      %782 = vmatprep.subr.mxu0 0.0
      %783 = vmatpush1.xpose.msra.mxu0 0.0
      %784 = vmatprep.subr.mxu0 0.0
      %785 = vmatpush1.xpose.msra.mxu0 0.0
      %786 = vmatprep.subr.mxu0 0.0
      %787 = vmatpush1.xpose.msra.mxu0 0.0
      %788 = vmatprep.subr.mxu0 0.0
      %789 = vmatpush1.xpose.msra.mxu0 0.0
      %790 = vmatprep.subr.mxu0 0.0
      %791 = vmatpush1.xpose.msra.mxu0 0.0
      %792 = vmatprep.subr.mxu0 0.0
      %793 = vmatpush1.xpose.msra.mxu0 0.0
      %794 = vmatprep.subr.mxu0 0.0
      %795 = vmatpush1.xpose.msra.mxu0 0.0
      %796 = vmatprep.subr.mxu0 0.0
      %797 = vmatpush1.xpose.msra.mxu0 0.0
      %798 = vmatprep.subr.mxu0 0.0
      %799 = vmatpush1.xpose.msra.mxu0 0.0
      %800 = vmatprep.subr.mxu0 0.0
      %801 = vmatpush1.xpose.msra.mxu0 0.0
      %802 = vmatprep.subr.mxu0 0.0
      %803 = vmatpush1.xpose.msra.mxu0 0.0
      %804 = vmatprep.subr.mxu0 0.0
      %805 = vmatpush1.xpose.msra.mxu0 0.0
      %806 = vmatprep.subr.mxu0 0.0
      %807 = vmatpush1.xpose.msra.mxu0 %v774
      %808 = vmatprep.subr.mxu0 0.0
      %809 = vmatpush2.xpose.msra.mxu0 0.0
      %810 = vmatprep.subr.mxu0 0.0
      %811 = vmatpush2.xpose.msra.mxu0 0.0
      %812 = vmatprep.subr.mxu0 0.0
      %813 = vmatpush2.xpose.msra.mxu0 0.0
      %814 = vmatprep.subr.mxu0 0.0
      %815 = vmatpush2.xpose.msra.mxu0 0.0
      %816 = vmatprep.subr.mxu0 0.0
      %817 = vmatpush2.xpose.msra.mxu0 0.0
      %818 = vmatprep.subr.mxu0 0.0
      %819 = vmatpush2.xpose.msra.mxu0 0.0
      %820 = vmatprep.subr.mxu0 0.0
      %821 = vmatpush2.xpose.msra.mxu0 0.0
      %822 = vmatprep.subr.mxu0 0.0
      %823 = vmatpush2.xpose.msra.mxu0 0.0
      %824 = vmatprep.subr.mxu0 0.0
      %825 = vmatpush2.xpose.msra.mxu0 0.0
      %826 = vmatprep.subr.mxu0 0.0
      %827 = vmatpush2.xpose.msra.mxu0 0.0
      %828 = vmatprep.subr.mxu0 0.0
      %829 = vmatpush2.xpose.msra.mxu0 0.0
      %830 = vmatprep.subr.mxu0 0.0
      %831 = vmatpush2.xpose.msra.mxu0 0.0
      %832 = vmatprep.subr.mxu0 0.0
      %833 = vmatpush2.xpose.msra.mxu0 0.0
      %834 = vmatprep.subr.mxu0 0.0
      %835 = vmatpush2.xpose.msra.mxu0 0.0
      %836 = vmatprep.subr.mxu0 0.0
      %837 = vmatpush2.xpose.msra.mxu0 0.0
      %838 = vmatprep.subr.mxu0 0.0
      %839 = vmatpush2.xpose.msra.mxu0 0.0
      %840 = vmatprep.mubr.f32.mxu0 0.0
      %841 = vmatmul.mubr.f32.gmra.mxu0 %v771
      %v842 = vpop.f32.mrf.mxu0
      %v843 = vadd.f32 0.0, %v842
      %v844 = vpop.f32.mrf.mxu0
      %845 = vdwg.mxu0
      %v846 = vmul.f32 %v843, 0.125
      %v848 = vlaneseq
      %v849 = vshrl.u32 %v848, 7
      %v850 = vsub.s32 0, %v849
      %v851 = vrot.slane %v485, %v850
      %v853 = vadd.f32 %v846, %v851
      %vm854 = vcmask 64512
      %v855 = vsel %vm854, %v853, -inf
      %856 = vmax.xlane.f32.xlu0 %v855
      %v857 = vpop.xlane.xlu0 %856
      %v858 = vsub.f32 %v853, %v857
      %v859 = vmul.f32 %v858, 1.442695
      %v860 = vpow.pop %v859
      %v861 = vsel %vm854, %v860, 0.0
      %862 = vadd.xlane.f32.xlu0 %v861
      %v863 = vpop.xlane.xlu0 %862
      %v864 = vrcp.pop %v863
      %v865 = vmul.f32 %v860, %v864
      %v867 = vsel %vm854, %v865, 0
      %869 = vmatprep.subr.mxu0 0.0
      %870 = vmatpush1.msra.mxu0 0.0
      %871 = vmatprep.subr.mxu0 0.0
      %872 = vmatpush1.msra.mxu0 0.0
      %873 = vmatprep.subr.mxu0 0.0
      %874 = vmatpush1.msra.mxu0 0.0
      %875 = vmatprep.subr.mxu0 0.0
      %876 = vmatpush1.msra.mxu0 0.0
      %877 = vmatprep.subr.mxu0 0.0
      %878 = vmatpush1.msra.mxu0 0.0
      %879 = vmatprep.subr.mxu0 0.0
      %880 = vmatpush1.msra.mxu0 0.0
      %881 = vmatprep.subr.mxu0 0.0
      %882 = vmatpush1.msra.mxu0 0.0
      %883 = vmatprep.subr.mxu0 0.0
      %884 = vmatpush1.msra.mxu0 0.0
      %885 = vmatprep.subr.mxu0 0.0
      %886 = vmatpush1.msra.mxu0 0.0
      %887 = vmatprep.subr.mxu0 0.0
      %888 = vmatpush1.msra.mxu0 0.0
      %889 = vmatprep.subr.mxu0 0.0
      %890 = vmatpush1.msra.mxu0 0.0
      %891 = vmatprep.subr.mxu0 0.0
      %892 = vmatpush1.msra.mxu0 0.0
      %893 = vmatprep.subr.mxu0 0.0
      %894 = vmatpush1.msra.mxu0 0.0
      %895 = vmatprep.subr.mxu0 0.0
      %896 = vmatpush1.msra.mxu0 0.0
      %897 = vmatprep.subr.mxu0 0.0
      %898 = vmatpush1.msra.mxu0 0.0
      %899 = vmatprep.subr.mxu0 0.0
      %900 = vmatpush1.msra.mxu0 %v766
      %901 = vmatprep.subr.mxu0 0.0
      %902 = vmatpush2.msra.mxu0 0.0
      %903 = vmatprep.subr.mxu0 0.0
      %904 = vmatpush2.msra.mxu0 0.0
      %905 = vmatprep.subr.mxu0 0.0
      %906 = vmatpush2.msra.mxu0 0.0
      %907 = vmatprep.subr.mxu0 0.0
      %908 = vmatpush2.msra.mxu0 0.0
      %909 = vmatprep.subr.mxu0 0.0
      %910 = vmatpush2.msra.mxu0 0.0
      %911 = vmatprep.subr.mxu0 0.0
      %912 = vmatpush2.msra.mxu0 0.0
      %913 = vmatprep.subr.mxu0 0.0
      %914 = vmatpush2.msra.mxu0 0.0
      %915 = vmatprep.subr.mxu0 0.0
      %916 = vmatpush2.msra.mxu0 0.0
      %917 = vmatprep.subr.mxu0 0.0
      %918 = vmatpush2.msra.mxu0 0.0
      %919 = vmatprep.subr.mxu0 0.0
      %920 = vmatpush2.msra.mxu0 0.0
      %921 = vmatprep.subr.mxu0 0.0
      %922 = vmatpush2.msra.mxu0 0.0
      %923 = vmatprep.subr.mxu0 0.0
      %924 = vmatpush2.msra.mxu0 0.0
      %925 = vmatprep.subr.mxu0 0.0
      %926 = vmatpush2.msra.mxu0 0.0
      %927 = vmatprep.subr.mxu0 0.0
      %928 = vmatpush2.msra.mxu0 0.0
      %929 = vmatprep.subr.mxu0 0.0
      %930 = vmatpush2.msra.mxu0 0.0
      %931 = vmatprep.subr.mxu0 0.0
      %932 = vmatpush2.msra.mxu0 0.0
      %933 = vmatprep.mubr.f32.mxu0 0.0
      %934 = vmatmul.mubr.f32.gmra.mxu0 %v867
      %v935 = vpop.f32.mrf.mxu0
      %v936 = vadd.f32 0.0, %v935
      %v937 = vpop.f32.mrf.mxu0
      %938 = vdwg.mxu0
      %v939 = vld [vmem:[%s6] sm:$0xff]
      %v940 = vld [vmem:[%s6 + $0x8] sm:$0xff]
      %v941 = vld [vmem:[%s6 + $0x10] sm:$0xff]
      %v942 = vld [vmem:[%s6 + $0x18] sm:$0xff]
      %v943 = vld [vmem:[%s6 + $0x20] sm:$0xff]
      %v944 = vld [vmem:[%s6 + $0x28] sm:$0xff]
      %v945 = vld [vmem:[%s6 + $0x30] sm:$0xff]
      %v946 = vld [vmem:[%s6 + $0x38] sm:$0xff]
      %s947 = scalar_lea.vmem %s4, 128
      %v948 = vld [vmem:[%s947] sm:$0xff]
      %v949 = vld [vmem:[%s947 + $0x8] sm:$0xff]
      %v950 = vld [vmem:[%s947 + $0x10] sm:$0xff]
      %v951 = vld [vmem:[%s947 + $0x18] sm:$0xff]
      %v952 = vld [vmem:[%s947 + $0x20] sm:$0xff]
      %v953 = vld [vmem:[%s947 + $0x28] sm:$0xff]
      %v954 = vld [vmem:[%s947 + $0x30] sm:$0xff]
      %v955 = vld [vmem:[%s947 + $0x38] sm:$0xff]
      %v956 = vld [vmem:[%s947 + $0x40] sm:$0xff]
      %v957 = vld [vmem:[%s947 + $0x48] sm:$0xff]
      %v958 = vld [vmem:[%s947 + $0x50] sm:$0xff]
      %v959 = vld [vmem:[%s947 + $0x58] sm:$0xff]
      %v960 = vld [vmem:[%s947 + $0x60] sm:$0xff]
      %v961 = vld [vmem:[%s947 + $0x68] sm:$0xff]
      %v962 = vld [vmem:[%s947 + $0x70] sm:$0xff]
      %v963 = vld [vmem:[%s947 + $0x78] sm:$0xff]
      %s964 = scalar_lea.vmem %s5, 1
      %v965 = vld [vmem:[%s964] sm:$0x1]
      %v967 = vlaneseq
      %v968 = vshrl.u32 %v967, 7
      %v969 = vsub.s32 0, %v968
      %v970 = vrot.slane %v965, %v969
      %972 = vmatprep.subr.mxu0 0.0
      %973 = vmatpush1.msra.mxu0 %v963
      %974 = vmatprep.subr.mxu0 0.0
      %975 = vmatpush1.msra.mxu0 %v962
      %976 = vmatprep.subr.mxu0 0.0
      %977 = vmatpush1.msra.mxu0 %v961
      %978 = vmatprep.subr.mxu0 0.0
      %979 = vmatpush1.msra.mxu0 %v960
      %980 = vmatprep.subr.mxu0 0.0
      %981 = vmatpush1.msra.mxu0 %v959
      %982 = vmatprep.subr.mxu0 0.0
      %983 = vmatpush1.msra.mxu0 %v958
      %984 = vmatprep.subr.mxu0 0.0
      %985 = vmatpush1.msra.mxu0 %v957
      %986 = vmatprep.subr.mxu0 0.0
      %987 = vmatpush1.msra.mxu0 %v956
      %988 = vmatprep.subr.mxu0 0.0
      %989 = vmatpush1.msra.mxu0 %v955
      %990 = vmatprep.subr.mxu0 0.0
      %991 = vmatpush1.msra.mxu0 %v954
      %992 = vmatprep.subr.mxu0 0.0
      %993 = vmatpush1.msra.mxu0 %v953
      %994 = vmatprep.subr.mxu0 0.0
      %995 = vmatpush1.msra.mxu0 %v952
      %996 = vmatprep.subr.mxu0 0.0
      %997 = vmatpush1.msra.mxu0 %v951
      %998 = vmatprep.subr.mxu0 0.0
      %999 = vmatpush1.msra.mxu0 %v950
      %1000 = vmatprep.subr.mxu0 0.0
      %1001 = vmatpush1.msra.mxu0 %v949
      %1002 = vmatprep.subr.mxu0 0.0
      %1003 = vmatpush1.msra.mxu0 %v948
      %1004 = vmatprep.subr.mxu0 0.0
      %1005 = vmatpush2.msra.mxu0 0.0
      %1006 = vmatprep.subr.mxu0 0.0
      %1007 = vmatpush2.msra.mxu0 0.0
      %1008 = vmatprep.subr.mxu0 0.0
      %1009 = vmatpush2.msra.mxu0 0.0
      %1010 = vmatprep.subr.mxu0 0.0
      %1011 = vmatpush2.msra.mxu0 0.0
      %1012 = vmatprep.subr.mxu0 0.0
      %1013 = vmatpush2.msra.mxu0 0.0
      %1014 = vmatprep.subr.mxu0 0.0
      %1015 = vmatpush2.msra.mxu0 0.0
      %1016 = vmatprep.subr.mxu0 0.0
      %1017 = vmatpush2.msra.mxu0 0.0
      %1018 = vmatprep.subr.mxu0 0.0
      %1019 = vmatpush2.msra.mxu0 0.0
      %1020 = vmatprep.subr.mxu0 0.0
      %1021 = vmatpush2.msra.mxu0 0.0
      %1022 = vmatprep.subr.mxu0 0.0
      %1023 = vmatpush2.msra.mxu0 0.0
      %1024 = vmatprep.subr.mxu0 0.0
      %1025 = vmatpush2.msra.mxu0 0.0
      %1026 = vmatprep.subr.mxu0 0.0
      %1027 = vmatpush2.msra.mxu0 0.0
      %1028 = vmatprep.subr.mxu0 0.0
      %1029 = vmatpush2.msra.mxu0 0.0
      %1030 = vmatprep.subr.mxu0 0.0
      %1031 = vmatpush2.msra.mxu0 0.0
      %1032 = vmatprep.subr.mxu0 0.0
      %1033 = vmatpush2.msra.mxu0 0.0
      %1034 = vmatprep.subr.mxu0 0.0
      %1035 = vmatpush2.msra.mxu0 0.0
      %1036 = vmatprep.mubr.f32.mxu0 0.0
      %1037 = vmatmul.mubr.f32.gmra.mxu0 %v484
      %v1038 = vpop.f32.mrf.mxu0
      %v1039 = vadd.f32 %v970, %v1038
      %v1040 = vpop.f32.mrf.mxu0
      %1041 = vdwg.mxu0
      %s1042 = scalar_lea.vmem %s4, 384
      %v1043 = vld [vmem:[%s1042] sm:$0xff]
      %v1044 = vld [vmem:[%s1042 + $0x8] sm:$0xff]
      %v1045 = vld [vmem:[%s1042 + $0x10] sm:$0xff]
      %v1046 = vld [vmem:[%s1042 + $0x18] sm:$0xff]
      %v1047 = vld [vmem:[%s1042 + $0x20] sm:$0xff]
      %v1048 = vld [vmem:[%s1042 + $0x28] sm:$0xff]
      %v1049 = vld [vmem:[%s1042 + $0x30] sm:$0xff]
      %v1050 = vld [vmem:[%s1042 + $0x38] sm:$0xff]
      %v1051 = vld [vmem:[%s1042 + $0x40] sm:$0xff]
      %v1052 = vld [vmem:[%s1042 + $0x48] sm:$0xff]
      %v1053 = vld [vmem:[%s1042 + $0x50] sm:$0xff]
      %v1054 = vld [vmem:[%s1042 + $0x58] sm:$0xff]
      %v1055 = vld [vmem:[%s1042 + $0x60] sm:$0xff]
      %v1056 = vld [vmem:[%s1042 + $0x68] sm:$0xff]
      %v1057 = vld [vmem:[%s1042 + $0x70] sm:$0xff]
      %v1058 = vld [vmem:[%s1042 + $0x78] sm:$0xff]
      %s1059 = scalar_lea.vmem %s5, 3
      %v1060 = vld [vmem:[%s1059] sm:$0x1]
      %v1062 = vlaneseq
      %v1063 = vshrl.u32 %v1062, 7
      %v1064 = vsub.s32 0, %v1063
      %v1065 = vrot.slane %v1060, %v1064
      %1067 = vmatprep.subr.mxu0 0.0
      %1068 = vmatpush1.msra.mxu0 %v1058
      %1069 = vmatprep.subr.mxu0 0.0
      %1070 = vmatpush1.msra.mxu0 %v1057
      %1071 = vmatprep.subr.mxu0 0.0
      %1072 = vmatpush1.msra.mxu0 %v1056
      %1073 = vmatprep.subr.mxu0 0.0
      %1074 = vmatpush1.msra.mxu0 %v1055
      %1075 = vmatprep.subr.mxu0 0.0
      %1076 = vmatpush1.msra.mxu0 %v1054
      %1077 = vmatprep.subr.mxu0 0.0
      %1078 = vmatpush1.msra.mxu0 %v1053
      %1079 = vmatprep.subr.mxu0 0.0
      %1080 = vmatpush1.msra.mxu0 %v1052
      %1081 = vmatprep.subr.mxu0 0.0
      %1082 = vmatpush1.msra.mxu0 %v1051
      %1083 = vmatprep.subr.mxu0 0.0
      %1084 = vmatpush1.msra.mxu0 %v1050
      %1085 = vmatprep.subr.mxu0 0.0
      %1086 = vmatpush1.msra.mxu0 %v1049
      %1087 = vmatprep.subr.mxu0 0.0
      %1088 = vmatpush1.msra.mxu0 %v1048
      %1089 = vmatprep.subr.mxu0 0.0
      %1090 = vmatpush1.msra.mxu0 %v1047
      %1091 = vmatprep.subr.mxu0 0.0
      %1092 = vmatpush1.msra.mxu0 %v1046
      %1093 = vmatprep.subr.mxu0 0.0
      %1094 = vmatpush1.msra.mxu0 %v1045
      %1095 = vmatprep.subr.mxu0 0.0
      %1096 = vmatpush1.msra.mxu0 %v1044
      %1097 = vmatprep.subr.mxu0 0.0
      %1098 = vmatpush1.msra.mxu0 %v1043
      %1099 = vmatprep.subr.mxu0 0.0
      %1100 = vmatpush2.msra.mxu0 0.0
      %1101 = vmatprep.subr.mxu0 0.0
      %1102 = vmatpush2.msra.mxu0 0.0
      %1103 = vmatprep.subr.mxu0 0.0
      %1104 = vmatpush2.msra.mxu0 0.0
      %1105 = vmatprep.subr.mxu0 0.0
      %1106 = vmatpush2.msra.mxu0 0.0
      %1107 = vmatprep.subr.mxu0 0.0
      %1108 = vmatpush2.msra.mxu0 0.0
      %1109 = vmatprep.subr.mxu0 0.0
      %1110 = vmatpush2.msra.mxu0 0.0
      %1111 = vmatprep.subr.mxu0 0.0
      %1112 = vmatpush2.msra.mxu0 0.0
      %1113 = vmatprep.subr.mxu0 0.0
      %1114 = vmatpush2.msra.mxu0 0.0
      %1115 = vmatprep.subr.mxu0 0.0
      %1116 = vmatpush2.msra.mxu0 0.0
      %1117 = vmatprep.subr.mxu0 0.0
      %1118 = vmatpush2.msra.mxu0 0.0
      %1119 = vmatprep.subr.mxu0 0.0
      %1120 = vmatpush2.msra.mxu0 0.0
      %1121 = vmatprep.subr.mxu0 0.0
      %1122 = vmatpush2.msra.mxu0 0.0
      %1123 = vmatprep.subr.mxu0 0.0
      %1124 = vmatpush2.msra.mxu0 0.0
      %1125 = vmatprep.subr.mxu0 0.0
      %1126 = vmatpush2.msra.mxu0 0.0
      %1127 = vmatprep.subr.mxu0 0.0
      %1128 = vmatpush2.msra.mxu0 0.0
      %1129 = vmatprep.subr.mxu0 0.0
      %1130 = vmatpush2.msra.mxu0 0.0
      %1131 = vmatprep.mubr.f32.mxu0 0.0
      %1132 = vmatmul.mubr.f32.gmra.mxu0 %v484
      %v1133 = vpop.f32.mrf.mxu0
      %v1134 = vadd.f32 %v1065, %v1133
      %v1135 = vpop.f32.mrf.mxu0
      %1136 = vdwg.mxu0
      %s1137 = scalar_lea.vmem %s4, 640
      %v1138 = vld [vmem:[%s1137] sm:$0xff]
      %v1139 = vld [vmem:[%s1137 + $0x8] sm:$0xff]
      %v1140 = vld [vmem:[%s1137 + $0x10] sm:$0xff]
      %v1141 = vld [vmem:[%s1137 + $0x18] sm:$0xff]
      %v1142 = vld [vmem:[%s1137 + $0x20] sm:$0xff]
      %v1143 = vld [vmem:[%s1137 + $0x28] sm:$0xff]
      %v1144 = vld [vmem:[%s1137 + $0x30] sm:$0xff]
      %v1145 = vld [vmem:[%s1137 + $0x38] sm:$0xff]
      %v1146 = vld [vmem:[%s1137 + $0x40] sm:$0xff]
      %v1147 = vld [vmem:[%s1137 + $0x48] sm:$0xff]
      %v1148 = vld [vmem:[%s1137 + $0x50] sm:$0xff]
      %v1149 = vld [vmem:[%s1137 + $0x58] sm:$0xff]
      %v1150 = vld [vmem:[%s1137 + $0x60] sm:$0xff]
      %v1151 = vld [vmem:[%s1137 + $0x68] sm:$0xff]
      %v1152 = vld [vmem:[%s1137 + $0x70] sm:$0xff]
      %v1153 = vld [vmem:[%s1137 + $0x78] sm:$0xff]
      %s1154 = scalar_lea.vmem %s5, 5
      %v1155 = vld [vmem:[%s1154] sm:$0x1]
      %v1157 = vlaneseq
      %v1158 = vshrl.u32 %v1157, 7
      %v1159 = vsub.s32 0, %v1158
      %v1160 = vrot.slane %v1155, %v1159
      %1162 = vmatprep.subr.mxu0 0.0
      %1163 = vmatpush1.msra.mxu0 %v1153
      %1164 = vmatprep.subr.mxu0 0.0
      %1165 = vmatpush1.msra.mxu0 %v1152
      %1166 = vmatprep.subr.mxu0 0.0
      %1167 = vmatpush1.msra.mxu0 %v1151
      %1168 = vmatprep.subr.mxu0 0.0
      %1169 = vmatpush1.msra.mxu0 %v1150
      %1170 = vmatprep.subr.mxu0 0.0
      %1171 = vmatpush1.msra.mxu0 %v1149
      %1172 = vmatprep.subr.mxu0 0.0
      %1173 = vmatpush1.msra.mxu0 %v1148
      %1174 = vmatprep.subr.mxu0 0.0
      %1175 = vmatpush1.msra.mxu0 %v1147
      %1176 = vmatprep.subr.mxu0 0.0
      %1177 = vmatpush1.msra.mxu0 %v1146
      %1178 = vmatprep.subr.mxu0 0.0
      %1179 = vmatpush1.msra.mxu0 %v1145
      %1180 = vmatprep.subr.mxu0 0.0
      %1181 = vmatpush1.msra.mxu0 %v1144
      %1182 = vmatprep.subr.mxu0 0.0
      %1183 = vmatpush1.msra.mxu0 %v1143
      %1184 = vmatprep.subr.mxu0 0.0
      %1185 = vmatpush1.msra.mxu0 %v1142
      %1186 = vmatprep.subr.mxu0 0.0
      %1187 = vmatpush1.msra.mxu0 %v1141
      %1188 = vmatprep.subr.mxu0 0.0
      %1189 = vmatpush1.msra.mxu0 %v1140
      %1190 = vmatprep.subr.mxu0 0.0
      %1191 = vmatpush1.msra.mxu0 %v1139
      %1192 = vmatprep.subr.mxu0 0.0
      %1193 = vmatpush1.msra.mxu0 %v1138
      %1194 = vmatprep.subr.mxu0 0.0
      %1195 = vmatpush2.msra.mxu0 0.0
      %1196 = vmatprep.subr.mxu0 0.0
      %1197 = vmatpush2.msra.mxu0 0.0
      %1198 = vmatprep.subr.mxu0 0.0
      %1199 = vmatpush2.msra.mxu0 0.0
      %1200 = vmatprep.subr.mxu0 0.0
      %1201 = vmatpush2.msra.mxu0 0.0
      %1202 = vmatprep.subr.mxu0 0.0
      %1203 = vmatpush2.msra.mxu0 0.0
      %1204 = vmatprep.subr.mxu0 0.0
      %1205 = vmatpush2.msra.mxu0 0.0
      %1206 = vmatprep.subr.mxu0 0.0
      %1207 = vmatpush2.msra.mxu0 0.0
      %1208 = vmatprep.subr.mxu0 0.0
      %1209 = vmatpush2.msra.mxu0 0.0
      %1210 = vmatprep.subr.mxu0 0.0
      %1211 = vmatpush2.msra.mxu0 0.0
      %1212 = vmatprep.subr.mxu0 0.0
      %1213 = vmatpush2.msra.mxu0 0.0
      %1214 = vmatprep.subr.mxu0 0.0
      %1215 = vmatpush2.msra.mxu0 0.0
      %1216 = vmatprep.subr.mxu0 0.0
      %1217 = vmatpush2.msra.mxu0 0.0
      %1218 = vmatprep.subr.mxu0 0.0
      %1219 = vmatpush2.msra.mxu0 0.0
      %1220 = vmatprep.subr.mxu0 0.0
      %1221 = vmatpush2.msra.mxu0 0.0
      %1222 = vmatprep.subr.mxu0 0.0
      %1223 = vmatpush2.msra.mxu0 0.0
      %1224 = vmatprep.subr.mxu0 0.0
      %1225 = vmatpush2.msra.mxu0 0.0
      %1226 = vmatprep.mubr.f32.mxu0 0.0
      %1227 = vmatmul.mubr.f32.gmra.mxu0 %v484
      %v1228 = vpop.f32.mrf.mxu0
      %v1229 = vadd.f32 %v1160, %v1228
      %v1230 = vpop.f32.mrf.mxu0
      %1231 = vdwg.mxu0
      %v1233 = vsel %vm769, %v1039, 0
      %v1236 = vsel %vm769, %v1134, 0
      %1238 = vmatprep.subr.mxu0 0.0
      %1239 = vmatpush1.xpose.msra.mxu0 0.0
      %1240 = vmatprep.subr.mxu0 0.0
      %1241 = vmatpush1.xpose.msra.mxu0 0.0
      %1242 = vmatprep.subr.mxu0 0.0
      %1243 = vmatpush1.xpose.msra.mxu0 0.0
      %1244 = vmatprep.subr.mxu0 0.0
      %1245 = vmatpush1.xpose.msra.mxu0 0.0
      %1246 = vmatprep.subr.mxu0 0.0
      %1247 = vmatpush1.xpose.msra.mxu0 0.0
      %1248 = vmatprep.subr.mxu0 0.0
      %1249 = vmatpush1.xpose.msra.mxu0 0.0
      %1250 = vmatprep.subr.mxu0 0.0
      %1251 = vmatpush1.xpose.msra.mxu0 0.0
      %1252 = vmatprep.subr.mxu0 0.0
      %1253 = vmatpush1.xpose.msra.mxu0 0.0
      %1254 = vmatprep.subr.mxu0 0.0
      %1255 = vmatpush1.xpose.msra.mxu0 0.0
      %1256 = vmatprep.subr.mxu0 0.0
      %1257 = vmatpush1.xpose.msra.mxu0 0.0
      %1258 = vmatprep.subr.mxu0 0.0
      %1259 = vmatpush1.xpose.msra.mxu0 0.0
      %1260 = vmatprep.subr.mxu0 0.0
      %1261 = vmatpush1.xpose.msra.mxu0 0.0
      %1262 = vmatprep.subr.mxu0 0.0
      %1263 = vmatpush1.xpose.msra.mxu0 0.0
      %1264 = vmatprep.subr.mxu0 0.0
      %1265 = vmatpush1.xpose.msra.mxu0 0.0
      %1266 = vmatprep.subr.mxu0 0.0
      %1267 = vmatpush1.xpose.msra.mxu0 0.0
      %1268 = vmatprep.subr.mxu0 0.0
      %1269 = vmatpush1.xpose.msra.mxu0 %v1236
      %1270 = vmatprep.subr.mxu0 0.0
      %1271 = vmatpush2.xpose.msra.mxu0 0.0
      %1272 = vmatprep.subr.mxu0 0.0
      %1273 = vmatpush2.xpose.msra.mxu0 0.0
      %1274 = vmatprep.subr.mxu0 0.0
      %1275 = vmatpush2.xpose.msra.mxu0 0.0
      %1276 = vmatprep.subr.mxu0 0.0
      %1277 = vmatpush2.xpose.msra.mxu0 0.0
      %1278 = vmatprep.subr.mxu0 0.0
      %1279 = vmatpush2.xpose.msra.mxu0 0.0
      %1280 = vmatprep.subr.mxu0 0.0
      %1281 = vmatpush2.xpose.msra.mxu0 0.0
      %1282 = vmatprep.subr.mxu0 0.0
      %1283 = vmatpush2.xpose.msra.mxu0 0.0
      %1284 = vmatprep.subr.mxu0 0.0
      %1285 = vmatpush2.xpose.msra.mxu0 0.0
      %1286 = vmatprep.subr.mxu0 0.0
      %1287 = vmatpush2.xpose.msra.mxu0 0.0
      %1288 = vmatprep.subr.mxu0 0.0
      %1289 = vmatpush2.xpose.msra.mxu0 0.0
      %1290 = vmatprep.subr.mxu0 0.0
      %1291 = vmatpush2.xpose.msra.mxu0 0.0
      %1292 = vmatprep.subr.mxu0 0.0
      %1293 = vmatpush2.xpose.msra.mxu0 0.0
      %1294 = vmatprep.subr.mxu0 0.0
      %1295 = vmatpush2.xpose.msra.mxu0 0.0
      %1296 = vmatprep.subr.mxu0 0.0
      %1297 = vmatpush2.xpose.msra.mxu0 0.0
      %1298 = vmatprep.subr.mxu0 0.0
      %1299 = vmatpush2.xpose.msra.mxu0 0.0
      %1300 = vmatprep.subr.mxu0 0.0
      %1301 = vmatpush2.xpose.msra.mxu0 0.0
      %1302 = vmatprep.mubr.f32.mxu0 0.0
      %1303 = vmatmul.mubr.f32.gmra.mxu0 %v1233
      %v1304 = vpop.f32.mrf.mxu0
      %v1305 = vadd.f32 0.0, %v1304
      %v1306 = vpop.f32.mrf.mxu0
      %1307 = vdwg.mxu0
      %v1308 = vmul.f32 %v1305, 0.125
      %v1309 = vadd.f32 %v1308, %v851
      %v1310 = vsel %vm854, %v1309, -inf
      %1311 = vmax.xlane.f32.xlu0 %v1310
      %v1312 = vpop.xlane.xlu0 %1311
      %v1313 = vsub.f32 %v1309, %v1312
      %v1314 = vmul.f32 %v1313, 1.442695
      %v1315 = vpow.pop %v1314
      %v1316 = vsel %vm854, %v1315, 0.0
      %1317 = vadd.xlane.f32.xlu0 %v1316
      %v1318 = vpop.xlane.xlu0 %1317
      %v1319 = vrcp.pop %v1318
      %v1320 = vmul.f32 %v1315, %v1319
      %v1322 = vsel %vm854, %v1320, 0
      %1324 = vmatprep.subr.mxu0 0.0
      %1325 = vmatpush1.msra.mxu0 0.0
      %1326 = vmatprep.subr.mxu0 0.0
      %1327 = vmatpush1.msra.mxu0 0.0
      %1328 = vmatprep.subr.mxu0 0.0
      %1329 = vmatpush1.msra.mxu0 0.0
      %1330 = vmatprep.subr.mxu0 0.0
      %1331 = vmatpush1.msra.mxu0 0.0
      %1332 = vmatprep.subr.mxu0 0.0
      %1333 = vmatpush1.msra.mxu0 0.0
      %1334 = vmatprep.subr.mxu0 0.0
      %1335 = vmatpush1.msra.mxu0 0.0
      %1336 = vmatprep.subr.mxu0 0.0
      %1337 = vmatpush1.msra.mxu0 0.0
      %1338 = vmatprep.subr.mxu0 0.0
      %1339 = vmatpush1.msra.mxu0 0.0
      %1340 = vmatprep.subr.mxu0 0.0
      %1341 = vmatpush1.msra.mxu0 0.0
      %1342 = vmatprep.subr.mxu0 0.0
      %1343 = vmatpush1.msra.mxu0 0.0
      %1344 = vmatprep.subr.mxu0 0.0
      %1345 = vmatpush1.msra.mxu0 0.0
      %1346 = vmatprep.subr.mxu0 0.0
      %1347 = vmatpush1.msra.mxu0 0.0
      %1348 = vmatprep.subr.mxu0 0.0
      %1349 = vmatpush1.msra.mxu0 0.0
      %1350 = vmatprep.subr.mxu0 0.0
      %1351 = vmatpush1.msra.mxu0 0.0
      %1352 = vmatprep.subr.mxu0 0.0
      %1353 = vmatpush1.msra.mxu0 0.0
      %1354 = vmatprep.subr.mxu0 0.0
      %1355 = vmatpush1.msra.mxu0 %v1229
      %1356 = vmatprep.subr.mxu0 0.0
      %1357 = vmatpush2.msra.mxu0 0.0
      %1358 = vmatprep.subr.mxu0 0.0
      %1359 = vmatpush2.msra.mxu0 0.0
      %1360 = vmatprep.subr.mxu0 0.0
      %1361 = vmatpush2.msra.mxu0 0.0
      %1362 = vmatprep.subr.mxu0 0.0
      %1363 = vmatpush2.msra.mxu0 0.0
      %1364 = vmatprep.subr.mxu0 0.0
      %1365 = vmatpush2.msra.mxu0 0.0
      %1366 = vmatprep.subr.mxu0 0.0
      %1367 = vmatpush2.msra.mxu0 0.0
      %1368 = vmatprep.subr.mxu0 0.0
      %1369 = vmatpush2.msra.mxu0 0.0
      %1370 = vmatprep.subr.mxu0 0.0
      %1371 = vmatpush2.msra.mxu0 0.0
      %1372 = vmatprep.subr.mxu0 0.0
      %1373 = vmatpush2.msra.mxu0 0.0
      %1374 = vmatprep.subr.mxu0 0.0
      %1375 = vmatpush2.msra.mxu0 0.0
      %1376 = vmatprep.subr.mxu0 0.0
      %1377 = vmatpush2.msra.mxu0 0.0
      %1378 = vmatprep.subr.mxu0 0.0
      %1379 = vmatpush2.msra.mxu0 0.0
      %1380 = vmatprep.subr.mxu0 0.0
      %1381 = vmatpush2.msra.mxu0 0.0
      %1382 = vmatprep.subr.mxu0 0.0
      %1383 = vmatpush2.msra.mxu0 0.0
      %1384 = vmatprep.subr.mxu0 0.0
      %1385 = vmatpush2.msra.mxu0 0.0
      %1386 = vmatprep.subr.mxu0 0.0
      %1387 = vmatpush2.msra.mxu0 0.0
      %1388 = vmatprep.mubr.f32.mxu0 0.0
      %1389 = vmatmul.mubr.f32.gmra.mxu0 %v1322
      %v1390 = vpop.f32.mrf.mxu0
      %v1391 = vadd.f32 0.0, %v1390
      %v1392 = vpop.f32.mrf.mxu0
      %1393 = vdwg.mxu0
      %s1394 = scalar_lea.vmem %s6, 64
      %v1395 = vld [vmem:[%s1394] sm:$0xff]
      %v1396 = vld [vmem:[%s1394 + $0x8] sm:$0xff]
      %v1397 = vld [vmem:[%s1394 + $0x10] sm:$0xff]
      %v1398 = vld [vmem:[%s1394 + $0x18] sm:$0xff]
      %v1399 = vld [vmem:[%s1394 + $0x20] sm:$0xff]
      %v1400 = vld [vmem:[%s1394 + $0x28] sm:$0xff]
      %v1401 = vld [vmem:[%s1394 + $0x30] sm:$0xff]
      %v1402 = vld [vmem:[%s1394 + $0x38] sm:$0xff]
      %v1404 = vsel %vm769, %v1391, 0
      %1406 = vmatprep.subr.mxu0 0.0
      %1407 = vmatpush1.msra.mxu0 0.0
      %1408 = vmatprep.subr.mxu0 0.0
      %1409 = vmatpush1.msra.mxu0 0.0
      %1410 = vmatprep.subr.mxu0 0.0
      %1411 = vmatpush1.msra.mxu0 0.0
      %1412 = vmatprep.subr.mxu0 0.0
      %1413 = vmatpush1.msra.mxu0 0.0
      %1414 = vmatprep.subr.mxu0 0.0
      %1415 = vmatpush1.msra.mxu0 0.0
      %1416 = vmatprep.subr.mxu0 0.0
      %1417 = vmatpush1.msra.mxu0 0.0
      %1418 = vmatprep.subr.mxu0 0.0
      %1419 = vmatpush1.msra.mxu0 0.0
      %1420 = vmatprep.subr.mxu0 0.0
      %1421 = vmatpush1.msra.mxu0 0.0
      %1422 = vmatprep.subr.mxu0 0.0
      %1423 = vmatpush1.msra.mxu0 %v1402
      %1424 = vmatprep.subr.mxu0 0.0
      %1425 = vmatpush1.msra.mxu0 %v1401
      %1426 = vmatprep.subr.mxu0 0.0
      %1427 = vmatpush1.msra.mxu0 %v1400
      %1428 = vmatprep.subr.mxu0 0.0
      %1429 = vmatpush1.msra.mxu0 %v1399
      %1430 = vmatprep.subr.mxu0 0.0
      %1431 = vmatpush1.msra.mxu0 %v1398
      %1432 = vmatprep.subr.mxu0 0.0
      %1433 = vmatpush1.msra.mxu0 %v1397
      %1434 = vmatprep.subr.mxu0 0.0
      %1435 = vmatpush1.msra.mxu0 %v1396
      %1436 = vmatprep.subr.mxu0 0.0
      %1437 = vmatpush1.msra.mxu0 %v1395
      %1438 = vmatprep.subr.mxu0 0.0
      %1439 = vmatpush2.msra.mxu0 0.0
      %1440 = vmatprep.subr.mxu0 0.0
      %1441 = vmatpush2.msra.mxu0 0.0
      %1442 = vmatprep.subr.mxu0 0.0
      %1443 = vmatpush2.msra.mxu0 0.0
      %1444 = vmatprep.subr.mxu0 0.0
      %1445 = vmatpush2.msra.mxu0 0.0
      %1446 = vmatprep.subr.mxu0 0.0
      %1447 = vmatpush2.msra.mxu0 0.0
      %1448 = vmatprep.subr.mxu0 0.0
      %1449 = vmatpush2.msra.mxu0 0.0
      %1450 = vmatprep.subr.mxu0 0.0
      %1451 = vmatpush2.msra.mxu0 0.0
      %1452 = vmatprep.subr.mxu0 0.0
      %1453 = vmatpush2.msra.mxu0 0.0
      %1454 = vmatprep.subr.mxu0 0.0
      %1455 = vmatpush2.msra.mxu0 0.0
      %1456 = vmatprep.subr.mxu0 0.0
      %1457 = vmatpush2.msra.mxu0 0.0
      %1458 = vmatprep.subr.mxu0 0.0
      %1459 = vmatpush2.msra.mxu0 0.0
      %1460 = vmatprep.subr.mxu0 0.0
      %1461 = vmatpush2.msra.mxu0 0.0
      %1462 = vmatprep.subr.mxu0 0.0
      %1463 = vmatpush2.msra.mxu0 0.0
      %1464 = vmatprep.subr.mxu0 0.0
      %1465 = vmatpush2.msra.mxu0 0.0
      %1466 = vmatprep.subr.mxu0 0.0
      %1467 = vmatpush2.msra.mxu0 0.0
      %1468 = vmatprep.subr.mxu0 0.0
      %1469 = vmatpush2.msra.mxu0 0.0
      %1470 = vmatprep.mubr.f32.mxu0 0.0
      %1471 = vmatmul.mubr.f32.gmra.mxu0 %v1404
      %v1472 = vpop.f32.mrf.mxu0
      %v1473 = vadd.f32 0.0, %v1472
      %v1474 = vpop.f32.mrf.mxu0
      %1475 = vdwg.mxu0
      %v1477 = vsel %vm769, %v936, 0
      %1479 = vmatprep.subr.mxu0 0.0
      %1480 = vmatpush1.msra.mxu0 0.0
      %1481 = vmatprep.subr.mxu0 0.0
      %1482 = vmatpush1.msra.mxu0 0.0
      %1483 = vmatprep.subr.mxu0 0.0
      %1484 = vmatpush1.msra.mxu0 0.0
      %1485 = vmatprep.subr.mxu0 0.0
      %1486 = vmatpush1.msra.mxu0 0.0
      %1487 = vmatprep.subr.mxu0 0.0
      %1488 = vmatpush1.msra.mxu0 0.0
      %1489 = vmatprep.subr.mxu0 0.0
      %1490 = vmatpush1.msra.mxu0 0.0
      %1491 = vmatprep.subr.mxu0 0.0
      %1492 = vmatpush1.msra.mxu0 0.0
      %1493 = vmatprep.subr.mxu0 0.0
      %1494 = vmatpush1.msra.mxu0 0.0
      %1495 = vmatprep.subr.mxu0 0.0
      %1496 = vmatpush1.msra.mxu0 %v946
      %1497 = vmatprep.subr.mxu0 0.0
      %1498 = vmatpush1.msra.mxu0 %v945
      %1499 = vmatprep.subr.mxu0 0.0
      %1500 = vmatpush1.msra.mxu0 %v944
      %1501 = vmatprep.subr.mxu0 0.0
      %1502 = vmatpush1.msra.mxu0 %v943
      %1503 = vmatprep.subr.mxu0 0.0
      %1504 = vmatpush1.msra.mxu0 %v942
      %1505 = vmatprep.subr.mxu0 0.0
      %1506 = vmatpush1.msra.mxu0 %v941
      %1507 = vmatprep.subr.mxu0 0.0
      %1508 = vmatpush1.msra.mxu0 %v940
      %1509 = vmatprep.subr.mxu0 0.0
      %1510 = vmatpush1.msra.mxu0 %v939
      %1511 = vmatprep.subr.mxu0 0.0
      %1512 = vmatpush2.msra.mxu0 0.0
      %1513 = vmatprep.subr.mxu0 0.0
      %1514 = vmatpush2.msra.mxu0 0.0
      %1515 = vmatprep.subr.mxu0 0.0
      %1516 = vmatpush2.msra.mxu0 0.0
      %1517 = vmatprep.subr.mxu0 0.0
      %1518 = vmatpush2.msra.mxu0 0.0
      %1519 = vmatprep.subr.mxu0 0.0
      %1520 = vmatpush2.msra.mxu0 0.0
      %1521 = vmatprep.subr.mxu0 0.0
      %1522 = vmatpush2.msra.mxu0 0.0
      %1523 = vmatprep.subr.mxu0 0.0
      %1524 = vmatpush2.msra.mxu0 0.0
      %1525 = vmatprep.subr.mxu0 0.0
      %1526 = vmatpush2.msra.mxu0 0.0
      %1527 = vmatprep.subr.mxu0 0.0
      %1528 = vmatpush2.msra.mxu0 0.0
      %1529 = vmatprep.subr.mxu0 0.0
      %1530 = vmatpush2.msra.mxu0 0.0
      %1531 = vmatprep.subr.mxu0 0.0
      %1532 = vmatpush2.msra.mxu0 0.0
      %1533 = vmatprep.subr.mxu0 0.0
      %1534 = vmatpush2.msra.mxu0 0.0
      %1535 = vmatprep.subr.mxu0 0.0
      %1536 = vmatpush2.msra.mxu0 0.0
      %1537 = vmatprep.subr.mxu0 0.0
      %1538 = vmatpush2.msra.mxu0 0.0
      %1539 = vmatprep.subr.mxu0 0.0
      %1540 = vmatpush2.msra.mxu0 0.0
      %1541 = vmatprep.subr.mxu0 0.0
      %1542 = vmatpush2.msra.mxu0 0.0
      %1543 = vmatprep.mubr.f32.mxu0 0.0
      %1544 = vmatmul.mubr.f32.gmra.mxu0 %v1477
      %v1545 = vpop.f32.mrf.mxu0
      %v1546 = vadd.f32 %v1473, %v1545
      %v1547 = vpop.f32.mrf.mxu0
      %1548 = vdwg.mxu0
      %v1549 = vld [vmem:[%s7] sm:$0x1]
      %v1551 = vlaneseq
      %v1552 = vshrl.u32 %v1551, 7
      %v1553 = vsub.s32 0, %v1552
      %v1554 = vrot.slane %v1549, %v1553
      %v1556 = vadd.f32 %v1546, %v1554
      %v1557 = vadd.f32 %v484, %v1556
      %s1558 = scalar_lea.vmem %s7, 1
      %v1559 = vld [vmem:[%s1558] sm:$0x1]
      %s1560 = scalar_lea.vmem %s7, 2
      %v1561 = vld [vmem:[%s1560] sm:$0x1]
      %1562 = vadd.xlane.f32.xlu0 %v1557
      %v1563 = vpop.xlane.xlu0 %1562
      %v1564 = vrcp.pop 128.0
      %v1565 = vmul.f32 %v1563, %v1564
      %v1566 = vsub.f32 %v1557, %v1565
      %v1567 = vmul.f32 %v1566, %v1566
      %1568 = vadd.xlane.f32.xlu0 %v1567
      %v1569 = vpop.xlane.xlu0 %1568
      %v1570 = vmul.f32 %v1569, %v1564
      %v1571 = vadd.f32 %v1570, 1e-12
      %v1572 = vrsqrt.pop %v1571
      %v1573 = vmul.f32 %v1566, %v1572
      %v1575 = vlaneseq
      %v1576 = vshrl.u32 %v1575, 7
      %v1577 = vsub.s32 0, %v1576
      %v1578 = vrot.slane %v1559, %v1577
      %v1580 = vmul.f32 %v1573, %v1578
      %v1582 = vlaneseq
      %v1583 = vshrl.u32 %v1582, 7
      %v1584 = vsub.s32 0, %v1583
      %v1585 = vrot.slane %v1561, %v1584
      %v1587 = vadd.f32 %v1580, %v1585
      %v1588 = vld [vmem:[%s8] sm:$0xff]
      %v1589 = vld [vmem:[%s8 + $0x8] sm:$0xff]
      %v1590 = vld [vmem:[%s8 + $0x10] sm:$0xff]
      %v1591 = vld [vmem:[%s8 + $0x18] sm:$0xff]
      %v1592 = vld [vmem:[%s8 + $0x20] sm:$0xff]
      %v1593 = vld [vmem:[%s8 + $0x28] sm:$0xff]
      %v1594 = vld [vmem:[%s8 + $0x30] sm:$0xff]
      %v1595 = vld [vmem:[%s8 + $0x38] sm:$0xff]
      %v1596 = vld [vmem:[%s8 + $0x40] sm:$0xff]
      %v1597 = vld [vmem:[%s8 + $0x48] sm:$0xff]
      %v1598 = vld [vmem:[%s8 + $0x50] sm:$0xff]
      %v1599 = vld [vmem:[%s8 + $0x58] sm:$0xff]
      %v1600 = vld [vmem:[%s8 + $0x60] sm:$0xff]
      %v1601 = vld [vmem:[%s8 + $0x68] sm:$0xff]
      %v1602 = vld [vmem:[%s8 + $0x70] sm:$0xff]
      %v1603 = vld [vmem:[%s8 + $0x78] sm:$0xff]
      %v1604 = vld [vmem:[%s8 + $0x80] sm:$0xff]
      %v1605 = vld [vmem:[%s8 + $0x88] sm:$0xff]
      %v1606 = vld [vmem:[%s8 + $0x90] sm:$0xff]
      %v1607 = vld [vmem:[%s8 + $0x98] sm:$0xff]
      %v1608 = vld [vmem:[%s8 + $0xa0] sm:$0xff]
      %v1609 = vld [vmem:[%s8 + $0xa8] sm:$0xff]
      %v1610 = vld [vmem:[%s8 + $0xb0] sm:$0xff]
      %v1611 = vld [vmem:[%s8 + $0xb8] sm:$0xff]
      %v1612 = vld [vmem:[%s8 + $0xc0] sm:$0xff]
      %v1613 = vld [vmem:[%s8 + $0xc8] sm:$0xff]
      %v1614 = vld [vmem:[%s8 + $0xd0] sm:$0xff]
      %v1615 = vld [vmem:[%s8 + $0xd8] sm:$0xff]
      %v1616 = vld [vmem:[%s8 + $0xe0] sm:$0xff]
      %v1617 = vld [vmem:[%s8 + $0xe8] sm:$0xff]
      %v1618 = vld [vmem:[%s8 + $0xf0] sm:$0xff]
      %v1619 = vld [vmem:[%s8 + $0xf8] sm:$0xff]
      %v1620 = vld [vmem:[%s9] sm:$0x3]
      %v1622 = vlaneseq
      %v1623 = vshrl.u32 %v1622, 7
      %v1624 = vsub.s32 0, %v1623
      %v1625 = vrot.slane %v1620, %v1624
      %v1626 = vlaneseq
      %v1627 = vshrl.u32 %v1626, 7
      %v1628 = vsub.s32 1, %v1627
      %v1629 = vrot.slane %v1620, %v1628
      %1632 = vmatprep.subr.mxu0 %v1619
      %1633 = vmatpush1.msra.mxu0 %v1618
      %1634 = vmatprep.subr.mxu0 %v1617
      %1635 = vmatpush1.msra.mxu0 %v1616
      %1636 = vmatprep.subr.mxu0 %v1615
      %1637 = vmatpush1.msra.mxu0 %v1614
      %1638 = vmatprep.subr.mxu0 %v1613
      %1639 = vmatpush1.msra.mxu0 %v1612
      %1640 = vmatprep.subr.mxu0 %v1611
      %1641 = vmatpush1.msra.mxu0 %v1610
      %1642 = vmatprep.subr.mxu0 %v1609
      %1643 = vmatpush1.msra.mxu0 %v1608
      %1644 = vmatprep.subr.mxu0 %v1607
      %1645 = vmatpush1.msra.mxu0 %v1606
      %1646 = vmatprep.subr.mxu0 %v1605
      %1647 = vmatpush1.msra.mxu0 %v1604
      %1648 = vmatprep.subr.mxu0 %v1603
      %1649 = vmatpush1.msra.mxu0 %v1602
      %1650 = vmatprep.subr.mxu0 %v1601
      %1651 = vmatpush1.msra.mxu0 %v1600
      %1652 = vmatprep.subr.mxu0 %v1599
      %1653 = vmatpush1.msra.mxu0 %v1598
      %1654 = vmatprep.subr.mxu0 %v1597
      %1655 = vmatpush1.msra.mxu0 %v1596
      %1656 = vmatprep.subr.mxu0 %v1595
      %1657 = vmatpush1.msra.mxu0 %v1594
      %1658 = vmatprep.subr.mxu0 %v1593
      %1659 = vmatpush1.msra.mxu0 %v1592
      %1660 = vmatprep.subr.mxu0 %v1591
      %1661 = vmatpush1.msra.mxu0 %v1590
      %1662 = vmatprep.subr.mxu0 %v1589
      %1663 = vmatpush1.msra.mxu0 %v1588
      %1664 = vmatprep.subr.mxu0 0.0
      %1665 = vmatpush2.msra.mxu0 0.0
      %1666 = vmatprep.subr.mxu0 0.0
      %1667 = vmatpush2.msra.mxu0 0.0
      %1668 = vmatprep.subr.mxu0 0.0
      %1669 = vmatpush2.msra.mxu0 0.0
      %1670 = vmatprep.subr.mxu0 0.0
      %1671 = vmatpush2.msra.mxu0 0.0
      %1672 = vmatprep.subr.mxu0 0.0
      %1673 = vmatpush2.msra.mxu0 0.0
      %1674 = vmatprep.subr.mxu0 0.0
      %1675 = vmatpush2.msra.mxu0 0.0
      %1676 = vmatprep.subr.mxu0 0.0
      %1677 = vmatpush2.msra.mxu0 0.0
      %1678 = vmatprep.subr.mxu0 0.0
      %1679 = vmatpush2.msra.mxu0 0.0
      %1680 = vmatprep.subr.mxu0 0.0
      %1681 = vmatpush2.msra.mxu0 0.0
      %1682 = vmatprep.subr.mxu0 0.0
      %1683 = vmatpush2.msra.mxu0 0.0
      %1684 = vmatprep.subr.mxu0 0.0
      %1685 = vmatpush2.msra.mxu0 0.0
      %1686 = vmatprep.subr.mxu0 0.0
      %1687 = vmatpush2.msra.mxu0 0.0
      %1688 = vmatprep.subr.mxu0 0.0
      %1689 = vmatpush2.msra.mxu0 0.0
      %1690 = vmatprep.subr.mxu0 0.0
      %1691 = vmatpush2.msra.mxu0 0.0
      %1692 = vmatprep.subr.mxu0 0.0
      %1693 = vmatpush2.msra.mxu0 0.0
      %1694 = vmatprep.subr.mxu0 0.0
      %1695 = vmatpush2.msra.mxu0 0.0
      %1696 = vmatprep.mubr.f32.mxu0 0.0
      %1697 = vmatmul.mubr.f32.gmra.mxu0 %v1587
      %v1698 = vpop.f32.mrf.mxu0
      %v1699 = vadd.f32 %v1625, %v1698
      %v1700 = vpop.f32.mrf.mxu0
      %v1701 = vadd.f32 %v1629, %v1700
      %1702 = vdwg.mxu0
      %v1703 = vmul.f32 %v1699, 0.5
      %v1704 = vmul.f32 %v1701, 0.5
      %v1705 = vmul.f32 %v1699, 0.044715
      %v1706 = vmul.f32 %v1701, 0.044715
      %v1707 = vmul.f32 %v1705, %v1699
      %v1708 = vmul.f32 %v1706, %v1701
      %v1709 = vmul.f32 %v1707, %v1699
      %v1710 = vmul.f32 %v1708, %v1701
      %v1711 = vadd.f32 %v1699, %v1709
      %v1712 = vadd.f32 %v1701, %v1710
      %v1713 = vmul.f32 %v1711, 0.7978846
      %v1714 = vmul.f32 %v1712, 0.7978846
      %v1715 = vtanh.pop %v1713
      %v1716 = vtanh.pop %v1714
      %v1717 = vadd.f32 %v1715, 1.0
      %v1718 = vadd.f32 %v1716, 1.0
      %v1719 = vmul.f32 %v1703, %v1717
      %v1720 = vmul.f32 %v1704, %v1718
      %v1721 = vld [vmem:[%s10] sm:$0xff]
      %v1722 = vld [vmem:[%s10 + $0x8] sm:$0xff]
      %v1723 = vld [vmem:[%s10 + $0x10] sm:$0xff]
      %v1724 = vld [vmem:[%s10 + $0x18] sm:$0xff]
      %v1725 = vld [vmem:[%s10 + $0x20] sm:$0xff]
      %v1726 = vld [vmem:[%s10 + $0x28] sm:$0xff]
      %v1727 = vld [vmem:[%s10 + $0x30] sm:$0xff]
      %v1728 = vld [vmem:[%s10 + $0x38] sm:$0xff]
      %v1729 = vld [vmem:[%s10 + $0x40] sm:$0xff]
      %v1730 = vld [vmem:[%s10 + $0x48] sm:$0xff]
      %v1731 = vld [vmem:[%s10 + $0x50] sm:$0xff]
      %v1732 = vld [vmem:[%s10 + $0x58] sm:$0xff]
      %v1733 = vld [vmem:[%s10 + $0x60] sm:$0xff]
      %v1734 = vld [vmem:[%s10 + $0x68] sm:$0xff]
      %v1735 = vld [vmem:[%s10 + $0x70] sm:$0xff]
      %v1736 = vld [vmem:[%s10 + $0x78] sm:$0xff]
      %v1737 = vld [vmem:[%s10 + $0x80] sm:$0xff]
      %v1738 = vld [vmem:[%s10 + $0x88] sm:$0xff]
      %v1739 = vld [vmem:[%s10 + $0x90] sm:$0xff]
      %v1740 = vld [vmem:[%s10 + $0x98] sm:$0xff]
      %v1741 = vld [vmem:[%s10 + $0xa0] sm:$0xff]
      %v1742 = vld [vmem:[%s10 + $0xa8] sm:$0xff]
      %v1743 = vld [vmem:[%s10 + $0xb0] sm:$0xff]
      %v1744 = vld [vmem:[%s10 + $0xb8] sm:$0xff]
      %v1745 = vld [vmem:[%s10 + $0xc0] sm:$0xff]
      %v1746 = vld [vmem:[%s10 + $0xc8] sm:$0xff]
      %v1747 = vld [vmem:[%s10 + $0xd0] sm:$0xff]
      %v1748 = vld [vmem:[%s10 + $0xd8] sm:$0xff]
      %v1749 = vld [vmem:[%s10 + $0xe0] sm:$0xff]
      %v1750 = vld [vmem:[%s10 + $0xe8] sm:$0xff]
      %v1751 = vld [vmem:[%s10 + $0xf0] sm:$0xff]
      %v1752 = vld [vmem:[%s10 + $0xf8] sm:$0xff]
      %s1753 = scalar_lea.vmem %s7, 3
      %v1754 = vld [vmem:[%s1753] sm:$0x1]
      %v1756 = vlaneseq
      %v1757 = vshrl.u32 %v1756, 7
      %v1758 = vsub.s32 0, %v1757
      %v1759 = vrot.slane %v1754, %v1758
      %1761 = vmatprep.subr.mxu0 0.0
      %1762 = vmatpush1.msra.mxu0 %v1736
      %1763 = vmatprep.subr.mxu0 0.0
      %1764 = vmatpush1.msra.mxu0 %v1735
      %1765 = vmatprep.subr.mxu0 0.0
      %1766 = vmatpush1.msra.mxu0 %v1734
      %1767 = vmatprep.subr.mxu0 0.0
      %1768 = vmatpush1.msra.mxu0 %v1733
      %1769 = vmatprep.subr.mxu0 0.0
      %1770 = vmatpush1.msra.mxu0 %v1732
      %1771 = vmatprep.subr.mxu0 0.0
      %1772 = vmatpush1.msra.mxu0 %v1731
      %1773 = vmatprep.subr.mxu0 0.0
      %1774 = vmatpush1.msra.mxu0 %v1730
      %1775 = vmatprep.subr.mxu0 0.0
      %1776 = vmatpush1.msra.mxu0 %v1729
      %1777 = vmatprep.subr.mxu0 0.0
      %1778 = vmatpush1.msra.mxu0 %v1728
      %1779 = vmatprep.subr.mxu0 0.0
      %1780 = vmatpush1.msra.mxu0 %v1727
      %1781 = vmatprep.subr.mxu0 0.0
      %1782 = vmatpush1.msra.mxu0 %v1726
      %1783 = vmatprep.subr.mxu0 0.0
      %1784 = vmatpush1.msra.mxu0 %v1725
      %1785 = vmatprep.subr.mxu0 0.0
      %1786 = vmatpush1.msra.mxu0 %v1724
      %1787 = vmatprep.subr.mxu0 0.0
      %1788 = vmatpush1.msra.mxu0 %v1723
      %1789 = vmatprep.subr.mxu0 0.0
      %1790 = vmatpush1.msra.mxu0 %v1722
      %1791 = vmatprep.subr.mxu0 0.0
      %1792 = vmatpush1.msra.mxu0 %v1721
      %1793 = vmatprep.subr.mxu0 0.0
      %1794 = vmatpush2.msra.mxu0 %v1752
      %1795 = vmatprep.subr.mxu0 0.0
      %1796 = vmatpush2.msra.mxu0 %v1751
      %1797 = vmatprep.subr.mxu0 0.0
      %1798 = vmatpush2.msra.mxu0 %v1750
      %1799 = vmatprep.subr.mxu0 0.0
      %1800 = vmatpush2.msra.mxu0 %v1749
      %1801 = vmatprep.subr.mxu0 0.0
      %1802 = vmatpush2.msra.mxu0 %v1748
      %1803 = vmatprep.subr.mxu0 0.0
      %1804 = vmatpush2.msra.mxu0 %v1747
      %1805 = vmatprep.subr.mxu0 0.0
      %1806 = vmatpush2.msra.mxu0 %v1746
      %1807 = vmatprep.subr.mxu0 0.0
      %1808 = vmatpush2.msra.mxu0 %v1745
      %1809 = vmatprep.subr.mxu0 0.0
      %1810 = vmatpush2.msra.mxu0 %v1744
      %1811 = vmatprep.subr.mxu0 0.0
      %1812 = vmatpush2.msra.mxu0 %v1743
      %1813 = vmatprep.subr.mxu0 0.0
      %1814 = vmatpush2.msra.mxu0 %v1742
      %1815 = vmatprep.subr.mxu0 0.0
      %1816 = vmatpush2.msra.mxu0 %v1741
      %1817 = vmatprep.subr.mxu0 0.0
      %1818 = vmatpush2.msra.mxu0 %v1740
      %1819 = vmatprep.subr.mxu0 0.0
      %1820 = vmatpush2.msra.mxu0 %v1739
      %1821 = vmatprep.subr.mxu0 0.0
      %1822 = vmatpush2.msra.mxu0 %v1738
      %1823 = vmatprep.subr.mxu0 0.0
      %1824 = vmatpush2.msra.mxu0 %v1737
      %1825 = vmatprep.mubr.f32.mxu0 %v1720
      %1826 = vmatmul.mubr.f32.gmra.mxu0 %v1719
      %v1827 = vpop.f32.mrf.mxu0
      %v1828 = vadd.f32 %v1759, %v1827
      %v1829 = vpop.f32.mrf.mxu0
      %1830 = vdwg.mxu0
      %v1831 = vadd.f32 %v1587, %v1828
      %s1832 = scalar_lea.vmem %s7, 4
      %v1833 = vld [vmem:[%s1832] sm:$0x1]
      %s1834 = scalar_lea.vmem %s7, 5
      %v1835 = vld [vmem:[%s1834] sm:$0x1]
      %1836 = vadd.xlane.f32.xlu0 %v1831
      %v1837 = vpop.xlane.xlu0 %1836
      %v1838 = vmul.f32 %v1837, %v1564
      %v1839 = vsub.f32 %v1831, %v1838
      %v1840 = vmul.f32 %v1839, %v1839
      %1841 = vadd.xlane.f32.xlu0 %v1840
      %v1842 = vpop.xlane.xlu0 %1841
      %v1843 = vmul.f32 %v1842, %v1564
      %v1844 = vadd.f32 %v1843, 1e-12
      %v1845 = vrsqrt.pop %v1844
      %v1846 = vmul.f32 %v1839, %v1845
      %v1848 = vlaneseq
      %v1849 = vshrl.u32 %v1848, 7
      %v1850 = vsub.s32 0, %v1849
      %v1851 = vrot.slane %v1833, %v1850
      %v1853 = vmul.f32 %v1846, %v1851
      %v1855 = vlaneseq
      %v1856 = vshrl.u32 %v1855, 7
      %v1857 = vsub.s32 0, %v1856
      %v1858 = vrot.slane %v1835, %v1857
      %v1860 = vadd.f32 %v1853, %v1858
      %s1861 = scalar_lea.vmem %s4, 768
      %v1862 = vld [vmem:[%s1861] sm:$0xff]
      %v1863 = vld [vmem:[%s1861 + $0x8] sm:$0xff]
      %v1864 = vld [vmem:[%s1861 + $0x10] sm:$0xff]
      %v1865 = vld [vmem:[%s1861 + $0x18] sm:$0xff]
      %v1866 = vld [vmem:[%s1861 + $0x20] sm:$0xff]
      %v1867 = vld [vmem:[%s1861 + $0x28] sm:$0xff]
      %v1868 = vld [vmem:[%s1861 + $0x30] sm:$0xff]
      %v1869 = vld [vmem:[%s1861 + $0x38] sm:$0xff]
      %v1870 = vld [vmem:[%s1861 + $0x40] sm:$0xff]
      %v1871 = vld [vmem:[%s1861 + $0x48] sm:$0xff]
      %v1872 = vld [vmem:[%s1861 + $0x50] sm:$0xff]
      %v1873 = vld [vmem:[%s1861 + $0x58] sm:$0xff]
      %v1874 = vld [vmem:[%s1861 + $0x60] sm:$0xff]
      %v1875 = vld [vmem:[%s1861 + $0x68] sm:$0xff]
      %v1876 = vld [vmem:[%s1861 + $0x70] sm:$0xff]
      %v1877 = vld [vmem:[%s1861 + $0x78] sm:$0xff]
      %s1878 = scalar_lea.vmem %s5, 6
      %v1879 = vld [vmem:[%s1878] sm:$0x1]
      %v1881 = vlaneseq
      %v1882 = vshrl.u32 %v1881, 7
      %v1883 = vsub.s32 0, %v1882
      %v1884 = vrot.slane %v1879, %v1883
      %1886 = vmatprep.subr.mxu0 0.0
      %1887 = vmatpush1.msra.mxu0 %v1877
      %1888 = vmatprep.subr.mxu0 0.0
      %1889 = vmatpush1.msra.mxu0 %v1876
      %1890 = vmatprep.subr.mxu0 0.0
      %1891 = vmatpush1.msra.mxu0 %v1875
      %1892 = vmatprep.subr.mxu0 0.0
      %1893 = vmatpush1.msra.mxu0 %v1874
      %1894 = vmatprep.subr.mxu0 0.0
      %1895 = vmatpush1.msra.mxu0 %v1873
      %1896 = vmatprep.subr.mxu0 0.0
      %1897 = vmatpush1.msra.mxu0 %v1872
      %1898 = vmatprep.subr.mxu0 0.0
      %1899 = vmatpush1.msra.mxu0 %v1871
      %1900 = vmatprep.subr.mxu0 0.0
      %1901 = vmatpush1.msra.mxu0 %v1870
      %1902 = vmatprep.subr.mxu0 0.0
      %1903 = vmatpush1.msra.mxu0 %v1869
      %1904 = vmatprep.subr.mxu0 0.0
      %1905 = vmatpush1.msra.mxu0 %v1868
      %1906 = vmatprep.subr.mxu0 0.0
      %1907 = vmatpush1.msra.mxu0 %v1867
      %1908 = vmatprep.subr.mxu0 0.0
      %1909 = vmatpush1.msra.mxu0 %v1866
      %1910 = vmatprep.subr.mxu0 0.0
      %1911 = vmatpush1.msra.mxu0 %v1865
      %1912 = vmatprep.subr.mxu0 0.0
      %1913 = vmatpush1.msra.mxu0 %v1864
      %1914 = vmatprep.subr.mxu0 0.0
      %1915 = vmatpush1.msra.mxu0 %v1863
      %1916 = vmatprep.subr.mxu0 0.0
      %1917 = vmatpush1.msra.mxu0 %v1862
      %1918 = vmatprep.subr.mxu0 0.0
      %1919 = vmatpush2.msra.mxu0 0.0
      %1920 = vmatprep.subr.mxu0 0.0
      %1921 = vmatpush2.msra.mxu0 0.0
      %1922 = vmatprep.subr.mxu0 0.0
      %1923 = vmatpush2.msra.mxu0 0.0
      %1924 = vmatprep.subr.mxu0 0.0
      %1925 = vmatpush2.msra.mxu0 0.0
      %1926 = vmatprep.subr.mxu0 0.0
      %1927 = vmatpush2.msra.mxu0 0.0
      %1928 = vmatprep.subr.mxu0 0.0
      %1929 = vmatpush2.msra.mxu0 0.0
      %1930 = vmatprep.subr.mxu0 0.0
      %1931 = vmatpush2.msra.mxu0 0.0
      %1932 = vmatprep.subr.mxu0 0.0
      %1933 = vmatpush2.msra.mxu0 0.0
      %1934 = vmatprep.subr.mxu0 0.0
      %1935 = vmatpush2.msra.mxu0 0.0
      %1936 = vmatprep.subr.mxu0 0.0
      %1937 = vmatpush2.msra.mxu0 0.0
      %1938 = vmatprep.subr.mxu0 0.0
      %1939 = vmatpush2.msra.mxu0 0.0
      %1940 = vmatprep.subr.mxu0 0.0
      %1941 = vmatpush2.msra.mxu0 0.0
      %1942 = vmatprep.subr.mxu0 0.0
      %1943 = vmatpush2.msra.mxu0 0.0
      %1944 = vmatprep.subr.mxu0 0.0
      %1945 = vmatpush2.msra.mxu0 0.0
      %1946 = vmatprep.subr.mxu0 0.0
      %1947 = vmatpush2.msra.mxu0 0.0
      %1948 = vmatprep.subr.mxu0 0.0
      %1949 = vmatpush2.msra.mxu0 0.0
      %1950 = vmatprep.mubr.f32.mxu0 0.0
      %1951 = vmatmul.mubr.f32.gmra.mxu0 %v1860
      %v1952 = vpop.f32.mrf.mxu0
      %v1953 = vadd.f32 %v1884, %v1952
      %v1954 = vpop.f32.mrf.mxu0
      %1955 = vdwg.mxu0
      %s1956 = scalar_lea.vmem %s4, 1024
      %v1957 = vld [vmem:[%s1956] sm:$0xff]
      %v1958 = vld [vmem:[%s1956 + $0x8] sm:$0xff]
      %v1959 = vld [vmem:[%s1956 + $0x10] sm:$0xff]
      %v1960 = vld [vmem:[%s1956 + $0x18] sm:$0xff]
      %v1961 = vld [vmem:[%s1956 + $0x20] sm:$0xff]
      %v1962 = vld [vmem:[%s1956 + $0x28] sm:$0xff]
      %v1963 = vld [vmem:[%s1956 + $0x30] sm:$0xff]
      %v1964 = vld [vmem:[%s1956 + $0x38] sm:$0xff]
      %v1965 = vld [vmem:[%s1956 + $0x40] sm:$0xff]
      %v1966 = vld [vmem:[%s1956 + $0x48] sm:$0xff]
      %v1967 = vld [vmem:[%s1956 + $0x50] sm:$0xff]
      %v1968 = vld [vmem:[%s1956 + $0x58] sm:$0xff]
      %v1969 = vld [vmem:[%s1956 + $0x60] sm:$0xff]
      %v1970 = vld [vmem:[%s1956 + $0x68] sm:$0xff]
      %v1971 = vld [vmem:[%s1956 + $0x70] sm:$0xff]
      %v1972 = vld [vmem:[%s1956 + $0x78] sm:$0xff]
      %s1973 = scalar_lea.vmem %s5, 8
      %v1974 = vld [vmem:[%s1973] sm:$0x1]
      %v1976 = vlaneseq
      %v1977 = vshrl.u32 %v1976, 7
      %v1978 = vsub.s32 0, %v1977
      %v1979 = vrot.slane %v1974, %v1978
      %1981 = vmatprep.subr.mxu0 0.0
      %1982 = vmatpush1.msra.mxu0 %v1972
      %1983 = vmatprep.subr.mxu0 0.0
      %1984 = vmatpush1.msra.mxu0 %v1971
      %1985 = vmatprep.subr.mxu0 0.0
      %1986 = vmatpush1.msra.mxu0 %v1970
      %1987 = vmatprep.subr.mxu0 0.0
      %1988 = vmatpush1.msra.mxu0 %v1969
      %1989 = vmatprep.subr.mxu0 0.0
      %1990 = vmatpush1.msra.mxu0 %v1968
      %1991 = vmatprep.subr.mxu0 0.0
      %1992 = vmatpush1.msra.mxu0 %v1967
      %1993 = vmatprep.subr.mxu0 0.0
      %1994 = vmatpush1.msra.mxu0 %v1966
      %1995 = vmatprep.subr.mxu0 0.0
      %1996 = vmatpush1.msra.mxu0 %v1965
      %1997 = vmatprep.subr.mxu0 0.0
      %1998 = vmatpush1.msra.mxu0 %v1964
      %1999 = vmatprep.subr.mxu0 0.0
      %2000 = vmatpush1.msra.mxu0 %v1963
      %2001 = vmatprep.subr.mxu0 0.0
      %2002 = vmatpush1.msra.mxu0 %v1962
      %2003 = vmatprep.subr.mxu0 0.0
      %2004 = vmatpush1.msra.mxu0 %v1961
      %2005 = vmatprep.subr.mxu0 0.0
      %2006 = vmatpush1.msra.mxu0 %v1960
      %2007 = vmatprep.subr.mxu0 0.0
      %2008 = vmatpush1.msra.mxu0 %v1959
      %2009 = vmatprep.subr.mxu0 0.0
      %2010 = vmatpush1.msra.mxu0 %v1958
      %2011 = vmatprep.subr.mxu0 0.0
      %2012 = vmatpush1.msra.mxu0 %v1957
      %2013 = vmatprep.subr.mxu0 0.0
      %2014 = vmatpush2.msra.mxu0 0.0
      %2015 = vmatprep.subr.mxu0 0.0
      %2016 = vmatpush2.msra.mxu0 0.0
      %2017 = vmatprep.subr.mxu0 0.0
      %2018 = vmatpush2.msra.mxu0 0.0
      %2019 = vmatprep.subr.mxu0 0.0
      %2020 = vmatpush2.msra.mxu0 0.0
      %2021 = vmatprep.subr.mxu0 0.0
      %2022 = vmatpush2.msra.mxu0 0.0
      %2023 = vmatprep.subr.mxu0 0.0
      %2024 = vmatpush2.msra.mxu0 0.0
      %2025 = vmatprep.subr.mxu0 0.0
      %2026 = vmatpush2.msra.mxu0 0.0
      %2027 = vmatprep.subr.mxu0 0.0
      %2028 = vmatpush2.msra.mxu0 0.0
      %2029 = vmatprep.subr.mxu0 0.0
      %2030 = vmatpush2.msra.mxu0 0.0
      %2031 = vmatprep.subr.mxu0 0.0
      %2032 = vmatpush2.msra.mxu0 0.0
      %2033 = vmatprep.subr.mxu0 0.0
      %2034 = vmatpush2.msra.mxu0 0.0
      %2035 = vmatprep.subr.mxu0 0.0
      %2036 = vmatpush2.msra.mxu0 0.0
      %2037 = vmatprep.subr.mxu0 0.0
      %2038 = vmatpush2.msra.mxu0 0.0
      %2039 = vmatprep.subr.mxu0 0.0
      %2040 = vmatpush2.msra.mxu0 0.0
      %2041 = vmatprep.subr.mxu0 0.0
      %2042 = vmatpush2.msra.mxu0 0.0
      %2043 = vmatprep.subr.mxu0 0.0
      %2044 = vmatpush2.msra.mxu0 0.0
      %2045 = vmatprep.mubr.f32.mxu0 0.0
      %2046 = vmatmul.mubr.f32.gmra.mxu0 %v1860
      %v2047 = vpop.f32.mrf.mxu0
      %v2048 = vadd.f32 %v1979, %v2047
      %v2049 = vpop.f32.mrf.mxu0
      %2050 = vdwg.mxu0
      %s2051 = scalar_lea.vmem %s4, 1280
      %v2052 = vld [vmem:[%s2051] sm:$0xff]
      %v2053 = vld [vmem:[%s2051 + $0x8] sm:$0xff]
      %v2054 = vld [vmem:[%s2051 + $0x10] sm:$0xff]
      %v2055 = vld [vmem:[%s2051 + $0x18] sm:$0xff]
      %v2056 = vld [vmem:[%s2051 + $0x20] sm:$0xff]
      %v2057 = vld [vmem:[%s2051 + $0x28] sm:$0xff]
      %v2058 = vld [vmem:[%s2051 + $0x30] sm:$0xff]
      %v2059 = vld [vmem:[%s2051 + $0x38] sm:$0xff]
      %v2060 = vld [vmem:[%s2051 + $0x40] sm:$0xff]
      %v2061 = vld [vmem:[%s2051 + $0x48] sm:$0xff]
      %v2062 = vld [vmem:[%s2051 + $0x50] sm:$0xff]
      %v2063 = vld [vmem:[%s2051 + $0x58] sm:$0xff]
      %v2064 = vld [vmem:[%s2051 + $0x60] sm:$0xff]
      %v2065 = vld [vmem:[%s2051 + $0x68] sm:$0xff]
      %v2066 = vld [vmem:[%s2051 + $0x70] sm:$0xff]
      %v2067 = vld [vmem:[%s2051 + $0x78] sm:$0xff]
      %s2068 = scalar_lea.vmem %s5, 10
      %v2069 = vld [vmem:[%s2068] sm:$0x1]
      %v2071 = vlaneseq
      %v2072 = vshrl.u32 %v2071, 7
      %v2073 = vsub.s32 0, %v2072
      %v2074 = vrot.slane %v2069, %v2073
      %2076 = vmatprep.subr.mxu0 0.0
      %2077 = vmatpush1.msra.mxu0 %v2067
      %2078 = vmatprep.subr.mxu0 0.0
      %2079 = vmatpush1.msra.mxu0 %v2066
      %2080 = vmatprep.subr.mxu0 0.0
      %2081 = vmatpush1.msra.mxu0 %v2065
      %2082 = vmatprep.subr.mxu0 0.0
      %2083 = vmatpush1.msra.mxu0 %v2064
      %2084 = vmatprep.subr.mxu0 0.0
      %2085 = vmatpush1.msra.mxu0 %v2063
      %2086 = vmatprep.subr.mxu0 0.0
      %2087 = vmatpush1.msra.mxu0 %v2062
      %2088 = vmatprep.subr.mxu0 0.0
      %2089 = vmatpush1.msra.mxu0 %v2061
      %2090 = vmatprep.subr.mxu0 0.0
      %2091 = vmatpush1.msra.mxu0 %v2060
      %2092 = vmatprep.subr.mxu0 0.0
      %2093 = vmatpush1.msra.mxu0 %v2059
      %2094 = vmatprep.subr.mxu0 0.0
      %2095 = vmatpush1.msra.mxu0 %v2058
      %2096 = vmatprep.subr.mxu0 0.0
      %2097 = vmatpush1.msra.mxu0 %v2057
      %2098 = vmatprep.subr.mxu0 0.0
      %2099 = vmatpush1.msra.mxu0 %v2056
      %2100 = vmatprep.subr.mxu0 0.0
      %2101 = vmatpush1.msra.mxu0 %v2055
      %2102 = vmatprep.subr.mxu0 0.0
      %2103 = vmatpush1.msra.mxu0 %v2054
      %2104 = vmatprep.subr.mxu0 0.0
      %2105 = vmatpush1.msra.mxu0 %v2053
      %2106 = vmatprep.subr.mxu0 0.0
      %2107 = vmatpush1.msra.mxu0 %v2052
      %2108 = vmatprep.subr.mxu0 0.0
      %2109 = vmatpush2.msra.mxu0 0.0
      %2110 = vmatprep.subr.mxu0 0.0
      %2111 = vmatpush2.msra.mxu0 0.0
      %2112 = vmatprep.subr.mxu0 0.0
      %2113 = vmatpush2.msra.mxu0 0.0
      %2114 = vmatprep.subr.mxu0 0.0
      %2115 = vmatpush2.msra.mxu0 0.0
      %2116 = vmatprep.subr.mxu0 0.0
      %2117 = vmatpush2.msra.mxu0 0.0
      %2118 = vmatprep.subr.mxu0 0.0
      %2119 = vmatpush2.msra.mxu0 0.0
      %2120 = vmatprep.subr.mxu0 0.0
      %2121 = vmatpush2.msra.mxu0 0.0
      %2122 = vmatprep.subr.mxu0 0.0
      %2123 = vmatpush2.msra.mxu0 0.0
      %2124 = vmatprep.subr.mxu0 0.0
      %2125 = vmatpush2.msra.mxu0 0.0
      %2126 = vmatprep.subr.mxu0 0.0
      %2127 = vmatpush2.msra.mxu0 0.0
      %2128 = vmatprep.subr.mxu0 0.0
      %2129 = vmatpush2.msra.mxu0 0.0
      %2130 = vmatprep.subr.mxu0 0.0
      %2131 = vmatpush2.msra.mxu0 0.0
      %2132 = vmatprep.subr.mxu0 0.0
      %2133 = vmatpush2.msra.mxu0 0.0
      %2134 = vmatprep.subr.mxu0 0.0
      %2135 = vmatpush2.msra.mxu0 0.0
      %2136 = vmatprep.subr.mxu0 0.0
      %2137 = vmatpush2.msra.mxu0 0.0
      %2138 = vmatprep.subr.mxu0 0.0
      %2139 = vmatpush2.msra.mxu0 0.0
      %2140 = vmatprep.mubr.f32.mxu0 0.0
      %2141 = vmatmul.mubr.f32.gmra.mxu0 %v1860
      %v2142 = vpop.f32.mrf.mxu0
      %v2143 = vadd.f32 %v2074, %v2142
      %v2144 = vpop.f32.mrf.mxu0
      %2145 = vdwg.mxu0
      %v2147 = vsel %vm769, %v1953, 0
      %v2150 = vsel %vm769, %v2048, 0
      %2152 = vmatprep.subr.mxu0 0.0
      %2153 = vmatpush1.xpose.msra.mxu0 0.0
      %2154 = vmatprep.subr.mxu0 0.0
      %2155 = vmatpush1.xpose.msra.mxu0 0.0
      %2156 = vmatprep.subr.mxu0 0.0
      %2157 = vmatpush1.xpose.msra.mxu0 0.0
      %2158 = vmatprep.subr.mxu0 0.0
      %2159 = vmatpush1.xpose.msra.mxu0 0.0
      %2160 = vmatprep.subr.mxu0 0.0
      %2161 = vmatpush1.xpose.msra.mxu0 0.0
      %2162 = vmatprep.subr.mxu0 0.0
      %2163 = vmatpush1.xpose.msra.mxu0 0.0
      %2164 = vmatprep.subr.mxu0 0.0
      %2165 = vmatpush1.xpose.msra.mxu0 0.0
      %2166 = vmatprep.subr.mxu0 0.0
      %2167 = vmatpush1.xpose.msra.mxu0 0.0
      %2168 = vmatprep.subr.mxu0 0.0
      %2169 = vmatpush1.xpose.msra.mxu0 0.0
      %2170 = vmatprep.subr.mxu0 0.0
      %2171 = vmatpush1.xpose.msra.mxu0 0.0
      %2172 = vmatprep.subr.mxu0 0.0
      %2173 = vmatpush1.xpose.msra.mxu0 0.0
      %2174 = vmatprep.subr.mxu0 0.0
      %2175 = vmatpush1.xpose.msra.mxu0 0.0
      %2176 = vmatprep.subr.mxu0 0.0
      %2177 = vmatpush1.xpose.msra.mxu0 0.0
      %2178 = vmatprep.subr.mxu0 0.0
      %2179 = vmatpush1.xpose.msra.mxu0 0.0
      %2180 = vmatprep.subr.mxu0 0.0
      %2181 = vmatpush1.xpose.msra.mxu0 0.0
      %2182 = vmatprep.subr.mxu0 0.0
      %2183 = vmatpush1.xpose.msra.mxu0 %v2150
      %2184 = vmatprep.subr.mxu0 0.0
      %2185 = vmatpush2.xpose.msra.mxu0 0.0
      %2186 = vmatprep.subr.mxu0 0.0
      %2187 = vmatpush2.xpose.msra.mxu0 0.0
      %2188 = vmatprep.subr.mxu0 0.0
      %2189 = vmatpush2.xpose.msra.mxu0 0.0
      %2190 = vmatprep.subr.mxu0 0.0
      %2191 = vmatpush2.xpose.msra.mxu0 0.0
      %2192 = vmatprep.subr.mxu0 0.0
      %2193 = vmatpush2.xpose.msra.mxu0 0.0
      %2194 = vmatprep.subr.mxu0 0.0
      %2195 = vmatpush2.xpose.msra.mxu0 0.0
      %2196 = vmatprep.subr.mxu0 0.0
      %2197 = vmatpush2.xpose.msra.mxu0 0.0
      %2198 = vmatprep.subr.mxu0 0.0
      %2199 = vmatpush2.xpose.msra.mxu0 0.0
      %2200 = vmatprep.subr.mxu0 0.0
      %2201 = vmatpush2.xpose.msra.mxu0 0.0
      %2202 = vmatprep.subr.mxu0 0.0
      %2203 = vmatpush2.xpose.msra.mxu0 0.0
      %2204 = vmatprep.subr.mxu0 0.0
      %2205 = vmatpush2.xpose.msra.mxu0 0.0
      %2206 = vmatprep.subr.mxu0 0.0
      %2207 = vmatpush2.xpose.msra.mxu0 0.0
      %2208 = vmatprep.subr.mxu0 0.0
      %2209 = vmatpush2.xpose.msra.mxu0 0.0
      %2210 = vmatprep.subr.mxu0 0.0
      %2211 = vmatpush2.xpose.msra.mxu0 0.0
      %2212 = vmatprep.subr.mxu0 0.0
      %2213 = vmatpush2.xpose.msra.mxu0 0.0
      %2214 = vmatprep.subr.mxu0 0.0
      %2215 = vmatpush2.xpose.msra.mxu0 0.0
      %2216 = vmatprep.mubr.f32.mxu0 0.0
      %2217 = vmatmul.mubr.f32.gmra.mxu0 %v2147
      %v2218 = vpop.f32.mrf.mxu0
      %v2219 = vadd.f32 0.0, %v2218
      %v2220 = vpop.f32.mrf.mxu0
      %2221 = vdwg.mxu0
      %v2222 = vmul.f32 %v2219, 0.125
      %v2223 = vadd.f32 %v2222, %v851
      %v2224 = vsel %vm854, %v2223, -inf
      %2225 = vmax.xlane.f32.xlu0 %v2224
      %v2226 = vpop.xlane.xlu0 %2225
      %v2227 = vsub.f32 %v2223, %v2226
      %v2228 = vmul.f32 %v2227, 1.442695
      %v2229 = vpow.pop %v2228
      %v2230 = vsel %vm854, %v2229, 0.0
      %2231 = vadd.xlane.f32.xlu0 %v2230
      %v2232 = vpop.xlane.xlu0 %2231
      %v2233 = vrcp.pop %v2232
      %v2234 = vmul.f32 %v2229, %v2233
      %v2236 = vsel %vm854, %v2234, 0
      %2238 = vmatprep.subr.mxu0 0.0
      %2239 = vmatpush1.msra.mxu0 0.0
      %2240 = vmatprep.subr.mxu0 0.0
      %2241 = vmatpush1.msra.mxu0 0.0
      %2242 = vmatprep.subr.mxu0 0.0
      %2243 = vmatpush1.msra.mxu0 0.0
      %2244 = vmatprep.subr.mxu0 0.0
      %2245 = vmatpush1.msra.mxu0 0.0
      %2246 = vmatprep.subr.mxu0 0.0
      %2247 = vmatpush1.msra.mxu0 0.0
      %2248 = vmatprep.subr.mxu0 0.0
      %2249 = vmatpush1.msra.mxu0 0.0
      %2250 = vmatprep.subr.mxu0 0.0
      %2251 = vmatpush1.msra.mxu0 0.0
      %2252 = vmatprep.subr.mxu0 0.0
      %2253 = vmatpush1.msra.mxu0 0.0
      %2254 = vmatprep.subr.mxu0 0.0
      %2255 = vmatpush1.msra.mxu0 0.0
      %2256 = vmatprep.subr.mxu0 0.0
      %2257 = vmatpush1.msra.mxu0 0.0
      %2258 = vmatprep.subr.mxu0 0.0
      %2259 = vmatpush1.msra.mxu0 0.0
      %2260 = vmatprep.subr.mxu0 0.0
      %2261 = vmatpush1.msra.mxu0 0.0
      %2262 = vmatprep.subr.mxu0 0.0
      %2263 = vmatpush1.msra.mxu0 0.0
      %2264 = vmatprep.subr.mxu0 0.0
      %2265 = vmatpush1.msra.mxu0 0.0
      %2266 = vmatprep.subr.mxu0 0.0
      %2267 = vmatpush1.msra.mxu0 0.0
      %2268 = vmatprep.subr.mxu0 0.0
      %2269 = vmatpush1.msra.mxu0 %v2143
      %2270 = vmatprep.subr.mxu0 0.0
      %2271 = vmatpush2.msra.mxu0 0.0
      %2272 = vmatprep.subr.mxu0 0.0
      %2273 = vmatpush2.msra.mxu0 0.0
      %2274 = vmatprep.subr.mxu0 0.0
      %2275 = vmatpush2.msra.mxu0 0.0
      %2276 = vmatprep.subr.mxu0 0.0
      %2277 = vmatpush2.msra.mxu0 0.0
      %2278 = vmatprep.subr.mxu0 0.0
      %2279 = vmatpush2.msra.mxu0 0.0
      %2280 = vmatprep.subr.mxu0 0.0
      %2281 = vmatpush2.msra.mxu0 0.0
      %2282 = vmatprep.subr.mxu0 0.0
      %2283 = vmatpush2.msra.mxu0 0.0
      %2284 = vmatprep.subr.mxu0 0.0
      %2285 = vmatpush2.msra.mxu0 0.0
      %2286 = vmatprep.subr.mxu0 0.0
      %2287 = vmatpush2.msra.mxu0 0.0
      %2288 = vmatprep.subr.mxu0 0.0
      %2289 = vmatpush2.msra.mxu0 0.0
      %2290 = vmatprep.subr.mxu0 0.0
      %2291 = vmatpush2.msra.mxu0 0.0
      %2292 = vmatprep.subr.mxu0 0.0
      %2293 = vmatpush2.msra.mxu0 0.0
      %2294 = vmatprep.subr.mxu0 0.0
      %2295 = vmatpush2.msra.mxu0 0.0
      %2296 = vmatprep.subr.mxu0 0.0
      %2297 = vmatpush2.msra.mxu0 0.0
      %2298 = vmatprep.subr.mxu0 0.0
      %2299 = vmatpush2.msra.mxu0 0.0
      %2300 = vmatprep.subr.mxu0 0.0
      %2301 = vmatpush2.msra.mxu0 0.0
      %2302 = vmatprep.mubr.f32.mxu0 0.0
      %2303 = vmatmul.mubr.f32.gmra.mxu0 %v2236
      %v2304 = vpop.f32.mrf.mxu0
      %v2305 = vadd.f32 0.0, %v2304
      %v2306 = vpop.f32.mrf.mxu0
      %2307 = vdwg.mxu0
      %s2308 = scalar_lea.vmem %s6, 128
      %v2309 = vld [vmem:[%s2308] sm:$0xff]
      %v2310 = vld [vmem:[%s2308 + $0x8] sm:$0xff]
      %v2311 = vld [vmem:[%s2308 + $0x10] sm:$0xff]
      %v2312 = vld [vmem:[%s2308 + $0x18] sm:$0xff]
      %v2313 = vld [vmem:[%s2308 + $0x20] sm:$0xff]
      %v2314 = vld [vmem:[%s2308 + $0x28] sm:$0xff]
      %v2315 = vld [vmem:[%s2308 + $0x30] sm:$0xff]
      %v2316 = vld [vmem:[%s2308 + $0x38] sm:$0xff]
      %s2317 = scalar_lea.vmem %s4, 896
      %v2318 = vld [vmem:[%s2317] sm:$0xff]
      %v2319 = vld [vmem:[%s2317 + $0x8] sm:$0xff]
      %v2320 = vld [vmem:[%s2317 + $0x10] sm:$0xff]
      %v2321 = vld [vmem:[%s2317 + $0x18] sm:$0xff]
      %v2322 = vld [vmem:[%s2317 + $0x20] sm:$0xff]
      %v2323 = vld [vmem:[%s2317 + $0x28] sm:$0xff]
      %v2324 = vld [vmem:[%s2317 + $0x30] sm:$0xff]
      %v2325 = vld [vmem:[%s2317 + $0x38] sm:$0xff]
      %v2326 = vld [vmem:[%s2317 + $0x40] sm:$0xff]
      %v2327 = vld [vmem:[%s2317 + $0x48] sm:$0xff]
      %v2328 = vld [vmem:[%s2317 + $0x50] sm:$0xff]
      %v2329 = vld [vmem:[%s2317 + $0x58] sm:$0xff]
      %v2330 = vld [vmem:[%s2317 + $0x60] sm:$0xff]
      %v2331 = vld [vmem:[%s2317 + $0x68] sm:$0xff]
      %v2332 = vld [vmem:[%s2317 + $0x70] sm:$0xff]
      %v2333 = vld [vmem:[%s2317 + $0x78] sm:$0xff]
      %s2334 = scalar_lea.vmem %s5, 7
      %v2335 = vld [vmem:[%s2334] sm:$0x1]
      %v2337 = vlaneseq
      %v2338 = vshrl.u32 %v2337, 7
      %v2339 = vsub.s32 0, %v2338
      %v2340 = vrot.slane %v2335, %v2339
      %2342 = vmatprep.subr.mxu0 0.0
      %2343 = vmatpush1.msra.mxu0 %v2333
      %2344 = vmatprep.subr.mxu0 0.0
      %2345 = vmatpush1.msra.mxu0 %v2332
      %2346 = vmatprep.subr.mxu0 0.0
      %2347 = vmatpush1.msra.mxu0 %v2331
      %2348 = vmatprep.subr.mxu0 0.0
      %2349 = vmatpush1.msra.mxu0 %v2330
      %2350 = vmatprep.subr.mxu0 0.0
      %2351 = vmatpush1.msra.mxu0 %v2329
      %2352 = vmatprep.subr.mxu0 0.0
      %2353 = vmatpush1.msra.mxu0 %v2328
      %2354 = vmatprep.subr.mxu0 0.0
      %2355 = vmatpush1.msra.mxu0 %v2327
      %2356 = vmatprep.subr.mxu0 0.0
      %2357 = vmatpush1.msra.mxu0 %v2326
      %2358 = vmatprep.subr.mxu0 0.0
      %2359 = vmatpush1.msra.mxu0 %v2325
      %2360 = vmatprep.subr.mxu0 0.0
      %2361 = vmatpush1.msra.mxu0 %v2324
      %2362 = vmatprep.subr.mxu0 0.0
      %2363 = vmatpush1.msra.mxu0 %v2323
      %2364 = vmatprep.subr.mxu0 0.0
      %2365 = vmatpush1.msra.mxu0 %v2322
      %2366 = vmatprep.subr.mxu0 0.0
      %2367 = vmatpush1.msra.mxu0 %v2321
      %2368 = vmatprep.subr.mxu0 0.0
      %2369 = vmatpush1.msra.mxu0 %v2320
      %2370 = vmatprep.subr.mxu0 0.0
      %2371 = vmatpush1.msra.mxu0 %v2319
      %2372 = vmatprep.subr.mxu0 0.0
      %2373 = vmatpush1.msra.mxu0 %v2318
      %2374 = vmatprep.subr.mxu0 0.0
      %2375 = vmatpush2.msra.mxu0 0.0
      %2376 = vmatprep.subr.mxu0 0.0
      %2377 = vmatpush2.msra.mxu0 0.0
      %2378 = vmatprep.subr.mxu0 0.0
      %2379 = vmatpush2.msra.mxu0 0.0
      %2380 = vmatprep.subr.mxu0 0.0
      %2381 = vmatpush2.msra.mxu0 0.0
      %2382 = vmatprep.subr.mxu0 0.0
      %2383 = vmatpush2.msra.mxu0 0.0
      %2384 = vmatprep.subr.mxu0 0.0
      %2385 = vmatpush2.msra.mxu0 0.0
      %2386 = vmatprep.subr.mxu0 0.0
      %2387 = vmatpush2.msra.mxu0 0.0
      %2388 = vmatprep.subr.mxu0 0.0
      %2389 = vmatpush2.msra.mxu0 0.0
      %2390 = vmatprep.subr.mxu0 0.0
      %2391 = vmatpush2.msra.mxu0 0.0
      %2392 = vmatprep.subr.mxu0 0.0
      %2393 = vmatpush2.msra.mxu0 0.0
      %2394 = vmatprep.subr.mxu0 0.0
      %2395 = vmatpush2.msra.mxu0 0.0
      %2396 = vmatprep.subr.mxu0 0.0
      %2397 = vmatpush2.msra.mxu0 0.0
      %2398 = vmatprep.subr.mxu0 0.0
      %2399 = vmatpush2.msra.mxu0 0.0
      %2400 = vmatprep.subr.mxu0 0.0
      %2401 = vmatpush2.msra.mxu0 0.0
      %2402 = vmatprep.subr.mxu0 0.0
      %2403 = vmatpush2.msra.mxu0 0.0
      %2404 = vmatprep.subr.mxu0 0.0
      %2405 = vmatpush2.msra.mxu0 0.0
      %2406 = vmatprep.mubr.f32.mxu0 0.0
      %2407 = vmatmul.mubr.f32.gmra.mxu0 %v1860
      %v2408 = vpop.f32.mrf.mxu0
      %v2409 = vadd.f32 %v2340, %v2408
      %v2410 = vpop.f32.mrf.mxu0
      %2411 = vdwg.mxu0
      %s2412 = scalar_lea.vmem %s4, 1152
      %v2413 = vld [vmem:[%s2412] sm:$0xff]
      %v2414 = vld [vmem:[%s2412 + $0x8] sm:$0xff]
      %v2415 = vld [vmem:[%s2412 + $0x10] sm:$0xff]
      %v2416 = vld [vmem:[%s2412 + $0x18] sm:$0xff]
      %v2417 = vld [vmem:[%s2412 + $0x20] sm:$0xff]
      %v2418 = vld [vmem:[%s2412 + $0x28] sm:$0xff]
      %v2419 = vld [vmem:[%s2412 + $0x30] sm:$0xff]
      %v2420 = vld [vmem:[%s2412 + $0x38] sm:$0xff]
      %v2421 = vld [vmem:[%s2412 + $0x40] sm:$0xff]
      %v2422 = vld [vmem:[%s2412 + $0x48] sm:$0xff]
      %v2423 = vld [vmem:[%s2412 + $0x50] sm:$0xff]
      %v2424 = vld [vmem:[%s2412 + $0x58] sm:$0xff]
      %v2425 = vld [vmem:[%s2412 + $0x60] sm:$0xff]
      %v2426 = vld [vmem:[%s2412 + $0x68] sm:$0xff]
      %v2427 = vld [vmem:[%s2412 + $0x70] sm:$0xff]
      %v2428 = vld [vmem:[%s2412 + $0x78] sm:$0xff]
      %s2429 = scalar_lea.vmem %s5, 9
      %v2430 = vld [vmem:[%s2429] sm:$0x1]
      %v2432 = vlaneseq
      %v2433 = vshrl.u32 %v2432, 7
      %v2434 = vsub.s32 0, %v2433
      %v2435 = vrot.slane %v2430, %v2434
      %2437 = vmatprep.subr.mxu0 0.0
      %2438 = vmatpush1.msra.mxu0 %v2428
      %2439 = vmatprep.subr.mxu0 0.0
      %2440 = vmatpush1.msra.mxu0 %v2427
      %2441 = vmatprep.subr.mxu0 0.0
      %2442 = vmatpush1.msra.mxu0 %v2426
      %2443 = vmatprep.subr.mxu0 0.0
      %2444 = vmatpush1.msra.mxu0 %v2425
      %2445 = vmatprep.subr.mxu0 0.0
      %2446 = vmatpush1.msra.mxu0 %v2424
      %2447 = vmatprep.subr.mxu0 0.0
      %2448 = vmatpush1.msra.mxu0 %v2423
      %2449 = vmatprep.subr.mxu0 0.0
      %2450 = vmatpush1.msra.mxu0 %v2422
      %2451 = vmatprep.subr.mxu0 0.0
      %2452 = vmatpush1.msra.mxu0 %v2421
      %2453 = vmatprep.subr.mxu0 0.0
      %2454 = vmatpush1.msra.mxu0 %v2420
      %2455 = vmatprep.subr.mxu0 0.0
      %2456 = vmatpush1.msra.mxu0 %v2419
      %2457 = vmatprep.subr.mxu0 0.0
      %2458 = vmatpush1.msra.mxu0 %v2418
      %2459 = vmatprep.subr.mxu0 0.0
      %2460 = vmatpush1.msra.mxu0 %v2417
      %2461 = vmatprep.subr.mxu0 0.0
      %2462 = vmatpush1.msra.mxu0 %v2416
      %2463 = vmatprep.subr.mxu0 0.0
      %2464 = vmatpush1.msra.mxu0 %v2415
      %2465 = vmatprep.subr.mxu0 0.0
      %2466 = vmatpush1.msra.mxu0 %v2414
      %2467 = vmatprep.subr.mxu0 0.0
      %2468 = vmatpush1.msra.mxu0 %v2413
      %2469 = vmatprep.subr.mxu0 0.0
      %2470 = vmatpush2.msra.mxu0 0.0
      %2471 = vmatprep.subr.mxu0 0.0
      %2472 = vmatpush2.msra.mxu0 0.0
      %2473 = vmatprep.subr.mxu0 0.0
      %2474 = vmatpush2.msra.mxu0 0.0
      %2475 = vmatprep.subr.mxu0 0.0
      %2476 = vmatpush2.msra.mxu0 0.0
      %2477 = vmatprep.subr.mxu0 0.0
      %2478 = vmatpush2.msra.mxu0 0.0
      %2479 = vmatprep.subr.mxu0 0.0
      %2480 = vmatpush2.msra.mxu0 0.0
      %2481 = vmatprep.subr.mxu0 0.0
      %2482 = vmatpush2.msra.mxu0 0.0
      %2483 = vmatprep.subr.mxu0 0.0
      %2484 = vmatpush2.msra.mxu0 0.0
      %2485 = vmatprep.subr.mxu0 0.0
      %2486 = vmatpush2.msra.mxu0 0.0
      %2487 = vmatprep.subr.mxu0 0.0
      %2488 = vmatpush2.msra.mxu0 0.0
      %2489 = vmatprep.subr.mxu0 0.0
      %2490 = vmatpush2.msra.mxu0 0.0
      %2491 = vmatprep.subr.mxu0 0.0
      %2492 = vmatpush2.msra.mxu0 0.0
      %2493 = vmatprep.subr.mxu0 0.0
      %2494 = vmatpush2.msra.mxu0 0.0
      %2495 = vmatprep.subr.mxu0 0.0
      %2496 = vmatpush2.msra.mxu0 0.0
      %2497 = vmatprep.subr.mxu0 0.0
      %2498 = vmatpush2.msra.mxu0 0.0
      %2499 = vmatprep.subr.mxu0 0.0
      %2500 = vmatpush2.msra.mxu0 0.0
      %2501 = vmatprep.mubr.f32.mxu0 0.0
      %2502 = vmatmul.mubr.f32.gmra.mxu0 %v1860
      %v2503 = vpop.f32.mrf.mxu0
      %v2504 = vadd.f32 %v2435, %v2503
      %v2505 = vpop.f32.mrf.mxu0
      %2506 = vdwg.mxu0
      %s2507 = scalar_lea.vmem %s4, 1408
      %v2508 = vld [vmem:[%s2507] sm:$0xff]
      %v2509 = vld [vmem:[%s2507 + $0x8] sm:$0xff]
      %v2510 = vld [vmem:[%s2507 + $0x10] sm:$0xff]
      %v2511 = vld [vmem:[%s2507 + $0x18] sm:$0xff]
      %v2512 = vld [vmem:[%s2507 + $0x20] sm:$0xff]
      %v2513 = vld [vmem:[%s2507 + $0x28] sm:$0xff]
      %v2514 = vld [vmem:[%s2507 + $0x30] sm:$0xff]
      %v2515 = vld [vmem:[%s2507 + $0x38] sm:$0xff]
      %v2516 = vld [vmem:[%s2507 + $0x40] sm:$0xff]
      %v2517 = vld [vmem:[%s2507 + $0x48] sm:$0xff]
      %v2518 = vld [vmem:[%s2507 + $0x50] sm:$0xff]
      %v2519 = vld [vmem:[%s2507 + $0x58] sm:$0xff]
      %v2520 = vld [vmem:[%s2507 + $0x60] sm:$0xff]
      %v2521 = vld [vmem:[%s2507 + $0x68] sm:$0xff]
      %v2522 = vld [vmem:[%s2507 + $0x70] sm:$0xff]
      %v2523 = vld [vmem:[%s2507 + $0x78] sm:$0xff]
      %s2524 = scalar_lea.vmem %s5, 11
      %v2525 = vld [vmem:[%s2524] sm:$0x1]
      %v2527 = vlaneseq
      %v2528 = vshrl.u32 %v2527, 7
      %v2529 = vsub.s32 0, %v2528
      %v2530 = vrot.slane %v2525, %v2529
      %2532 = vmatprep.subr.mxu0 0.0
      %2533 = vmatpush1.msra.mxu0 %v2523
      %2534 = vmatprep.subr.mxu0 0.0
      %2535 = vmatpush1.msra.mxu0 %v2522
      %2536 = vmatprep.subr.mxu0 0.0
      %2537 = vmatpush1.msra.mxu0 %v2521
      %2538 = vmatprep.subr.mxu0 0.0
      %2539 = vmatpush1.msra.mxu0 %v2520
      %2540 = vmatprep.subr.mxu0 0.0
      %2541 = vmatpush1.msra.mxu0 %v2519
      %2542 = vmatprep.subr.mxu0 0.0
      %2543 = vmatpush1.msra.mxu0 %v2518
      %2544 = vmatprep.subr.mxu0 0.0
      %2545 = vmatpush1.msra.mxu0 %v2517
      %2546 = vmatprep.subr.mxu0 0.0
      %2547 = vmatpush1.msra.mxu0 %v2516
      %2548 = vmatprep.subr.mxu0 0.0
      %2549 = vmatpush1.msra.mxu0 %v2515
      %2550 = vmatprep.subr.mxu0 0.0
      %2551 = vmatpush1.msra.mxu0 %v2514
      %2552 = vmatprep.subr.mxu0 0.0
      %2553 = vmatpush1.msra.mxu0 %v2513
      %2554 = vmatprep.subr.mxu0 0.0
      %2555 = vmatpush1.msra.mxu0 %v2512
      %2556 = vmatprep.subr.mxu0 0.0
      %2557 = vmatpush1.msra.mxu0 %v2511
      %2558 = vmatprep.subr.mxu0 0.0
      %2559 = vmatpush1.msra.mxu0 %v2510
      %2560 = vmatprep.subr.mxu0 0.0
      %2561 = vmatpush1.msra.mxu0 %v2509
      %2562 = vmatprep.subr.mxu0 0.0
      %2563 = vmatpush1.msra.mxu0 %v2508
      %2564 = vmatprep.subr.mxu0 0.0
      %2565 = vmatpush2.msra.mxu0 0.0
      %2566 = vmatprep.subr.mxu0 0.0
      %2567 = vmatpush2.msra.mxu0 0.0
      %2568 = vmatprep.subr.mxu0 0.0
      %2569 = vmatpush2.msra.mxu0 0.0
      %2570 = vmatprep.subr.mxu0 0.0
      %2571 = vmatpush2.msra.mxu0 0.0
      %2572 = vmatprep.subr.mxu0 0.0
      %2573 = vmatpush2.msra.mxu0 0.0
      %2574 = vmatprep.subr.mxu0 0.0
      %2575 = vmatpush2.msra.mxu0 0.0
      %2576 = vmatprep.subr.mxu0 0.0
      %2577 = vmatpush2.msra.mxu0 0.0
      %2578 = vmatprep.subr.mxu0 0.0
      %2579 = vmatpush2.msra.mxu0 0.0
      %2580 = vmatprep.subr.mxu0 0.0
      %2581 = vmatpush2.msra.mxu0 0.0
      %2582 = vmatprep.subr.mxu0 0.0
      %2583 = vmatpush2.msra.mxu0 0.0
      %2584 = vmatprep.subr.mxu0 0.0
      %2585 = vmatpush2.msra.mxu0 0.0
      %2586 = vmatprep.subr.mxu0 0.0
      %2587 = vmatpush2.msra.mxu0 0.0
      %2588 = vmatprep.subr.mxu0 0.0
      %2589 = vmatpush2.msra.mxu0 0.0
      %2590 = vmatprep.subr.mxu0 0.0
      %2591 = vmatpush2.msra.mxu0 0.0
      %2592 = vmatprep.subr.mxu0 0.0
      %2593 = vmatpush2.msra.mxu0 0.0
      %2594 = vmatprep.subr.mxu0 0.0
      %2595 = vmatpush2.msra.mxu0 0.0
      %2596 = vmatprep.mubr.f32.mxu0 0.0
      %2597 = vmatmul.mubr.f32.gmra.mxu0 %v1860
      %v2598 = vpop.f32.mrf.mxu0
      %v2599 = vadd.f32 %v2530, %v2598
      %v2600 = vpop.f32.mrf.mxu0
      %2601 = vdwg.mxu0
      %v2603 = vsel %vm769, %v2409, 0
      %v2606 = vsel %vm769, %v2504, 0
      %2608 = vmatprep.subr.mxu0 0.0
      %2609 = vmatpush1.xpose.msra.mxu0 0.0
      %2610 = vmatprep.subr.mxu0 0.0
      %2611 = vmatpush1.xpose.msra.mxu0 0.0
      %2612 = vmatprep.subr.mxu0 0.0
      %2613 = vmatpush1.xpose.msra.mxu0 0.0
      %2614 = vmatprep.subr.mxu0 0.0
      %2615 = vmatpush1.xpose.msra.mxu0 0.0
      %2616 = vmatprep.subr.mxu0 0.0
      %2617 = vmatpush1.xpose.msra.mxu0 0.0
      %2618 = vmatprep.subr.mxu0 0.0
      %2619 = vmatpush1.xpose.msra.mxu0 0.0
      %2620 = vmatprep.subr.mxu0 0.0
      %2621 = vmatpush1.xpose.msra.mxu0 0.0
      %2622 = vmatprep.subr.mxu0 0.0
      %2623 = vmatpush1.xpose.msra.mxu0 0.0
      %2624 = vmatprep.subr.mxu0 0.0
      %2625 = vmatpush1.xpose.msra.mxu0 0.0
      %2626 = vmatprep.subr.mxu0 0.0
      %2627 = vmatpush1.xpose.msra.mxu0 0.0
      %2628 = vmatprep.subr.mxu0 0.0
      %2629 = vmatpush1.xpose.msra.mxu0 0.0
      %2630 = vmatprep.subr.mxu0 0.0
      %2631 = vmatpush1.xpose.msra.mxu0 0.0
      %2632 = vmatprep.subr.mxu0 0.0
      %2633 = vmatpush1.xpose.msra.mxu0 0.0
      %2634 = vmatprep.subr.mxu0 0.0
      %2635 = vmatpush1.xpose.msra.mxu0 0.0
      %2636 = vmatprep.subr.mxu0 0.0
      %2637 = vmatpush1.xpose.msra.mxu0 0.0
      %2638 = vmatprep.subr.mxu0 0.0
      %2639 = vmatpush1.xpose.msra.mxu0 %v2606
      %2640 = vmatprep.subr.mxu0 0.0
      %2641 = vmatpush2.xpose.msra.mxu0 0.0
      %2642 = vmatprep.subr.mxu0 0.0
      %2643 = vmatpush2.xpose.msra.mxu0 0.0
      %2644 = vmatprep.subr.mxu0 0.0
      %2645 = vmatpush2.xpose.msra.mxu0 0.0
      %2646 = vmatprep.subr.mxu0 0.0
      %2647 = vmatpush2.xpose.msra.mxu0 0.0
      %2648 = vmatprep.subr.mxu0 0.0
      %2649 = vmatpush2.xpose.msra.mxu0 0.0
      %2650 = vmatprep.subr.mxu0 0.0
      %2651 = vmatpush2.xpose.msra.mxu0 0.0
      %2652 = vmatprep.subr.mxu0 0.0
      %2653 = vmatpush2.xpose.msra.mxu0 0.0
      %2654 = vmatprep.subr.mxu0 0.0
      %2655 = vmatpush2.xpose.msra.mxu0 0.0
      %2656 = vmatprep.subr.mxu0 0.0
      %2657 = vmatpush2.xpose.msra.mxu0 0.0
      %2658 = vmatprep.subr.mxu0 0.0
      %2659 = vmatpush2.xpose.msra.mxu0 0.0
      %2660 = vmatprep.subr.mxu0 0.0
      %2661 = vmatpush2.xpose.msra.mxu0 0.0
      %2662 = vmatprep.subr.mxu0 0.0
      %2663 = vmatpush2.xpose.msra.mxu0 0.0
      %2664 = vmatprep.subr.mxu0 0.0
      %2665 = vmatpush2.xpose.msra.mxu0 0.0
      %2666 = vmatprep.subr.mxu0 0.0
      %2667 = vmatpush2.xpose.msra.mxu0 0.0
      %2668 = vmatprep.subr.mxu0 0.0
      %2669 = vmatpush2.xpose.msra.mxu0 0.0
      %2670 = vmatprep.subr.mxu0 0.0
      %2671 = vmatpush2.xpose.msra.mxu0 0.0
      %2672 = vmatprep.mubr.f32.mxu0 0.0
      %2673 = vmatmul.mubr.f32.gmra.mxu0 %v2603
      %v2674 = vpop.f32.mrf.mxu0
      %v2675 = vadd.f32 0.0, %v2674
      %v2676 = vpop.f32.mrf.mxu0
      %2677 = vdwg.mxu0
      %v2678 = vmul.f32 %v2675, 0.125
      %v2679 = vadd.f32 %v2678, %v851
      %v2680 = vsel %vm854, %v2679, -inf
      %2681 = vmax.xlane.f32.xlu0 %v2680
      %v2682 = vpop.xlane.xlu0 %2681
      %v2683 = vsub.f32 %v2679, %v2682
      %v2684 = vmul.f32 %v2683, 1.442695
      %v2685 = vpow.pop %v2684
      %v2686 = vsel %vm854, %v2685, 0.0
      %2687 = vadd.xlane.f32.xlu0 %v2686
      %v2688 = vpop.xlane.xlu0 %2687
      %v2689 = vrcp.pop %v2688
      %v2690 = vmul.f32 %v2685, %v2689
      %v2692 = vsel %vm854, %v2690, 0
      %2694 = vmatprep.subr.mxu0 0.0
      %2695 = vmatpush1.msra.mxu0 0.0
      %2696 = vmatprep.subr.mxu0 0.0
      %2697 = vmatpush1.msra.mxu0 0.0
      %2698 = vmatprep.subr.mxu0 0.0
      %2699 = vmatpush1.msra.mxu0 0.0
      %2700 = vmatprep.subr.mxu0 0.0
      %2701 = vmatpush1.msra.mxu0 0.0
      %2702 = vmatprep.subr.mxu0 0.0
      %2703 = vmatpush1.msra.mxu0 0.0
      %2704 = vmatprep.subr.mxu0 0.0
      %2705 = vmatpush1.msra.mxu0 0.0
      %2706 = vmatprep.subr.mxu0 0.0
      %2707 = vmatpush1.msra.mxu0 0.0
      %2708 = vmatprep.subr.mxu0 0.0
      %2709 = vmatpush1.msra.mxu0 0.0
      %2710 = vmatprep.subr.mxu0 0.0
      %2711 = vmatpush1.msra.mxu0 0.0
      %2712 = vmatprep.subr.mxu0 0.0
      %2713 = vmatpush1.msra.mxu0 0.0
      %2714 = vmatprep.subr.mxu0 0.0
      %2715 = vmatpush1.msra.mxu0 0.0
      %2716 = vmatprep.subr.mxu0 0.0
      %2717 = vmatpush1.msra.mxu0 0.0
      %2718 = vmatprep.subr.mxu0 0.0
      %2719 = vmatpush1.msra.mxu0 0.0
      %2720 = vmatprep.subr.mxu0 0.0
      %2721 = vmatpush1.msra.mxu0 0.0
      %2722 = vmatprep.subr.mxu0 0.0
      %2723 = vmatpush1.msra.mxu0 0.0
      %2724 = vmatprep.subr.mxu0 0.0
      %2725 = vmatpush1.msra.mxu0 %v2599
      %2726 = vmatprep.subr.mxu0 0.0
      %2727 = vmatpush2.msra.mxu0 0.0
      %2728 = vmatprep.subr.mxu0 0.0
      %2729 = vmatpush2.msra.mxu0 0.0
      %2730 = vmatprep.subr.mxu0 0.0
      %2731 = vmatpush2.msra.mxu0 0.0
      %2732 = vmatprep.subr.mxu0 0.0
      %2733 = vmatpush2.msra.mxu0 0.0
      %2734 = vmatprep.subr.mxu0 0.0
      %2735 = vmatpush2.msra.mxu0 0.0
      %2736 = vmatprep.subr.mxu0 0.0
      %2737 = vmatpush2.msra.mxu0 0.0
      %2738 = vmatprep.subr.mxu0 0.0
      %2739 = vmatpush2.msra.mxu0 0.0
      %2740 = vmatprep.subr.mxu0 0.0
      %2741 = vmatpush2.msra.mxu0 0.0
      %2742 = vmatprep.subr.mxu0 0.0
      %2743 = vmatpush2.msra.mxu0 0.0
      %2744 = vmatprep.subr.mxu0 0.0
      %2745 = vmatpush2.msra.mxu0 0.0
      %2746 = vmatprep.subr.mxu0 0.0
      %2747 = vmatpush2.msra.mxu0 0.0
      %2748 = vmatprep.subr.mxu0 0.0
      %2749 = vmatpush2.msra.mxu0 0.0
      %2750 = vmatprep.subr.mxu0 0.0
      %2751 = vmatpush2.msra.mxu0 0.0
      %2752 = vmatprep.subr.mxu0 0.0
      %2753 = vmatpush2.msra.mxu0 0.0
      %2754 = vmatprep.subr.mxu0 0.0
      %2755 = vmatpush2.msra.mxu0 0.0
      %2756 = vmatprep.subr.mxu0 0.0
      %2757 = vmatpush2.msra.mxu0 0.0
      %2758 = vmatprep.mubr.f32.mxu0 0.0
      %2759 = vmatmul.mubr.f32.gmra.mxu0 %v2692
      %v2760 = vpop.f32.mrf.mxu0
      %v2761 = vadd.f32 0.0, %v2760
      %v2762 = vpop.f32.mrf.mxu0
      %2763 = vdwg.mxu0
      %s2764 = scalar_lea.vmem %s6, 192
      %v2765 = vld [vmem:[%s2764] sm:$0xff]
      %v2766 = vld [vmem:[%s2764 + $0x8] sm:$0xff]
      %v2767 = vld [vmem:[%s2764 + $0x10] sm:$0xff]
      %v2768 = vld [vmem:[%s2764 + $0x18] sm:$0xff]
      %v2769 = vld [vmem:[%s2764 + $0x20] sm:$0xff]
      %v2770 = vld [vmem:[%s2764 + $0x28] sm:$0xff]
      %v2771 = vld [vmem:[%s2764 + $0x30] sm:$0xff]
      %v2772 = vld [vmem:[%s2764 + $0x38] sm:$0xff]
      %v2774 = vsel %vm769, %v2761, 0
      %2776 = vmatprep.subr.mxu0 0.0
      %2777 = vmatpush1.msra.mxu0 0.0
      %2778 = vmatprep.subr.mxu0 0.0
      %2779 = vmatpush1.msra.mxu0 0.0
      %2780 = vmatprep.subr.mxu0 0.0
      %2781 = vmatpush1.msra.mxu0 0.0
      %2782 = vmatprep.subr.mxu0 0.0
      %2783 = vmatpush1.msra.mxu0 0.0
      %2784 = vmatprep.subr.mxu0 0.0
      %2785 = vmatpush1.msra.mxu0 0.0
      %2786 = vmatprep.subr.mxu0 0.0
      %2787 = vmatpush1.msra.mxu0 0.0
      %2788 = vmatprep.subr.mxu0 0.0
      %2789 = vmatpush1.msra.mxu0 0.0
      %2790 = vmatprep.subr.mxu0 0.0
      %2791 = vmatpush1.msra.mxu0 0.0
      %2792 = vmatprep.subr.mxu0 0.0
      %2793 = vmatpush1.msra.mxu0 %v2772
      %2794 = vmatprep.subr.mxu0 0.0
      %2795 = vmatpush1.msra.mxu0 %v2771
      %2796 = vmatprep.subr.mxu0 0.0
      %2797 = vmatpush1.msra.mxu0 %v2770
      %2798 = vmatprep.subr.mxu0 0.0
      %2799 = vmatpush1.msra.mxu0 %v2769
      %2800 = vmatprep.subr.mxu0 0.0
      %2801 = vmatpush1.msra.mxu0 %v2768
      %2802 = vmatprep.subr.mxu0 0.0
      %2803 = vmatpush1.msra.mxu0 %v2767
      %2804 = vmatprep.subr.mxu0 0.0
      %2805 = vmatpush1.msra.mxu0 %v2766
      %2806 = vmatprep.subr.mxu0 0.0
      %2807 = vmatpush1.msra.mxu0 %v2765
      %2808 = vmatprep.subr.mxu0 0.0
      %2809 = vmatpush2.msra.mxu0 0.0
      %2810 = vmatprep.subr.mxu0 0.0
      %2811 = vmatpush2.msra.mxu0 0.0
      %2812 = vmatprep.subr.mxu0 0.0
      %2813 = vmatpush2.msra.mxu0 0.0
      %2814 = vmatprep.subr.mxu0 0.0
      %2815 = vmatpush2.msra.mxu0 0.0
      %2816 = vmatprep.subr.mxu0 0.0
      %2817 = vmatpush2.msra.mxu0 0.0
      %2818 = vmatprep.subr.mxu0 0.0
      %2819 = vmatpush2.msra.mxu0 0.0
      %2820 = vmatprep.subr.mxu0 0.0
      %2821 = vmatpush2.msra.mxu0 0.0
      %2822 = vmatprep.subr.mxu0 0.0
      %2823 = vmatpush2.msra.mxu0 0.0
      %2824 = vmatprep.subr.mxu0 0.0
      %2825 = vmatpush2.msra.mxu0 0.0
      %2826 = vmatprep.subr.mxu0 0.0
      %2827 = vmatpush2.msra.mxu0 0.0
      %2828 = vmatprep.subr.mxu0 0.0
      %2829 = vmatpush2.msra.mxu0 0.0
      %2830 = vmatprep.subr.mxu0 0.0
      %2831 = vmatpush2.msra.mxu0 0.0
      %2832 = vmatprep.subr.mxu0 0.0
      %2833 = vmatpush2.msra.mxu0 0.0
      %2834 = vmatprep.subr.mxu0 0.0
      %2835 = vmatpush2.msra.mxu0 0.0
      %2836 = vmatprep.subr.mxu0 0.0
      %2837 = vmatpush2.msra.mxu0 0.0
      %2838 = vmatprep.subr.mxu0 0.0
      %2839 = vmatpush2.msra.mxu0 0.0
      %2840 = vmatprep.mubr.f32.mxu0 0.0
      %2841 = vmatmul.mubr.f32.gmra.mxu0 %v2774
      %v2842 = vpop.f32.mrf.mxu0
      %v2843 = vadd.f32 0.0, %v2842
      %v2844 = vpop.f32.mrf.mxu0
      %2845 = vdwg.mxu0
      %v2847 = vsel %vm769, %v2305, 0
      %2849 = vmatprep.subr.mxu0 0.0
      %2850 = vmatpush1.msra.mxu0 0.0
      %2851 = vmatprep.subr.mxu0 0.0
      %2852 = vmatpush1.msra.mxu0 0.0
      %2853 = vmatprep.subr.mxu0 0.0
      %2854 = vmatpush1.msra.mxu0 0.0
      %2855 = vmatprep.subr.mxu0 0.0
      %2856 = vmatpush1.msra.mxu0 0.0
      %2857 = vmatprep.subr.mxu0 0.0
      %2858 = vmatpush1.msra.mxu0 0.0
      %2859 = vmatprep.subr.mxu0 0.0
      %2860 = vmatpush1.msra.mxu0 0.0
      %2861 = vmatprep.subr.mxu0 0.0
      %2862 = vmatpush1.msra.mxu0 0.0
      %2863 = vmatprep.subr.mxu0 0.0
      %2864 = vmatpush1.msra.mxu0 0.0
      %2865 = vmatprep.subr.mxu0 0.0
      %2866 = vmatpush1.msra.mxu0 %v2316
      %2867 = vmatprep.subr.mxu0 0.0
      %2868 = vmatpush1.msra.mxu0 %v2315
      %2869 = vmatprep.subr.mxu0 0.0
      %2870 = vmatpush1.msra.mxu0 %v2314
      %2871 = vmatprep.subr.mxu0 0.0
      %2872 = vmatpush1.msra.mxu0 %v2313
      %2873 = vmatprep.subr.mxu0 0.0
      %2874 = vmatpush1.msra.mxu0 %v2312
      %2875 = vmatprep.subr.mxu0 0.0
      %2876 = vmatpush1.msra.mxu0 %v2311
      %2877 = vmatprep.subr.mxu0 0.0
      %2878 = vmatpush1.msra.mxu0 %v2310
      %2879 = vmatprep.subr.mxu0 0.0
      %2880 = vmatpush1.msra.mxu0 %v2309
      %2881 = vmatprep.subr.mxu0 0.0
      %2882 = vmatpush2.msra.mxu0 0.0
      %2883 = vmatprep.subr.mxu0 0.0
      %2884 = vmatpush2.msra.mxu0 0.0
      %2885 = vmatprep.subr.mxu0 0.0
      %2886 = vmatpush2.msra.mxu0 0.0
      %2887 = vmatprep.subr.mxu0 0.0
      %2888 = vmatpush2.msra.mxu0 0.0
      %2889 = vmatprep.subr.mxu0 0.0
      %2890 = vmatpush2.msra.mxu0 0.0
      %2891 = vmatprep.subr.mxu0 0.0
      %2892 = vmatpush2.msra.mxu0 0.0
      %2893 = vmatprep.subr.mxu0 0.0
      %2894 = vmatpush2.msra.mxu0 0.0
      %2895 = vmatprep.subr.mxu0 0.0
      %2896 = vmatpush2.msra.mxu0 0.0
      %2897 = vmatprep.subr.mxu0 0.0
      %2898 = vmatpush2.msra.mxu0 0.0
      %2899 = vmatprep.subr.mxu0 0.0
      %2900 = vmatpush2.msra.mxu0 0.0
      %2901 = vmatprep.subr.mxu0 0.0
      %2902 = vmatpush2.msra.mxu0 0.0
      %2903 = vmatprep.subr.mxu0 0.0
      %2904 = vmatpush2.msra.mxu0 0.0
      %2905 = vmatprep.subr.mxu0 0.0
      %2906 = vmatpush2.msra.mxu0 0.0
      %2907 = vmatprep.subr.mxu0 0.0
      %2908 = vmatpush2.msra.mxu0 0.0
      %2909 = vmatprep.subr.mxu0 0.0
      %2910 = vmatpush2.msra.mxu0 0.0
      %2911 = vmatprep.subr.mxu0 0.0
      %2912 = vmatpush2.msra.mxu0 0.0
      %2913 = vmatprep.mubr.f32.mxu0 0.0
      %2914 = vmatmul.mubr.f32.gmra.mxu0 %v2847
      %v2915 = vpop.f32.mrf.mxu0
      %v2916 = vadd.f32 %v2843, %v2915
      %v2917 = vpop.f32.mrf.mxu0
      %2918 = vdwg.mxu0
      %s2919 = scalar_lea.vmem %s7, 6
      %v2920 = vld [vmem:[%s2919] sm:$0x1]
      %v2922 = vlaneseq
      %v2923 = vshrl.u32 %v2922, 7
      %v2924 = vsub.s32 0, %v2923
      %v2925 = vrot.slane %v2920, %v2924
      %v2927 = vadd.f32 %v2916, %v2925
      %v2928 = vadd.f32 %v1860, %v2927
      %s2929 = scalar_lea.vmem %s7, 7
      %v2930 = vld [vmem:[%s2929] sm:$0x1]
      %s2931 = scalar_lea.vmem %s7, 8
      %v2932 = vld [vmem:[%s2931] sm:$0x1]
      %2933 = vadd.xlane.f32.xlu0 %v2928
      %v2934 = vpop.xlane.xlu0 %2933
      %v2935 = vmul.f32 %v2934, %v1564
      %v2936 = vsub.f32 %v2928, %v2935
      %v2937 = vmul.f32 %v2936, %v2936
      %2938 = vadd.xlane.f32.xlu0 %v2937
      %v2939 = vpop.xlane.xlu0 %2938
      %v2940 = vmul.f32 %v2939, %v1564
      %v2941 = vadd.f32 %v2940, 1e-12
      %v2942 = vrsqrt.pop %v2941
      %v2943 = vmul.f32 %v2936, %v2942
      %v2945 = vlaneseq
      %v2946 = vshrl.u32 %v2945, 7
      %v2947 = vsub.s32 0, %v2946
      %v2948 = vrot.slane %v2930, %v2947
      %v2950 = vmul.f32 %v2943, %v2948
      %v2952 = vlaneseq
      %v2953 = vshrl.u32 %v2952, 7
      %v2954 = vsub.s32 0, %v2953
      %v2955 = vrot.slane %v2932, %v2954
      %v2957 = vadd.f32 %v2950, %v2955
      %s2958 = scalar_lea.vmem %s8, 256
      %v2959 = vld [vmem:[%s2958] sm:$0xff]
      %v2960 = vld [vmem:[%s2958 + $0x8] sm:$0xff]
      %v2961 = vld [vmem:[%s2958 + $0x10] sm:$0xff]
      %v2962 = vld [vmem:[%s2958 + $0x18] sm:$0xff]
      %v2963 = vld [vmem:[%s2958 + $0x20] sm:$0xff]
      %v2964 = vld [vmem:[%s2958 + $0x28] sm:$0xff]
      %v2965 = vld [vmem:[%s2958 + $0x30] sm:$0xff]
      %v2966 = vld [vmem:[%s2958 + $0x38] sm:$0xff]
      %v2967 = vld [vmem:[%s2958 + $0x40] sm:$0xff]
      %v2968 = vld [vmem:[%s2958 + $0x48] sm:$0xff]
      %v2969 = vld [vmem:[%s2958 + $0x50] sm:$0xff]
      %v2970 = vld [vmem:[%s2958 + $0x58] sm:$0xff]
      %v2971 = vld [vmem:[%s2958 + $0x60] sm:$0xff]
      %v2972 = vld [vmem:[%s2958 + $0x68] sm:$0xff]
      %v2973 = vld [vmem:[%s2958 + $0x70] sm:$0xff]
      %v2974 = vld [vmem:[%s2958 + $0x78] sm:$0xff]
      %v2975 = vld [vmem:[%s2958 + $0x80] sm:$0xff]
      %v2976 = vld [vmem:[%s2958 + $0x88] sm:$0xff]
      %v2977 = vld [vmem:[%s2958 + $0x90] sm:$0xff]
      %v2978 = vld [vmem:[%s2958 + $0x98] sm:$0xff]
      %v2979 = vld [vmem:[%s2958 + $0xa0] sm:$0xff]
      %v2980 = vld [vmem:[%s2958 + $0xa8] sm:$0xff]
      %v2981 = vld [vmem:[%s2958 + $0xb0] sm:$0xff]
      %v2982 = vld [vmem:[%s2958 + $0xb8] sm:$0xff]
      %v2983 = vld [vmem:[%s2958 + $0xc0] sm:$0xff]
      %v2984 = vld [vmem:[%s2958 + $0xc8] sm:$0xff]
      %v2985 = vld [vmem:[%s2958 + $0xd0] sm:$0xff]
      %v2986 = vld [vmem:[%s2958 + $0xd8] sm:$0xff]
      %v2987 = vld [vmem:[%s2958 + $0xe0] sm:$0xff]
      %v2988 = vld [vmem:[%s2958 + $0xe8] sm:$0xff]
      %v2989 = vld [vmem:[%s2958 + $0xf0] sm:$0xff]
      %v2990 = vld [vmem:[%s2958 + $0xf8] sm:$0xff]
      %s2991 = scalar_lea.vmem %s9, 2
      %v2992 = vld [vmem:[%s2991] sm:$0x3]
      %v2994 = vlaneseq
      %v2995 = vshrl.u32 %v2994, 7
      %v2996 = vsub.s32 0, %v2995
      %v2997 = vrot.slane %v2992, %v2996
      %v2998 = vlaneseq
      %v2999 = vshrl.u32 %v2998, 7
      %v3000 = vsub.s32 1, %v2999
      %v3001 = vrot.slane %v2992, %v3000
      %3004 = vmatprep.subr.mxu0 %v2990
      %3005 = vmatpush1.msra.mxu0 %v2989
      %3006 = vmatprep.subr.mxu0 %v2988
      %3007 = vmatpush1.msra.mxu0 %v2987
      %3008 = vmatprep.subr.mxu0 %v2986
      %3009 = vmatpush1.msra.mxu0 %v2985
      %3010 = vmatprep.subr.mxu0 %v2984
      %3011 = vmatpush1.msra.mxu0 %v2983
      %3012 = vmatprep.subr.mxu0 %v2982
      %3013 = vmatpush1.msra.mxu0 %v2981
      %3014 = vmatprep.subr.mxu0 %v2980
      %3015 = vmatpush1.msra.mxu0 %v2979
      %3016 = vmatprep.subr.mxu0 %v2978
      %3017 = vmatpush1.msra.mxu0 %v2977
      %3018 = vmatprep.subr.mxu0 %v2976
      %3019 = vmatpush1.msra.mxu0 %v2975
      %3020 = vmatprep.subr.mxu0 %v2974
      %3021 = vmatpush1.msra.mxu0 %v2973
      %3022 = vmatprep.subr.mxu0 %v2972
      %3023 = vmatpush1.msra.mxu0 %v2971
      %3024 = vmatprep.subr.mxu0 %v2970
      %3025 = vmatpush1.msra.mxu0 %v2969
      %3026 = vmatprep.subr.mxu0 %v2968
      %3027 = vmatpush1.msra.mxu0 %v2967
      %3028 = vmatprep.subr.mxu0 %v2966
      %3029 = vmatpush1.msra.mxu0 %v2965
      %3030 = vmatprep.subr.mxu0 %v2964
      %3031 = vmatpush1.msra.mxu0 %v2963
      %3032 = vmatprep.subr.mxu0 %v2962
      %3033 = vmatpush1.msra.mxu0 %v2961
      %3034 = vmatprep.subr.mxu0 %v2960
      %3035 = vmatpush1.msra.mxu0 %v2959
      %3036 = vmatprep.subr.mxu0 0.0
      %3037 = vmatpush2.msra.mxu0 0.0
      %3038 = vmatprep.subr.mxu0 0.0
      %3039 = vmatpush2.msra.mxu0 0.0
      %3040 = vmatprep.subr.mxu0 0.0
      %3041 = vmatpush2.msra.mxu0 0.0
      %3042 = vmatprep.subr.mxu0 0.0
      %3043 = vmatpush2.msra.mxu0 0.0
      %3044 = vmatprep.subr.mxu0 0.0
      %3045 = vmatpush2.msra.mxu0 0.0
      %3046 = vmatprep.subr.mxu0 0.0
      %3047 = vmatpush2.msra.mxu0 0.0
      %3048 = vmatprep.subr.mxu0 0.0
      %3049 = vmatpush2.msra.mxu0 0.0
      %3050 = vmatprep.subr.mxu0 0.0
      %3051 = vmatpush2.msra.mxu0 0.0
      %3052 = vmatprep.subr.mxu0 0.0
      %3053 = vmatpush2.msra.mxu0 0.0
      %3054 = vmatprep.subr.mxu0 0.0
      %3055 = vmatpush2.msra.mxu0 0.0
      %3056 = vmatprep.subr.mxu0 0.0
      %3057 = vmatpush2.msra.mxu0 0.0
      %3058 = vmatprep.subr.mxu0 0.0
      %3059 = vmatpush2.msra.mxu0 0.0
      %3060 = vmatprep.subr.mxu0 0.0
      %3061 = vmatpush2.msra.mxu0 0.0
      %3062 = vmatprep.subr.mxu0 0.0
      %3063 = vmatpush2.msra.mxu0 0.0
      %3064 = vmatprep.subr.mxu0 0.0
      %3065 = vmatpush2.msra.mxu0 0.0
      %3066 = vmatprep.subr.mxu0 0.0
      %3067 = vmatpush2.msra.mxu0 0.0
      %3068 = vmatprep.mubr.f32.mxu0 0.0
      %3069 = vmatmul.mubr.f32.gmra.mxu0 %v2957
      %v3070 = vpop.f32.mrf.mxu0
      %v3071 = vadd.f32 %v2997, %v3070
      %v3072 = vpop.f32.mrf.mxu0
      %v3073 = vadd.f32 %v3001, %v3072
      %3074 = vdwg.mxu0
      %v3075 = vmul.f32 %v3071, 0.5
      %v3076 = vmul.f32 %v3073, 0.5
      %v3077 = vmul.f32 %v3071, 0.044715
      %v3078 = vmul.f32 %v3073, 0.044715
      %v3079 = vmul.f32 %v3077, %v3071
      %v3080 = vmul.f32 %v3078, %v3073
      %v3081 = vmul.f32 %v3079, %v3071
      %v3082 = vmul.f32 %v3080, %v3073
      %v3083 = vadd.f32 %v3071, %v3081
      %v3084 = vadd.f32 %v3073, %v3082
      %v3085 = vmul.f32 %v3083, 0.7978846
      %v3086 = vmul.f32 %v3084, 0.7978846
      %v3087 = vtanh.pop %v3085
      %v3088 = vtanh.pop %v3086
      %v3089 = vadd.f32 %v3087, 1.0
      %v3090 = vadd.f32 %v3088, 1.0
      %v3091 = vmul.f32 %v3075, %v3089
      %v3092 = vmul.f32 %v3076, %v3090
      %s3093 = scalar_lea.vmem %s10, 256
      %v3094 = vld [vmem:[%s3093] sm:$0xff]
      %v3095 = vld [vmem:[%s3093 + $0x8] sm:$0xff]
      %v3096 = vld [vmem:[%s3093 + $0x10] sm:$0xff]
      %v3097 = vld [vmem:[%s3093 + $0x18] sm:$0xff]
      %v3098 = vld [vmem:[%s3093 + $0x20] sm:$0xff]
      %v3099 = vld [vmem:[%s3093 + $0x28] sm:$0xff]
      %v3100 = vld [vmem:[%s3093 + $0x30] sm:$0xff]
      %v3101 = vld [vmem:[%s3093 + $0x38] sm:$0xff]
      %v3102 = vld [vmem:[%s3093 + $0x40] sm:$0xff]
      %v3103 = vld [vmem:[%s3093 + $0x48] sm:$0xff]
      %v3104 = vld [vmem:[%s3093 + $0x50] sm:$0xff]
      %v3105 = vld [vmem:[%s3093 + $0x58] sm:$0xff]
      %v3106 = vld [vmem:[%s3093 + $0x60] sm:$0xff]
      %v3107 = vld [vmem:[%s3093 + $0x68] sm:$0xff]
      %v3108 = vld [vmem:[%s3093 + $0x70] sm:$0xff]
      %v3109 = vld [vmem:[%s3093 + $0x78] sm:$0xff]
      %v3110 = vld [vmem:[%s3093 + $0x80] sm:$0xff]
      %v3111 = vld [vmem:[%s3093 + $0x88] sm:$0xff]
      %v3112 = vld [vmem:[%s3093 + $0x90] sm:$0xff]
      %v3113 = vld [vmem:[%s3093 + $0x98] sm:$0xff]
      %v3114 = vld [vmem:[%s3093 + $0xa0] sm:$0xff]
      %v3115 = vld [vmem:[%s3093 + $0xa8] sm:$0xff]
      %v3116 = vld [vmem:[%s3093 + $0xb0] sm:$0xff]
      %v3117 = vld [vmem:[%s3093 + $0xb8] sm:$0xff]
      %v3118 = vld [vmem:[%s3093 + $0xc0] sm:$0xff]
      %v3119 = vld [vmem:[%s3093 + $0xc8] sm:$0xff]
      %v3120 = vld [vmem:[%s3093 + $0xd0] sm:$0xff]
      %v3121 = vld [vmem:[%s3093 + $0xd8] sm:$0xff]
      %v3122 = vld [vmem:[%s3093 + $0xe0] sm:$0xff]
      %v3123 = vld [vmem:[%s3093 + $0xe8] sm:$0xff]
      %v3124 = vld [vmem:[%s3093 + $0xf0] sm:$0xff]
      %v3125 = vld [vmem:[%s3093 + $0xf8] sm:$0xff]
      %s3126 = scalar_lea.vmem %s7, 9
      %v3127 = vld [vmem:[%s3126] sm:$0x1]
      %v3129 = vlaneseq
      %v3130 = vshrl.u32 %v3129, 7
      %v3131 = vsub.s32 0, %v3130
      %v3132 = vrot.slane %v3127, %v3131
      %3134 = vmatprep.subr.mxu0 0.0
      %3135 = vmatpush1.msra.mxu0 %v3109
      %3136 = vmatprep.subr.mxu0 0.0
      %3137 = vmatpush1.msra.mxu0 %v3108
      %3138 = vmatprep.subr.mxu0 0.0
      %3139 = vmatpush1.msra.mxu0 %v3107
      %3140 = vmatprep.subr.mxu0 0.0
      %3141 = vmatpush1.msra.mxu0 %v3106
      %3142 = vmatprep.subr.mxu0 0.0
      %3143 = vmatpush1.msra.mxu0 %v3105
      %3144 = vmatprep.subr.mxu0 0.0
      %3145 = vmatpush1.msra.mxu0 %v3104
      %3146 = vmatprep.subr.mxu0 0.0
      %3147 = vmatpush1.msra.mxu0 %v3103
      %3148 = vmatprep.subr.mxu0 0.0
      %3149 = vmatpush1.msra.mxu0 %v3102
      %3150 = vmatprep.subr.mxu0 0.0
      %3151 = vmatpush1.msra.mxu0 %v3101
      %3152 = vmatprep.subr.mxu0 0.0
      %3153 = vmatpush1.msra.mxu0 %v3100
      %3154 = vmatprep.subr.mxu0 0.0
      %3155 = vmatpush1.msra.mxu0 %v3099
      %3156 = vmatprep.subr.mxu0 0.0
      %3157 = vmatpush1.msra.mxu0 %v3098
      %3158 = vmatprep.subr.mxu0 0.0
      %3159 = vmatpush1.msra.mxu0 %v3097
      %3160 = vmatprep.subr.mxu0 0.0
      %3161 = vmatpush1.msra.mxu0 %v3096
      %3162 = vmatprep.subr.mxu0 0.0
      %3163 = vmatpush1.msra.mxu0 %v3095
      %3164 = vmatprep.subr.mxu0 0.0
      %3165 = vmatpush1.msra.mxu0 %v3094
      %3166 = vmatprep.subr.mxu0 0.0
      %3167 = vmatpush2.msra.mxu0 %v3125
      %3168 = vmatprep.subr.mxu0 0.0
      %3169 = vmatpush2.msra.mxu0 %v3124
      %3170 = vmatprep.subr.mxu0 0.0
      %3171 = vmatpush2.msra.mxu0 %v3123
      %3172 = vmatprep.subr.mxu0 0.0
      %3173 = vmatpush2.msra.mxu0 %v3122
      %3174 = vmatprep.subr.mxu0 0.0
      %3175 = vmatpush2.msra.mxu0 %v3121
      %3176 = vmatprep.subr.mxu0 0.0
      %3177 = vmatpush2.msra.mxu0 %v3120
      %3178 = vmatprep.subr.mxu0 0.0
      %3179 = vmatpush2.msra.mxu0 %v3119
      %3180 = vmatprep.subr.mxu0 0.0
      %3181 = vmatpush2.msra.mxu0 %v3118
      %3182 = vmatprep.subr.mxu0 0.0
      %3183 = vmatpush2.msra.mxu0 %v3117
      %3184 = vmatprep.subr.mxu0 0.0
      %3185 = vmatpush2.msra.mxu0 %v3116
      %3186 = vmatprep.subr.mxu0 0.0
      %3187 = vmatpush2.msra.mxu0 %v3115
      %3188 = vmatprep.subr.mxu0 0.0
      %3189 = vmatpush2.msra.mxu0 %v3114
      %3190 = vmatprep.subr.mxu0 0.0
      %3191 = vmatpush2.msra.mxu0 %v3113
      %3192 = vmatprep.subr.mxu0 0.0
      %3193 = vmatpush2.msra.mxu0 %v3112
      %3194 = vmatprep.subr.mxu0 0.0
      %3195 = vmatpush2.msra.mxu0 %v3111
      %3196 = vmatprep.subr.mxu0 0.0
      %3197 = vmatpush2.msra.mxu0 %v3110
      %3198 = vmatprep.mubr.f32.mxu0 %v3092
      %3199 = vmatmul.mubr.f32.gmra.mxu0 %v3091
      %v3200 = vpop.f32.mrf.mxu0
      %v3201 = vadd.f32 %v3132, %v3200
      %v3202 = vpop.f32.mrf.mxu0
      %3203 = vdwg.mxu0
      %v3204 = vadd.f32 %v2957, %v3201
      %s3205 = scalar_lea.vmem %s7, 10
      %v3206 = vld [vmem:[%s3205] sm:$0x1]
      %s3207 = scalar_lea.vmem %s7, 11
      %v3208 = vld [vmem:[%s3207] sm:$0x1]
      %3209 = vadd.xlane.f32.xlu0 %v3204
      %v3210 = vpop.xlane.xlu0 %3209
      %v3211 = vmul.f32 %v3210, %v1564
      %v3212 = vsub.f32 %v3204, %v3211
      %v3213 = vmul.f32 %v3212, %v3212
      %3214 = vadd.xlane.f32.xlu0 %v3213
      %v3215 = vpop.xlane.xlu0 %3214
      %v3216 = vmul.f32 %v3215, %v1564
      %v3217 = vadd.f32 %v3216, 1e-12
      %v3218 = vrsqrt.pop %v3217
      %v3219 = vmul.f32 %v3212, %v3218
      %v3221 = vlaneseq
      %v3222 = vshrl.u32 %v3221, 7
      %v3223 = vsub.s32 0, %v3222
      %v3224 = vrot.slane %v3206, %v3223
      %v3226 = vmul.f32 %v3219, %v3224
      %v3228 = vlaneseq
      %v3229 = vshrl.u32 %v3228, 7
      %v3230 = vsub.s32 0, %v3229
      %v3231 = vrot.slane %v3208, %v3230
      %v3233 = vadd.f32 %v3226, %v3231
      %v3234 = vld [vmem:[%s475] sm:$0xff]
      %v3235 = vld [vmem:[%s479] sm:$0xff]
      %3237 = vset.pattern.permute.xlu0 0
      %3238 = vperm.xlu0 %3237, %v3234
      %v3239 = vpop.permute.xlu0 %3238
      %v3241 = vmul.f32 %v3233, %v3239
      %v3242 = vadd.f32 %v3241, 1.0
      %v3243 = vrot.slane %v3242, 4
      %v3244 = vmax.f32 %v3242, %v3243
      %v3245 = vrot.slane %v3244, 2
      %v3246 = vmax.f32 %v3244, %v3245
      %v3247 = vrot.slane %v3246, 1
      %v3248 = vmax.f32 %v3246, %v3247
      %v3249 = vsub.f32 %v3248, 1.0
      %3251 = vset.pattern.permute.xlu0 0
      %3252 = vperm.xlu0 %3251, %v3235
      %v3253 = vpop.permute.xlu0 %3252
      %v3255 = vmul.f32 %v3233, %v3253
      %v3256 = vadd.f32 %v3255, 1.0
      %v3257 = vrot.slane %v3256, 4
      %v3258 = vmax.f32 %v3256, %v3257
      %v3259 = vrot.slane %v3258, 2
      %v3260 = vmax.f32 %v3258, %v3259
      %v3261 = vrot.slane %v3260, 1
      %v3262 = vmax.f32 %v3260, %v3261
      %v3263 = vsub.f32 %v3262, 1.0
      %v3264 = vld [vmem:[%s11] sm:$0xff]
      %v3265 = vld [vmem:[%s11 + $0x8] sm:$0xff]
      %v3266 = vld [vmem:[%s11 + $0x10] sm:$0xff]
      %v3267 = vld [vmem:[%s11 + $0x18] sm:$0xff]
      %v3268 = vld [vmem:[%s11 + $0x20] sm:$0xff]
      %v3269 = vld [vmem:[%s11 + $0x28] sm:$0xff]
      %v3270 = vld [vmem:[%s11 + $0x30] sm:$0xff]
      %v3271 = vld [vmem:[%s11 + $0x38] sm:$0xff]
      %v3272 = vld [vmem:[%s11 + $0x40] sm:$0xff]
      %v3273 = vld [vmem:[%s11 + $0x48] sm:$0xff]
      %v3274 = vld [vmem:[%s11 + $0x50] sm:$0xff]
      %v3275 = vld [vmem:[%s11 + $0x58] sm:$0xff]
      %v3276 = vld [vmem:[%s11 + $0x60] sm:$0xff]
      %v3277 = vld [vmem:[%s11 + $0x68] sm:$0xff]
      %v3278 = vld [vmem:[%s11 + $0x70] sm:$0xff]
      %v3279 = vld [vmem:[%s11 + $0x78] sm:$0xff]
      %v3280 = vld [vmem:[%s11 + $0x80] sm:$0xff]
      %v3281 = vld [vmem:[%s11 + $0x88] sm:$0xff]
      %v3282 = vld [vmem:[%s11 + $0x90] sm:$0xff]
      %v3283 = vld [vmem:[%s11 + $0x98] sm:$0xff]
      %v3284 = vld [vmem:[%s11 + $0xa0] sm:$0xff]
      %v3285 = vld [vmem:[%s11 + $0xa8] sm:$0xff]
      %v3286 = vld [vmem:[%s11 + $0xb0] sm:$0xff]
      %v3287 = vld [vmem:[%s11 + $0xb8] sm:$0xff]
      %v3288 = vld [vmem:[%s11 + $0xc0] sm:$0xff]
      %v3289 = vld [vmem:[%s11 + $0xc8] sm:$0xff]
      %v3290 = vld [vmem:[%s11 + $0xd0] sm:$0xff]
      %v3291 = vld [vmem:[%s11 + $0xd8] sm:$0xff]
      %v3292 = vld [vmem:[%s11 + $0xe0] sm:$0xff]
      %v3293 = vld [vmem:[%s11 + $0xe8] sm:$0xff]
      %v3294 = vld [vmem:[%s11 + $0xf0] sm:$0xff]
      %v3295 = vld [vmem:[%s11 + $0xf8] sm:$0xff]
      %s3296 = scalar_lea.vmem %s11, 256
      %v3297 = vld [vmem:[%s3296] sm:$0xff]
      %v3298 = vld [vmem:[%s3296 + $0x8] sm:$0xff]
      %v3299 = vld [vmem:[%s3296 + $0x10] sm:$0xff]
      %v3300 = vld [vmem:[%s3296 + $0x18] sm:$0xff]
      %v3301 = vld [vmem:[%s3296 + $0x20] sm:$0xff]
      %v3302 = vld [vmem:[%s3296 + $0x28] sm:$0xff]
      %v3303 = vld [vmem:[%s3296 + $0x30] sm:$0xff]
      %v3304 = vld [vmem:[%s3296 + $0x38] sm:$0xff]
      %v3305 = vld [vmem:[%s3296 + $0x40] sm:$0xff]
      %v3306 = vld [vmem:[%s3296 + $0x48] sm:$0xff]
      %v3307 = vld [vmem:[%s3296 + $0x50] sm:$0xff]
      %v3308 = vld [vmem:[%s3296 + $0x58] sm:$0xff]
      %v3309 = vld [vmem:[%s3296 + $0x60] sm:$0xff]
      %v3310 = vld [vmem:[%s3296 + $0x68] sm:$0xff]
      %v3311 = vld [vmem:[%s3296 + $0x70] sm:$0xff]
      %v3312 = vld [vmem:[%s3296 + $0x78] sm:$0xff]
      %v3313 = vld [vmem:[%s3296 + $0x80] sm:$0xff]
      %v3314 = vld [vmem:[%s3296 + $0x88] sm:$0xff]
      %v3315 = vld [vmem:[%s3296 + $0x90] sm:$0xff]
      %v3316 = vld [vmem:[%s3296 + $0x98] sm:$0xff]
      %v3317 = vld [vmem:[%s3296 + $0xa0] sm:$0xff]
      %v3318 = vld [vmem:[%s3296 + $0xa8] sm:$0xff]
      %v3319 = vld [vmem:[%s3296 + $0xb0] sm:$0xff]
      %v3320 = vld [vmem:[%s3296 + $0xb8] sm:$0xff]
      %v3321 = vld [vmem:[%s3296 + $0xc0] sm:$0xff]
      %v3322 = vld [vmem:[%s3296 + $0xc8] sm:$0xff]
      %v3323 = vld [vmem:[%s3296 + $0xd0] sm:$0xff]
      %v3324 = vld [vmem:[%s3296 + $0xd8] sm:$0xff]
      %v3325 = vld [vmem:[%s3296 + $0xe0] sm:$0xff]
      %v3326 = vld [vmem:[%s3296 + $0xe8] sm:$0xff]
      %v3327 = vld [vmem:[%s3296 + $0xf0] sm:$0xff]
      %v3328 = vld [vmem:[%s3296 + $0xf8] sm:$0xff]
      %3329 = vmatprep.subr.mxu0 %v3328
      %3330 = vmatpush1.msra.mxu0 %v3327
      %3331 = vmatprep.subr.mxu0 %v3326
      %3332 = vmatpush1.msra.mxu0 %v3325
      %3333 = vmatprep.subr.mxu0 %v3324
      %3334 = vmatpush1.msra.mxu0 %v3323
      %3335 = vmatprep.subr.mxu0 %v3322
      %3336 = vmatpush1.msra.mxu0 %v3321
      %3337 = vmatprep.subr.mxu0 %v3320
      %3338 = vmatpush1.msra.mxu0 %v3319
      %3339 = vmatprep.subr.mxu0 %v3318
      %3340 = vmatpush1.msra.mxu0 %v3317
      %3341 = vmatprep.subr.mxu0 %v3316
      %3342 = vmatpush1.msra.mxu0 %v3315
      %3343 = vmatprep.subr.mxu0 %v3314
      %3344 = vmatpush1.msra.mxu0 %v3313
      %3345 = vmatprep.subr.mxu0 %v3312
      %3346 = vmatpush1.msra.mxu0 %v3311
      %3347 = vmatprep.subr.mxu0 %v3310
      %3348 = vmatpush1.msra.mxu0 %v3309
      %3349 = vmatprep.subr.mxu0 %v3308
      %3350 = vmatpush1.msra.mxu0 %v3307
      %3351 = vmatprep.subr.mxu0 %v3306
      %3352 = vmatpush1.msra.mxu0 %v3305
      %3353 = vmatprep.subr.mxu0 %v3304
      %3354 = vmatpush1.msra.mxu0 %v3303
      %3355 = vmatprep.subr.mxu0 %v3302
      %3356 = vmatpush1.msra.mxu0 %v3301
      %3357 = vmatprep.subr.mxu0 %v3300
      %3358 = vmatpush1.msra.mxu0 %v3299
      %3359 = vmatprep.subr.mxu0 %v3298
      %3360 = vmatpush1.msra.mxu0 %v3297
      %3361 = vmatprep.subr.mxu0 0.0
      %3362 = vmatpush2.msra.mxu0 0.0
      %3363 = vmatprep.subr.mxu0 0.0
      %3364 = vmatpush2.msra.mxu0 0.0
      %3365 = vmatprep.subr.mxu0 0.0
      %3366 = vmatpush2.msra.mxu0 0.0
      %3367 = vmatprep.subr.mxu0 0.0
      %3368 = vmatpush2.msra.mxu0 0.0
      %3369 = vmatprep.subr.mxu0 0.0
      %3370 = vmatpush2.msra.mxu0 0.0
      %3371 = vmatprep.subr.mxu0 0.0
      %3372 = vmatpush2.msra.mxu0 0.0
      %3373 = vmatprep.subr.mxu0 0.0
      %3374 = vmatpush2.msra.mxu0 0.0
      %3375 = vmatprep.subr.mxu0 0.0
      %3376 = vmatpush2.msra.mxu0 0.0
      %3377 = vmatprep.subr.mxu0 0.0
      %3378 = vmatpush2.msra.mxu0 0.0
      %3379 = vmatprep.subr.mxu0 0.0
      %3380 = vmatpush2.msra.mxu0 0.0
      %3381 = vmatprep.subr.mxu0 0.0
      %3382 = vmatpush2.msra.mxu0 0.0
      %3383 = vmatprep.subr.mxu0 0.0
      %3384 = vmatpush2.msra.mxu0 0.0
      %3385 = vmatprep.subr.mxu0 0.0
      %3386 = vmatpush2.msra.mxu0 0.0
      %3387 = vmatprep.subr.mxu0 0.0
      %3388 = vmatpush2.msra.mxu0 0.0
      %3389 = vmatprep.subr.mxu0 0.0
      %3390 = vmatpush2.msra.mxu0 0.0
      %3391 = vmatprep.subr.mxu0 0.0
      %3392 = vmatpush2.msra.mxu0 0.0
      %3393 = vmatprep.mubr.f32.mxu0 0.0
      %3394 = vmatmul.mubr.f32.gmra.mxu0 %v3263
      %v3395 = vpop.f32.mrf.mxu0
      %v3396 = vadd.f32 0.0, %v3395
      %v3397 = vpop.f32.mrf.mxu0
      %v3398 = vadd.f32 0.0, %v3397
      %3399 = vdwg.mxu0
      %3400 = vmatprep.subr.mxu0 %v3295
      %3401 = vmatpush1.msra.mxu0 %v3294
      %3402 = vmatprep.subr.mxu0 %v3293
      %3403 = vmatpush1.msra.mxu0 %v3292
      %3404 = vmatprep.subr.mxu0 %v3291
      %3405 = vmatpush1.msra.mxu0 %v3290
      %3406 = vmatprep.subr.mxu0 %v3289
      %3407 = vmatpush1.msra.mxu0 %v3288
      %3408 = vmatprep.subr.mxu0 %v3287
      %3409 = vmatpush1.msra.mxu0 %v3286
      %3410 = vmatprep.subr.mxu0 %v3285
      %3411 = vmatpush1.msra.mxu0 %v3284
      %3412 = vmatprep.subr.mxu0 %v3283
      %3413 = vmatpush1.msra.mxu0 %v3282
      %3414 = vmatprep.subr.mxu0 %v3281
      %3415 = vmatpush1.msra.mxu0 %v3280
      %3416 = vmatprep.subr.mxu0 %v3279
      %3417 = vmatpush1.msra.mxu0 %v3278
      %3418 = vmatprep.subr.mxu0 %v3277
      %3419 = vmatpush1.msra.mxu0 %v3276
      %3420 = vmatprep.subr.mxu0 %v3275
      %3421 = vmatpush1.msra.mxu0 %v3274
      %3422 = vmatprep.subr.mxu0 %v3273
      %3423 = vmatpush1.msra.mxu0 %v3272
      %3424 = vmatprep.subr.mxu0 %v3271
      %3425 = vmatpush1.msra.mxu0 %v3270
      %3426 = vmatprep.subr.mxu0 %v3269
      %3427 = vmatpush1.msra.mxu0 %v3268
      %3428 = vmatprep.subr.mxu0 %v3267
      %3429 = vmatpush1.msra.mxu0 %v3266
      %3430 = vmatprep.subr.mxu0 %v3265
      %3431 = vmatpush1.msra.mxu0 %v3264
      %3432 = vmatprep.subr.mxu0 0.0
      %3433 = vmatpush2.msra.mxu0 0.0
      %3434 = vmatprep.subr.mxu0 0.0
      %3435 = vmatpush2.msra.mxu0 0.0
      %3436 = vmatprep.subr.mxu0 0.0
      %3437 = vmatpush2.msra.mxu0 0.0
      %3438 = vmatprep.subr.mxu0 0.0
      %3439 = vmatpush2.msra.mxu0 0.0
      %3440 = vmatprep.subr.mxu0 0.0
      %3441 = vmatpush2.msra.mxu0 0.0
      %3442 = vmatprep.subr.mxu0 0.0
      %3443 = vmatpush2.msra.mxu0 0.0
      %3444 = vmatprep.subr.mxu0 0.0
      %3445 = vmatpush2.msra.mxu0 0.0
      %3446 = vmatprep.subr.mxu0 0.0
      %3447 = vmatpush2.msra.mxu0 0.0
      %3448 = vmatprep.subr.mxu0 0.0
      %3449 = vmatpush2.msra.mxu0 0.0
      %3450 = vmatprep.subr.mxu0 0.0
      %3451 = vmatpush2.msra.mxu0 0.0
      %3452 = vmatprep.subr.mxu0 0.0
      %3453 = vmatpush2.msra.mxu0 0.0
      %3454 = vmatprep.subr.mxu0 0.0
      %3455 = vmatpush2.msra.mxu0 0.0
      %3456 = vmatprep.subr.mxu0 0.0
      %3457 = vmatpush2.msra.mxu0 0.0
      %3458 = vmatprep.subr.mxu0 0.0
      %3459 = vmatpush2.msra.mxu0 0.0
      %3460 = vmatprep.subr.mxu0 0.0
      %3461 = vmatpush2.msra.mxu0 0.0
      %3462 = vmatprep.subr.mxu0 0.0
      %3463 = vmatpush2.msra.mxu0 0.0
      %3464 = vmatprep.mubr.f32.mxu0 0.0
      %3465 = vmatmul.mubr.f32.gmra.mxu0 %v3249
      %v3466 = vpop.f32.mrf.mxu0
      %v3467 = vadd.f32 %v3396, %v3466
      %v3468 = vpop.f32.mrf.mxu0
      %v3469 = vadd.f32 %v3398, %v3468
      %3470 = vdwg.mxu0
      %v3471 = vld [vmem:[%s12] sm:$0x3]
      %v3473 = vlaneseq
      %v3474 = vshrl.u32 %v3473, 7
      %v3475 = vsub.s32 0, %v3474
      %v3476 = vrot.slane %v3471, %v3475
      %v3477 = vlaneseq
      %v3478 = vshrl.u32 %v3477, 7
      %v3479 = vsub.s32 1, %v3478
      %v3480 = vrot.slane %v3471, %v3479
      %v3483 = vadd.f32 %v3467, %v3476
      %v3484 = vadd.f32 %v3469, %v3480
      %v3487 = vcombine.low %v3483, %v3484
      %v3489 = vunpack.c.l.s4 1966171168
      %v3490 = vunpack.c.0.s8 %v3489
      %v3491 = vlaneseq
      %v3492 = vshrl.u32 %v3491, 7
      %v3493 = vsub.s32 %v3490, %v3492
      %v3494 = vrot.slane %v3487, %v3493
      %v3496 = vunpack.c.l.s4 1966171168
      %v3497 = vunpack.c.0.s8 %v3496
      %v3498 = vlaneseq
      %v3499 = vshrl.u32 %v3498, 7
      %v3500 = vsub.s32 %v3497, %v3499
      %v3501 = vrot.slane %v3494, %v3500
      %v3503 = vlaneseq
      %vm3504 = vcmp.ge.s32.totalorder %v3503, 0
      %vm3505 = vcmp.lt.s32.totalorder %v3503, 256
      %vm3506 = vmand %vm3504, %vm3505
      %3507 = vst.msk [vmem:[%s483] sm:$0x3] %vm3506, %v3501
      %p3508 = scmp.lt.s32.totalorder %s24, 1
      %s3509 = scalar_select %p3508, %s24, 1
      %s3510 = smul.addr %s3509, 2
      %s3511 = scalar_lea.vmem %s13, %s3510
      // Predicated region
      $region73: #{forward.1} parent=71 // pred_check
        %p3512 = pneg %p335
      $region74: #{forward.1} parent=71 // pred_check_branch
        %3514 = sbr.rel (%p3512) target = $region76
      $region75: #{forward.1} parent=71 // pred_region
        _
      $region76: #{forward.1} parent=71 // pred_fallthru
        _
    $region72: #{forward.1} parent=5 // pred_fallthru
      _
    %p3515 = scmp.le.s32.totalorder 2, %s19
    // Predicated region
    $region77: #{forward.1} parent=5 // pred_check
      %p3516 = pneg %p3515
    $region78: #{forward.1} parent=5 // pred_check_branch
      %3518 = sbr.rel (%p3516) target = $region80
    $region79: #{forward.1} parent=5 // pred_region
      %s3519 = ssub.s32 %s19, 2
      // Predicated region
      $region81: #{forward.1} parent=79 // pred_check
        %p3520 = pneg %p341
      $region82: #{forward.1} parent=79 // pred_check_branch
        %3522 = sbr.rel (%p3520) target = $region84
      $region83: #{forward.1} parent=79 // pred_region
        %p3523 = scmp.lt.s32.totalorder %s25, 1
        %s3524 = scalar_select %p3523, %s25, 1
        %s3525 = smul.addr %s3524, 2
        %s3526 = scalar_lea.vmem %s13, %s3525
      $region84: #{forward.1} parent=79 // pred_fallthru
        _
    $region80: #{forward.1} parent=5 // pred_fallthru
      _
  $region6: #{forward.1} parent=0 // loop_footer
    %s23 = sadd.s32 1, %s19
  $region7: #{forward.1} parent=0 // loop_footer_branch
    %18 = sbr.rel target = $region3
  $region8: #{forward.1} parent=0 // loop_exit
    _

</llo_original>
